<compile_context>
chip_gen: v6e
topology: v6e:2x2x1
jax: 0.10.0
libtpu: 0.0.40
codegen_flags: <defaults>
</compile_context>

<pallas_src>
import jax
import jax.numpy as jnp
from jax import lax
from jax.experimental import pallas as pl
from jax.experimental.pallas import tpu as pltpu

INPUT_SIZE = 25
HIDDEN_SIZE = 50
HIDDEN_PAD = 128          # per-gate lane-aligned width
NUM_LAYERS = 2
OUTPUT_SIZE = 3


def _stacked_lstm_kernel(x_ref, wih0_ref, whh0_ref, b0_ref,
                         w1cat_ref, b1_ref, wfc_ref, bfc_ref,
                         out_ref,
                         xproj_scr):
    # x_ref: (T*B, I) time-major-flattened input; out_ref: (B, O)
    TB = x_ref.shape[0]
    B = out_ref.shape[0]
    T = TB // B
    Hp = HIDDEN_PAD

    # --- Hoisted layer-0 input projection (+ its bias), one big matmul. ---
    # Padded lanes of wih0/b0 are zero -> padded lanes of xproj are zero.
    xproj_scr[...] = (jnp.dot(x_ref[...], wih0_ref[...],
                              preferred_element_type=jnp.float32)
                      + b0_ref[...])                        # (T*B, 4*Hp)

    def gate_split(pre):
        # PyTorch nn.LSTM gate order [i, f, g, o]; each gate is a full
        # 128-lane-aligned block -> zero-shuffle slices.
        i = jax.nn.sigmoid(pre[:, 0 * Hp:1 * Hp])
        f = jax.nn.sigmoid(pre[:, 1 * Hp:2 * Hp])
        g = jnp.tanh(pre[:, 2 * Hp:3 * Hp])
        o = jax.nn.sigmoid(pre[:, 3 * Hp:4 * Hp])
        return i, f, g, o

    def step(t, carry):
        h0, c0, h1, c1 = carry

        # Layer 0: per-step work is only the recurrent matmul; the input
        # contribution (incl. bias) was precomputed above.
        base = pl.multiple_of(t * B, B)
        pre0 = (xproj_scr[pl.ds(base, B), :]
                + jnp.dot(h0, whh0_ref[...],
                          preferred_element_type=jnp.float32))
        i0, f0, g0, o0 = gate_split(pre0)
        c0 = f0 * c0 + i0 * g0
        h0 = o0 * jnp.tanh(c0)

        # Layer 1: single fused matmul over [h0 | h1] against [wih1; whh1].
        # TODO(synk): nn.LSTM inter-layer dropout (p=0.2) is train-only; this
        # kernel implements eval-mode (identity) semantics.
        hcat = jnp.concatenate([h0, h1], axis=-1)           # (B, 2*Hp)
        pre1 = (jnp.dot(hcat, w1cat_ref[...],
                        preferred_element_type=jnp.float32)
                + b1_ref[...])                              # implicit broadcast
        i1, f1, g1, o1 = gate_split(pre1)
        c1 = f1 * c1 + i1 * g1
        h1 = o1 * jnp.tanh(c1)

        return h0, c0, h1, c1

    zeros = jnp.zeros((B, Hp), jnp.float32)
    # T=8: full unroll is fine; cap the unroll factor if T grows (vreg pressure).
    _, _, h1, _ = lax.fori_loop(0, T, step, (zeros, zeros, zeros, zeros),
                                unroll=True)

    # out = fc(out[:, -1, :]) — last hidden state of the top layer.
    # Padded rows of wfc are zero (and padded lanes of h1 are zero anyway).
    out_ref[...] = (jnp.dot(h1, wfc_ref[...],
                            preferred_element_type=jnp.float32)
                    + bfc_ref[...])


def stacked_lstm_forward(x, kparams):
    """x: (B, T, INPUT_SIZE) batch-first float32 (as in the PyTorch module).
    Returns (B, OUTPUT_SIZE) float32."""
    B, T, I = x.shape
    # Layout plumbing only: batch-first -> time-major, flattened to (T*B, I)
    # so the in-kernel projection is a single well-shaped matmul.
    x_tm = jnp.transpose(x, (1, 0, 2)).astype(jnp.float32).reshape(T * B, I)

    vmem = pl.BlockSpec(memory_space=pltpu.MemorySpace.VMEM)
    return pl.pallas_call(
        _stacked_lstm_kernel,
        out_shape=jax.ShapeDtypeStruct((B, OUTPUT_SIZE), jnp.float32),
        in_specs=[vmem] * 8,
        out_specs=vmem,
        scratch_shapes=[pltpu.VMEM((T * B, 4 * HIDDEN_PAD), jnp.float32)],
    )(x_tm,
      kparams["wih0"], kparams["whh0"], kparams["b0"],
      kparams["w1cat"], kparams["b1"],
      kparams["wfc"], kparams["bfc"])


# ----------------------------- parameter handling -----------------------------

def init_params(key):
    """Deterministic PyTorch-style init: U(-1/sqrt(H), 1/sqrt(H)), stored in
    PyTorch-native layouts: weight_ih_l* (4H, in), weight_hh_l* (4H, H),
    biases (4H,), fc weight (O, H), fc bias (O,)."""
    H, I, O = HIDDEN_SIZE, INPUT_SIZE, OUTPUT_SIZE
    bound = H ** -0.5
    keys = jax.random.split(key, 10)

    def u(k, shape):
        return jax.random.uniform(k, shape, jnp.float32, -bound, bound)

    return dict(
        w_ih_l0=u(keys[0], (4 * H, I)),
        w_hh_l0=u(keys[1], (4 * H, H)),
        b_ih_l0=u(keys[2], (4 * H,)),
        b_hh_l0=u(keys[3], (4 * H,)),
        w_ih_l1=u(keys[4], (4 * H, H)),
        w_hh_l1=u(keys[5], (4 * H, H)),
        b_ih_l1=u(keys[6], (4 * H,)),
        b_hh_l1=u(keys[7], (4 * H,)),
        w_fc=u(keys[8], (O, H)),
        b_fc=u(keys[9], (O,)),
    )


def _pad_gates_out(w_t, H=HIDDEN_SIZE, Hp=HIDDEN_PAD):
    """(in, 4H) -> (in, 4*Hp): zero-pad each gate block to 128 lanes,
    preserving the [i|f|g|o] gate order along the fused axis."""
    blocks = [w_t[:, k * H:(k + 1) * H] for k in range(4)]
    return jnp.concatenate(
        [jnp.pad(b, ((0, 0), (0, Hp - H))) for b in blocks], axis=-1)


def pack_params(raw):
    """PyTorch-layout raw weights -> gate-fused, pre-transposed, lane-padded
    kernel weights (pre = x @ W (+ h @ Whh)).  All padded rows/cols/lanes are
    exactly zero so padded state lanes remain zero through the recurrence."""
    H, Hp = HIDDEN_SIZE, HIDDEN_PAD

    wih0 = _pad_gates_out(raw["w_ih_l0"].T)                           # (I, 4Hp)
    whh0 = _pad_gates_out(raw["w_hh_l0"].T)                           # (H, 4Hp)
    whh0 = jnp.pad(whh0, ((0, Hp - H), (0, 0)))                       # (Hp, 4Hp)
    b0 = _pad_gates_out((raw["b_ih_l0"] + raw["b_hh_l0"]).reshape(1, -1))

    wih1 = jnp.pad(_pad_gates_out(raw["w_ih_l1"].T), ((0, Hp - H), (0, 0)))
    whh1 = jnp.pad(_pad_gates_out(raw["w_hh_l1"].T), ((0, Hp - H), (0, 0)))
    w1cat = jnp.concatenate([wih1, whh1], axis=0)                     # (2Hp, 4Hp)
    b1 = _pad_gates_out((raw["b_ih_l1"] + raw["b_hh_l1"]).reshape(1, -1))

    wfc = jnp.pad(raw["w_fc"].T, ((0, Hp - H), (0, 0)))               # (Hp, O)
    bfc = raw["b_fc"].reshape(1, -1)                                  # (1, O)

    return dict(wih0=wih0, whh0=whh0, b0=b0, w1cat=w1cat, b1=b1,
                wfc=wfc, bfc=bfc)


def reference_forward(x, raw):
    """Pure-JAX reference with PyTorch-native weight layouts (validates the
    fused/padded layout conversion, not just internal consistency)."""
    B = x.shape[0]
    H = HIDDEN_SIZE

    def layer(inp, w_ih, w_hh, b_ih, b_hh):
        def step(carry, x_t):
            h, c = carry
            pre = x_t @ w_ih.T + h @ w_hh.T + b_ih + b_hh
            i = jax.nn.sigmoid(pre[:, 0:H])
            f = jax.nn.sigmoid(pre[:, H:2 * H])
            g = jnp.tanh(pre[:, 2 * H:3 * H])
            o = jax.nn.sigmoid(pre[:, 3 * H:4 * H])
            c = f * c + i * g
            h = o * jnp.tanh(c)
            return (h, c), h

        init = (jnp.zeros((B, H), jnp.float32), jnp.zeros((B, H), jnp.float32))
        _, hs = lax.scan(step, init, jnp.transpose(inp, (1, 0, 2)))
        return jnp.transpose(hs, (1, 0, 2))

    out0 = layer(x, raw["w_ih_l0"], raw["w_hh_l0"], raw["b_ih_l0"], raw["b_hh_l0"])
    out1 = layer(out0, raw["w_ih_l1"], raw["w_hh_l1"], raw["b_ih_l1"], raw["b_hh_l1"])
    return out1[:, -1, :] @ raw["w_fc"].T + raw["b_fc"]


if __name__ == "__main__":
    key = jax.random.PRNGKey(0)
    kx, kp = jax.random.split(key)

    B, T = 8, 8
    x = jax.random.normal(kx, (B, T, INPUT_SIZE), dtype=jnp.float32)
    raw = init_params(kp)
    kparams = pack_params(raw)

    out = stacked_lstm_forward(x, kparams)
    out = jax.block_until_ready(out)

    ref = reference_forward(x, raw)
    assert out.shape == (B, OUTPUT_SIZE)
    assert jnp.allclose(out, ref, atol=1e-5, rtol=1e-5), "mismatch vs reference"

    print("KERNEL_OK")
</pallas_src>

<mosaic_0001>
module attributes {stable_mosaic.version = 11 : i64} {
  func.func @_stacked_lstm_kernel(%arg0: memref<64x25xf32, #tpu.memory_space<vmem>>, %arg1: memref<25x512xf32, #tpu.memory_space<vmem>>, %arg2: memref<128x512xf32, #tpu.memory_space<vmem>>, %arg3: memref<1x512xf32, #tpu.memory_space<vmem>>, %arg4: memref<256x512xf32, #tpu.memory_space<vmem>>, %arg5: memref<1x512xf32, #tpu.memory_space<vmem>>, %arg6: memref<128x3xf32, #tpu.memory_space<vmem>>, %arg7: memref<1x3xf32, #tpu.memory_space<vmem>>, %arg8: memref<8x3xf32, #tpu.memory_space<vmem>>, %arg9: memref<64x512xf32, #tpu.memory_space<vmem>>) attributes {dimension_semantics = [], scalar_prefetch = 0 : i64, scratch_operands = 1 : i64, tpu.core_type = #tpu.core_type<tc>} {
    %c0 = arith.constant 0 : index
    %c0_0 = arith.constant 0 : index
    %0 = vector.load %arg0[%c0, %c0_0] : memref<64x25xf32, #tpu.memory_space<vmem>>, vector<64x25xf32>
    %c0_1 = arith.constant 0 : index
    %c0_2 = arith.constant 0 : index
    %1 = vector.load %arg1[%c0_1, %c0_2] : memref<25x512xf32, #tpu.memory_space<vmem>>, vector<25x512xf32>
    %cst = arith.constant dense<0.000000e+00> : vector<64x512xf32>
    %2 = tpu.matmul %0, %1, %cst {dimension_numbers = #tpu.dot_dimension_numbers<[1], [0], [0], [1], [0, 0, 1, 1], [], []>} : vector<64x25xf32>, vector<25x512xf32>, vector<64x512xf32> -> vector<64x512xf32>
    %c0_3 = arith.constant 0 : index
    %c0_4 = arith.constant 0 : index
    %3 = vector.load %arg3[%c0_3, %c0_4] : memref<1x512xf32, #tpu.memory_space<vmem>>, vector<1x512xf32>
    %4 = vector.broadcast %3 : vector<1x512xf32> to vector<64x512xf32>
    %5 = arith.addf %2, %4 : vector<64x512xf32>
    %c0_5 = arith.constant 0 : index
    %c0_6 = arith.constant 0 : index
    %6 = vector.load %arg9[%c0_5, %c0_6] : memref<64x512xf32, #tpu.memory_space<vmem>>, vector<64x512xf32>
    tpu.vector_store %arg9[%c0_5, %c0_6], %5 {strides = array<i32>} : memref<64x512xf32, #tpu.memory_space<vmem>>, vector<64x512xf32>,
    %cst_7 = arith.constant 0.000000e+00 : f32
    %7 = vector.broadcast %cst_7 : f32 to vector<8x128xf32>
    %c0_i32 = arith.constant 0 : i32
    %c8_i32 = arith.constant 8 : i32
    %8 = arith.muli %c0_i32, %c8_i32 : i32
    %9 = tpu.assume_multiple %8, 8 : i32
    %10 = arith.index_cast %9 : i32 to index
    %c0_8 = arith.constant 0 : index
    %11 = vector.load %arg9[%10, %c0_8] : memref<64x512xf32, #tpu.memory_space<vmem>>, vector<8x512xf32>
    %c0_9 = arith.constant 0 : index
    %c0_10 = arith.constant 0 : index
    %12 = vector.load %arg2[%c0_9, %c0_10] : memref<128x512xf32, #tpu.memory_space<vmem>>, vector<128x512xf32>
    %cst_11 = arith.constant dense<0.000000e+00> : vector<8x512xf32>
    %13 = tpu.matmul %7, %12, %cst_11 {dimension_numbers = #tpu.dot_dimension_numbers<[1], [0], [0], [1], [0, 0, 1, 1], [], []>} : vector<8x128xf32>, vector<128x512xf32>, vector<8x512xf32> -> vector<8x512xf32>
    %14 = arith.addf %11, %13 : vector<8x512xf32>
    %15 = vector.extract_strided_slice %14 {offsets = [0, 0], sizes = [8, 128], strides = [1, 1]} : vector<8x512xf32> to vector<8x128xf32>
    %16 = arith.negf %15 : vector<8x128xf32>
    %17 = math.exp %16 : vector<8x128xf32>
    %cst_12 = arith.constant 1.000000e+00 : f32
    %18 = vector.broadcast %cst_12 : f32 to vector<8x128xf32>
    %19 = arith.addf %18, %17 : vector<8x128xf32>
    %20 = arith.divf %18, %19 : vector<8x128xf32>
    %21 = vector.extract_strided_slice %14 {offsets = [0, 128], sizes = [8, 128], strides = [1, 1]} : vector<8x512xf32> to vector<8x128xf32>
    %22 = arith.negf %21 : vector<8x128xf32>
    %23 = math.exp %22 : vector<8x128xf32>
    %cst_13 = arith.constant 1.000000e+00 : f32
    %24 = vector.broadcast %cst_13 : f32 to vector<8x128xf32>
    %25 = arith.addf %24, %23 : vector<8x128xf32>
    %26 = arith.divf %24, %25 : vector<8x128xf32>
    %27 = vector.extract_strided_slice %14 {offsets = [0, 256], sizes = [8, 128], strides = [1, 1]} : vector<8x512xf32> to vector<8x128xf32>
    %28 = math.tanh %27 : vector<8x128xf32>
    %29 = vector.extract_strided_slice %14 {offsets = [0, 384], sizes = [8, 128], strides = [1, 1]} : vector<8x512xf32> to vector<8x128xf32>
    %30 = arith.negf %29 : vector<8x128xf32>
    %31 = math.exp %30 : vector<8x128xf32>
    %cst_14 = arith.constant 1.000000e+00 : f32
    %32 = vector.broadcast %cst_14 : f32 to vector<8x128xf32>
    %33 = arith.addf %32, %31 : vector<8x128xf32>
    %34 = arith.divf %32, %33 : vector<8x128xf32>
    %35 = arith.mulf %26, %7 : vector<8x128xf32>
    %36 = arith.mulf %20, %28 : vector<8x128xf32>
    %37 = arith.addf %35, %36 : vector<8x128xf32>
    %38 = math.tanh %37 : vector<8x128xf32>
    %39 = arith.mulf %34, %38 : vector<8x128xf32>
    %40 = tpu.concatenate %39, %7 in 1 : vector<8x128xf32>, vector<8x128xf32> -> vector<8x256xf32>
    %c0_15 = arith.constant 0 : index
    %c0_16 = arith.constant 0 : index
    %41 = vector.load %arg4[%c0_15, %c0_16] : memref<256x512xf32, #tpu.memory_space<vmem>>, vector<256x512xf32>
    %cst_17 = arith.constant dense<0.000000e+00> : vector<8x512xf32>
    %42 = tpu.matmul %40, %41, %cst_17 {dimension_numbers = #tpu.dot_dimension_numbers<[1], [0], [0], [1], [0, 0, 1, 1], [], []>} : vector<8x256xf32>, vector<256x512xf32>, vector<8x512xf32> -> vector<8x512xf32>
    %c0_18 = arith.constant 0 : index
    %c0_19 = arith.constant 0 : index
    %43 = vector.load %arg5[%c0_18, %c0_19] : memref<1x512xf32, #tpu.memory_space<vmem>>, vector<1x512xf32>
    %44 = vector.broadcast %43 : vector<1x512xf32> to vector<8x512xf32>
    %45 = arith.addf %42, %44 : vector<8x512xf32>
    %46 = vector.extract_strided_slice %45 {offsets = [0, 0], sizes = [8, 128], strides = [1, 1]} : vector<8x512xf32> to vector<8x128xf32>
    %47 = arith.negf %46 : vector<8x128xf32>
    %48 = math.exp %47 : vector<8x128xf32>
    %cst_20 = arith.constant 1.000000e+00 : f32
    %49 = vector.broadcast %cst_20 : f32 to vector<8x128xf32>
    %50 = arith.addf %49, %48 : vector<8x128xf32>
    %51 = arith.divf %49, %50 : vector<8x128xf32>
    %52 = vector.extract_strided_slice %45 {offsets = [0, 128], sizes = [8, 128], strides = [1, 1]} : vector<8x512xf32> to vector<8x128xf32>
    %53 = arith.negf %52 : vector<8x128xf32>
    %54 = math.exp %53 : vector<8x128xf32>
    %cst_21 = arith.constant 1.000000e+00 : f32
    %55 = vector.broadcast %cst_21 : f32 to vector<8x128xf32>
    %56 = arith.addf %55, %54 : vector<8x128xf32>
    %57 = arith.divf %55, %56 : vector<8x128xf32>
    %58 = vector.extract_strided_slice %45 {offsets = [0, 256], sizes = [8, 128], strides = [1, 1]} : vector<8x512xf32> to vector<8x128xf32>
    %59 = math.tanh %58 : vector<8x128xf32>
    %60 = vector.extract_strided_slice %45 {offsets = [0, 384], sizes = [8, 128], strides = [1, 1]} : vector<8x512xf32> to vector<8x128xf32>
    %61 = arith.negf %60 : vector<8x128xf32>
    %62 = math.exp %61 : vector<8x128xf32>
    %cst_22 = arith.constant 1.000000e+00 : f32
    %63 = vector.broadcast %cst_22 : f32 to vector<8x128xf32>
    %64 = arith.addf %63, %62 : vector<8x128xf32>
    %65 = arith.divf %63, %64 : vector<8x128xf32>
    %66 = arith.mulf %57, %7 : vector<8x128xf32>
    %67 = arith.mulf %51, %59 : vector<8x128xf32>
    %68 = arith.addf %66, %67 : vector<8x128xf32>
    %69 = math.tanh %68 : vector<8x128xf32>
    %70 = arith.mulf %65, %69 : vector<8x128xf32>
    %c1_i32 = arith.constant 1 : i32
    %c8_i32_23 = arith.constant 8 : i32
    %71 = arith.muli %c1_i32, %c8_i32_23 : i32
    %72 = tpu.assume_multiple %71, 8 : i32
    %73 = arith.index_cast %72 : i32 to index
    %c0_24 = arith.constant 0 : index
    %74 = vector.load %arg9[%73, %c0_24] : memref<64x512xf32, #tpu.memory_space<vmem>>, vector<8x512xf32>
    %c0_25 = arith.constant 0 : index
    %c0_26 = arith.constant 0 : index
    %75 = vector.load %arg2[%c0_25, %c0_26] : memref<128x512xf32, #tpu.memory_space<vmem>>, vector<128x512xf32>
    %cst_27 = arith.constant dense<0.000000e+00> : vector<8x512xf32>
    %76 = tpu.matmul %39, %75, %cst_27 {dimension_numbers = #tpu.dot_dimension_numbers<[1], [0], [0], [1], [0, 0, 1, 1], [], []>} : vector<8x128xf32>, vector<128x512xf32>, vector<8x512xf32> -> vector<8x512xf32>
    %77 = arith.addf %74, %76 : vector<8x512xf32>
    %78 = vector.extract_strided_slice %77 {offsets = [0, 0], sizes = [8, 128], strides = [1, 1]} : vector<8x512xf32> to vector<8x128xf32>
    %79 = arith.negf %78 : vector<8x128xf32>
    %80 = math.exp %79 : vector<8x128xf32>
    %cst_28 = arith.constant 1.000000e+00 : f32
    %81 = vector.broadcast %cst_28 : f32 to vector<8x128xf32>
    %82 = arith.addf %81, %80 : vector<8x128xf32>
    %83 = arith.divf %81, %82 : vector<8x128xf32>
    %84 = vector.extract_strided_slice %77 {offsets = [0, 128], sizes = [8, 128], strides = [1, 1]} : vector<8x512xf32> to vector<8x128xf32>
    %85 = arith.negf %84 : vector<8x128xf32>
    %86 = math.exp %85 : vector<8x128xf32>
    %cst_29 = arith.constant 1.000000e+00 : f32
    %87 = vector.broadcast %cst_29 : f32 to vector<8x128xf32>
    %88 = arith.addf %87, %86 : vector<8x128xf32>
    %89 = arith.divf %87, %88 : vector<8x128xf32>
    %90 = vector.extract_strided_slice %77 {offsets = [0, 256], sizes = [8, 128], strides = [1, 1]} : vector<8x512xf32> to vector<8x128xf32>
    %91 = math.tanh %90 : vector<8x128xf32>
    %92 = vector.extract_strided_slice %77 {offsets = [0, 384], sizes = [8, 128], strides = [1, 1]} : vector<8x512xf32> to vector<8x128xf32>
    %93 = arith.negf %92 : vector<8x128xf32>
    %94 = math.exp %93 : vector<8x128xf32>
    %cst_30 = arith.constant 1.000000e+00 : f32
    %95 = vector.broadcast %cst_30 : f32 to vector<8x128xf32>
    %96 = arith.addf %95, %94 : vector<8x128xf32>
    %97 = arith.divf %95, %96 : vector<8x128xf32>
    %98 = arith.mulf %89, %37 : vector<8x128xf32>
    %99 = arith.mulf %83, %91 : vector<8x128xf32>
    %100 = arith.addf %98, %99 : vector<8x128xf32>
    %101 = math.tanh %100 : vector<8x128xf32>
    %102 = arith.mulf %97, %101 : vector<8x128xf32>
    %103 = tpu.concatenate %102, %70 in 1 : vector<8x128xf32>, vector<8x128xf32> -> vector<8x256xf32>
    %c0_31 = arith.constant 0 : index
    %c0_32 = arith.constant 0 : index
    %104 = vector.load %arg4[%c0_31, %c0_32] : memref<256x512xf32, #tpu.memory_space<vmem>>, vector<256x512xf32>
    %cst_33 = arith.constant dense<0.000000e+00> : vector<8x512xf32>
    %105 = tpu.matmul %103, %104, %cst_33 {dimension_numbers = #tpu.dot_dimension_numbers<[1], [0], [0], [1], [0, 0, 1, 1], [], []>} : vector<8x256xf32>, vector<256x512xf32>, vector<8x512xf32> -> vector<8x512xf32>
    %c0_34 = arith.constant 0 : index
    %c0_35 = arith.constant 0 : index
    %106 = vector.load %arg5[%c0_34, %c0_35] : memref<1x512xf32, #tpu.memory_space<vmem>>, vector<1x512xf32>
    %107 = vector.broadcast %106 : vector<1x512xf32> to vector<8x512xf32>
    %108 = arith.addf %105, %107 : vector<8x512xf32>
    %109 = vector.extract_strided_slice %108 {offsets = [0, 0], sizes = [8, 128], strides = [1, 1]} : vector<8x512xf32> to vector<8x128xf32>
    %110 = arith.negf %109 : vector<8x128xf32>
    %111 = math.exp %110 : vector<8x128xf32>
    %cst_36 = arith.constant 1.000000e+00 : f32
    %112 = vector.broadcast %cst_36 : f32 to vector<8x128xf32>
    %113 = arith.addf %112, %111 : vector<8x128xf32>
    %114 = arith.divf %112, %113 : vector<8x128xf32>
    %115 = vector.extract_strided_slice %108 {offsets = [0, 128], sizes = [8, 128], strides = [1, 1]} : vector<8x512xf32> to vector<8x128xf32>
    %116 = arith.negf %115 : vector<8x128xf32>
    %117 = math.exp %116 : vector<8x128xf32>
    %cst_37 = arith.constant 1.000000e+00 : f32
    %118 = vector.broadcast %cst_37 : f32 to vector<8x128xf32>
    %119 = arith.addf %118, %117 : vector<8x128xf32>
    %120 = arith.divf %118, %119 : vector<8x128xf32>
    %121 = vector.extract_strided_slice %108 {offsets = [0, 256], sizes = [8, 128], strides = [1, 1]} : vector<8x512xf32> to vector<8x128xf32>
    %122 = math.tanh %121 : vector<8x128xf32>
    %123 = vector.extract_strided_slice %108 {offsets = [0, 384], sizes = [8, 128], strides = [1, 1]} : vector<8x512xf32> to vector<8x128xf32>
    %124 = arith.negf %123 : vector<8x128xf32>
    %125 = math.exp %124 : vector<8x128xf32>
    %cst_38 = arith.constant 1.000000e+00 : f32
    %126 = vector.broadcast %cst_38 : f32 to vector<8x128xf32>
    %127 = arith.addf %126, %125 : vector<8x128xf32>
    %128 = arith.divf %126, %127 : vector<8x128xf32>
    %129 = arith.mulf %120, %68 : vector<8x128xf32>
    %130 = arith.mulf %114, %122 : vector<8x128xf32>
    %131 = arith.addf %129, %130 : vector<8x128xf32>
    %132 = math.tanh %131 : vector<8x128xf32>
    %133 = arith.mulf %128, %132 : vector<8x128xf32>
    %c2_i32 = arith.constant 2 : i32
    %c8_i32_39 = arith.constant 8 : i32
    %134 = arith.muli %c2_i32, %c8_i32_39 : i32
    %135 = tpu.assume_multiple %134, 8 : i32
    %136 = arith.index_cast %135 : i32 to index
    %c0_40 = arith.constant 0 : index
    %137 = vector.load %arg9[%136, %c0_40] : memref<64x512xf32, #tpu.memory_space<vmem>>, vector<8x512xf32>
    %c0_41 = arith.constant 0 : index
    %c0_42 = arith.constant 0 : index
    %138 = vector.load %arg2[%c0_41, %c0_42] : memref<128x512xf32, #tpu.memory_space<vmem>>, vector<128x512xf32>
    %cst_43 = arith.constant dense<0.000000e+00> : vector<8x512xf32>
    %139 = tpu.matmul %102, %138, %cst_43 {dimension_numbers = #tpu.dot_dimension_numbers<[1], [0], [0], [1], [0, 0, 1, 1], [], []>} : vector<8x128xf32>, vector<128x512xf32>, vector<8x512xf32> -> vector<8x512xf32>
    %140 = arith.addf %137, %139 : vector<8x512xf32>
    %141 = vector.extract_strided_slice %140 {offsets = [0, 0], sizes = [8, 128], strides = [1, 1]} : vector<8x512xf32> to vector<8x128xf32>
    %142 = arith.negf %141 : vector<8x128xf32>
    %143 = math.exp %142 : vector<8x128xf32>
    %cst_44 = arith.constant 1.000000e+00 : f32
    %144 = vector.broadcast %cst_44 : f32 to vector<8x128xf32>
    %145 = arith.addf %144, %143 : vector<8x128xf32>
    %146 = arith.divf %144, %145 : vector<8x128xf32>
    %147 = vector.extract_strided_slice %140 {offsets = [0, 128], sizes = [8, 128], strides = [1, 1]} : vector<8x512xf32> to vector<8x128xf32>
    %148 = arith.negf %147 : vector<8x128xf32>
    %149 = math.exp %148 : vector<8x128xf32>
    %cst_45 = arith.constant 1.000000e+00 : f32
    %150 = vector.broadcast %cst_45 : f32 to vector<8x128xf32>
    %151 = arith.addf %150, %149 : vector<8x128xf32>
    %152 = arith.divf %150, %151 : vector<8x128xf32>
    %153 = vector.extract_strided_slice %140 {offsets = [0, 256], sizes = [8, 128], strides = [1, 1]} : vector<8x512xf32> to vector<8x128xf32>
    %154 = math.tanh %153 : vector<8x128xf32>
    %155 = vector.extract_strided_slice %140 {offsets = [0, 384], sizes = [8, 128], strides = [1, 1]} : vector<8x512xf32> to vector<8x128xf32>
    %156 = arith.negf %155 : vector<8x128xf32>
    %157 = math.exp %156 : vector<8x128xf32>
    %cst_46 = arith.constant 1.000000e+00 : f32
    %158 = vector.broadcast %cst_46 : f32 to vector<8x128xf32>
    %159 = arith.addf %158, %157 : vector<8x128xf32>
    %160 = arith.divf %158, %159 : vector<8x128xf32>
    %161 = arith.mulf %152, %100 : vector<8x128xf32>
    %162 = arith.mulf %146, %154 : vector<8x128xf32>
    %163 = arith.addf %161, %162 : vector<8x128xf32>
    %164 = math.tanh %163 : vector<8x128xf32>
    %165 = arith.mulf %160, %164 : vector<8x128xf32>
    %166 = tpu.concatenate %165, %133 in 1 : vector<8x128xf32>, vector<8x128xf32> -> vector<8x256xf32>
    %c0_47 = arith.constant 0 : index
    %c0_48 = arith.constant 0 : index
    %167 = vector.load %arg4[%c0_47, %c0_48] : memref<256x512xf32, #tpu.memory_space<vmem>>, vector<256x512xf32>
    %cst_49 = arith.constant dense<0.000000e+00> : vector<8x512xf32>
    %168 = tpu.matmul %166, %167, %cst_49 {dimension_numbers = #tpu.dot_dimension_numbers<[1], [0], [0], [1], [0, 0, 1, 1], [], []>} : vector<8x256xf32>, vector<256x512xf32>, vector<8x512xf32> -> vector<8x512xf32>
    %c0_50 = arith.constant 0 : index
    %c0_51 = arith.constant 0 : index
    %169 = vector.load %arg5[%c0_50, %c0_51] : memref<1x512xf32, #tpu.memory_space<vmem>>, vector<1x512xf32>
    %170 = vector.broadcast %169 : vector<1x512xf32> to vector<8x512xf32>
    %171 = arith.addf %168, %170 : vector<8x512xf32>
    %172 = vector.extract_strided_slice %171 {offsets = [0, 0], sizes = [8, 128], strides = [1, 1]} : vector<8x512xf32> to vector<8x128xf32>
    %173 = arith.negf %172 : vector<8x128xf32>
    %174 = math.exp %173 : vector<8x128xf32>
    %cst_52 = arith.constant 1.000000e+00 : f32
    %175 = vector.broadcast %cst_52 : f32 to vector<8x128xf32>
    %176 = arith.addf %175, %174 : vector<8x128xf32>
    %177 = arith.divf %175, %176 : vector<8x128xf32>
    %178 = vector.extract_strided_slice %171 {offsets = [0, 128], sizes = [8, 128], strides = [1, 1]} : vector<8x512xf32> to vector<8x128xf32>
    %179 = arith.negf %178 : vector<8x128xf32>
    %180 = math.exp %179 : vector<8x128xf32>
    %cst_53 = arith.constant 1.000000e+00 : f32
    %181 = vector.broadcast %cst_53 : f32 to vector<8x128xf32>
    %182 = arith.addf %181, %180 : vector<8x128xf32>
    %183 = arith.divf %181, %182 : vector<8x128xf32>
    %184 = vector.extract_strided_slice %171 {offsets = [0, 256], sizes = [8, 128], strides = [1, 1]} : vector<8x512xf32> to vector<8x128xf32>
    %185 = math.tanh %184 : vector<8x128xf32>
    %186 = vector.extract_strided_slice %171 {offsets = [0, 384], sizes = [8, 128], strides = [1, 1]} : vector<8x512xf32> to vector<8x128xf32>
    %187 = arith.negf %186 : vector<8x128xf32>
    %188 = math.exp %187 : vector<8x128xf32>
    %cst_54 = arith.constant 1.000000e+00 : f32
    %189 = vector.broadcast %cst_54 : f32 to vector<8x128xf32>
    %190 = arith.addf %189, %188 : vector<8x128xf32>
    %191 = arith.divf %189, %190 : vector<8x128xf32>
    %192 = arith.mulf %183, %131 : vector<8x128xf32>
    %193 = arith.mulf %177, %185 : vector<8x128xf32>
    %194 = arith.addf %192, %193 : vector<8x128xf32>
    %195 = math.tanh %194 : vector<8x128xf32>
    %196 = arith.mulf %191, %195 : vector<8x128xf32>
    %c3_i32 = arith.constant 3 : i32
    %c8_i32_55 = arith.constant 8 : i32
    %197 = arith.muli %c3_i32, %c8_i32_55 : i32
    %198 = tpu.assume_multiple %197, 8 : i32
    %199 = arith.index_cast %198 : i32 to index
    %c0_56 = arith.constant 0 : index
    %200 = vector.load %arg9[%199, %c0_56] : memref<64x512xf32, #tpu.memory_space<vmem>>, vector<8x512xf32>
    %c0_57 = arith.constant 0 : index
    %c0_58 = arith.constant 0 : index
    %201 = vector.load %arg2[%c0_57, %c0_58] : memref<128x512xf32, #tpu.memory_space<vmem>>, vector<128x512xf32>
    %cst_59 = arith.constant dense<0.000000e+00> : vector<8x512xf32>
    %202 = tpu.matmul %165, %201, %cst_59 {dimension_numbers = #tpu.dot_dimension_numbers<[1], [0], [0], [1], [0, 0, 1, 1], [], []>} : vector<8x128xf32>, vector<128x512xf32>, vector<8x512xf32> -> vector<8x512xf32>
    %203 = arith.addf %200, %202 : vector<8x512xf32>
    %204 = vector.extract_strided_slice %203 {offsets = [0, 0], sizes = [8, 128], strides = [1, 1]} : vector<8x512xf32> to vector<8x128xf32>
    %205 = arith.negf %204 : vector<8x128xf32>
    %206 = math.exp %205 : vector<8x128xf32>
    %cst_60 = arith.constant 1.000000e+00 : f32
    %207 = vector.broadcast %cst_60 : f32 to vector<8x128xf32>
    %208 = arith.addf %207, %206 : vector<8x128xf32>
    %209 = arith.divf %207, %208 : vector<8x128xf32>
    %210 = vector.extract_strided_slice %203 {offsets = [0, 128], sizes = [8, 128], strides = [1, 1]} : vector<8x512xf32> to vector<8x128xf32>
    %211 = arith.negf %210 : vector<8x128xf32>
    %212 = math.exp %211 : vector<8x128xf32>
    %cst_61 = arith.constant 1.000000e+00 : f32
    %213 = vector.broadcast %cst_61 : f32 to vector<8x128xf32>
    %214 = arith.addf %213, %212 : vector<8x128xf32>
    %215 = arith.divf %213, %214 : vector<8x128xf32>
    %216 = vector.extract_strided_slice %203 {offsets = [0, 256], sizes = [8, 128], strides = [1, 1]} : vector<8x512xf32> to vector<8x128xf32>
    %217 = math.tanh %216 : vector<8x128xf32>
    %218 = vector.extract_strided_slice %203 {offsets = [0, 384], sizes = [8, 128], strides = [1, 1]} : vector<8x512xf32> to vector<8x128xf32>
    %219 = arith.negf %218 : vector<8x128xf32>
    %220 = math.exp %219 : vector<8x128xf32>
    %cst_62 = arith.constant 1.000000e+00 : f32
    %221 = vector.broadcast %cst_62 : f32 to vector<8x128xf32>
    %222 = arith.addf %221, %220 : vector<8x128xf32>
    %223 = arith.divf %221, %222 : vector<8x128xf32>
    %224 = arith.mulf %215, %163 : vector<8x128xf32>
    %225 = arith.mulf %209, %217 : vector<8x128xf32>
    %226 = arith.addf %224, %225 : vector<8x128xf32>
    %227 = math.tanh %226 : vector<8x128xf32>
    %228 = arith.mulf %223, %227 : vector<8x128xf32>
    %229 = tpu.concatenate %228, %196 in 1 : vector<8x128xf32>, vector<8x128xf32> -> vector<8x256xf32>
    %c0_63 = arith.constant 0 : index
    %c0_64 = arith.constant 0 : index
    %230 = vector.load %arg4[%c0_63, %c0_64] : memref<256x512xf32, #tpu.memory_space<vmem>>, vector<256x512xf32>
    %cst_65 = arith.constant dense<0.000000e+00> : vector<8x512xf32>
    %231 = tpu.matmul %229, %230, %cst_65 {dimension_numbers = #tpu.dot_dimension_numbers<[1], [0], [0], [1], [0, 0, 1, 1], [], []>} : vector<8x256xf32>, vector<256x512xf32>, vector<8x512xf32> -> vector<8x512xf32>
    %c0_66 = arith.constant 0 : index
    %c0_67 = arith.constant 0 : index
    %232 = vector.load %arg5[%c0_66, %c0_67] : memref<1x512xf32, #tpu.memory_space<vmem>>, vector<1x512xf32>
    %233 = vector.broadcast %232 : vector<1x512xf32> to vector<8x512xf32>
    %234 = arith.addf %231, %233 : vector<8x512xf32>
    %235 = vector.extract_strided_slice %234 {offsets = [0, 0], sizes = [8, 128], strides = [1, 1]} : vector<8x512xf32> to vector<8x128xf32>
    %236 = arith.negf %235 : vector<8x128xf32>
    %237 = math.exp %236 : vector<8x128xf32>
    %cst_68 = arith.constant 1.000000e+00 : f32
    %238 = vector.broadcast %cst_68 : f32 to vector<8x128xf32>
    %239 = arith.addf %238, %237 : vector<8x128xf32>
    %240 = arith.divf %238, %239 : vector<8x128xf32>
    %241 = vector.extract_strided_slice %234 {offsets = [0, 128], sizes = [8, 128], strides = [1, 1]} : vector<8x512xf32> to vector<8x128xf32>
    %242 = arith.negf %241 : vector<8x128xf32>
    %243 = math.exp %242 : vector<8x128xf32>
    %cst_69 = arith.constant 1.000000e+00 : f32
    %244 = vector.broadcast %cst_69 : f32 to vector<8x128xf32>
    %245 = arith.addf %244, %243 : vector<8x128xf32>
    %246 = arith.divf %244, %245 : vector<8x128xf32>
    %247 = vector.extract_strided_slice %234 {offsets = [0, 256], sizes = [8, 128], strides = [1, 1]} : vector<8x512xf32> to vector<8x128xf32>
    %248 = math.tanh %247 : vector<8x128xf32>
    %249 = vector.extract_strided_slice %234 {offsets = [0, 384], sizes = [8, 128], strides = [1, 1]} : vector<8x512xf32> to vector<8x128xf32>
    %250 = arith.negf %249 : vector<8x128xf32>
    %251 = math.exp %250 : vector<8x128xf32>
    %cst_70 = arith.constant 1.000000e+00 : f32
    %252 = vector.broadcast %cst_70 : f32 to vector<8x128xf32>
    %253 = arith.addf %252, %251 : vector<8x128xf32>
    %254 = arith.divf %252, %253 : vector<8x128xf32>
    %255 = arith.mulf %246, %194 : vector<8x128xf32>
    %256 = arith.mulf %240, %248 : vector<8x128xf32>
    %257 = arith.addf %255, %256 : vector<8x128xf32>
    %258 = math.tanh %257 : vector<8x128xf32>
    %259 = arith.mulf %254, %258 : vector<8x128xf32>
    %c4_i32 = arith.constant 4 : i32
    %c8_i32_71 = arith.constant 8 : i32
    %260 = arith.muli %c4_i32, %c8_i32_71 : i32
    %261 = tpu.assume_multiple %260, 8 : i32
    %262 = arith.index_cast %261 : i32 to index
    %c0_72 = arith.constant 0 : index
    %263 = vector.load %arg9[%262, %c0_72] : memref<64x512xf32, #tpu.memory_space<vmem>>, vector<8x512xf32>
    %c0_73 = arith.constant 0 : index
    %c0_74 = arith.constant 0 : index
    %264 = vector.load %arg2[%c0_73, %c0_74] : memref<128x512xf32, #tpu.memory_space<vmem>>, vector<128x512xf32>
    %cst_75 = arith.constant dense<0.000000e+00> : vector<8x512xf32>
    %265 = tpu.matmul %228, %264, %cst_75 {dimension_numbers = #tpu.dot_dimension_numbers<[1], [0], [0], [1], [0, 0, 1, 1], [], []>} : vector<8x128xf32>, vector<128x512xf32>, vector<8x512xf32> -> vector<8x512xf32>
    %266 = arith.addf %263, %265 : vector<8x512xf32>
    %267 = vector.extract_strided_slice %266 {offsets = [0, 0], sizes = [8, 128], strides = [1, 1]} : vector<8x512xf32> to vector<8x128xf32>
    %268 = arith.negf %267 : vector<8x128xf32>
    %269 = math.exp %268 : vector<8x128xf32>
    %cst_76 = arith.constant 1.000000e+00 : f32
    %270 = vector.broadcast %cst_76 : f32 to vector<8x128xf32>
    %271 = arith.addf %270, %269 : vector<8x128xf32>
    %272 = arith.divf %270, %271 : vector<8x128xf32>
    %273 = vector.extract_strided_slice %266 {offsets = [0, 128], sizes = [8, 128], strides = [1, 1]} : vector<8x512xf32> to vector<8x128xf32>
    %274 = arith.negf %273 : vector<8x128xf32>
    %275 = math.exp %274 : vector<8x128xf32>
    %cst_77 = arith.constant 1.000000e+00 : f32
    %276 = vector.broadcast %cst_77 : f32 to vector<8x128xf32>
    %277 = arith.addf %276, %275 : vector<8x128xf32>
    %278 = arith.divf %276, %277 : vector<8x128xf32>
    %279 = vector.extract_strided_slice %266 {offsets = [0, 256], sizes = [8, 128], strides = [1, 1]} : vector<8x512xf32> to vector<8x128xf32>
    %280 = math.tanh %279 : vector<8x128xf32>
    %281 = vector.extract_strided_slice %266 {offsets = [0, 384], sizes = [8, 128], strides = [1, 1]} : vector<8x512xf32> to vector<8x128xf32>
    %282 = arith.negf %281 : vector<8x128xf32>
    %283 = math.exp %282 : vector<8x128xf32>
    %cst_78 = arith.constant 1.000000e+00 : f32
    %284 = vector.broadcast %cst_78 : f32 to vector<8x128xf32>
    %285 = arith.addf %284, %283 : vector<8x128xf32>
    %286 = arith.divf %284, %285 : vector<8x128xf32>
    %287 = arith.mulf %278, %226 : vector<8x128xf32>
    %288 = arith.mulf %272, %280 : vector<8x128xf32>
    %289 = arith.addf %287, %288 : vector<8x128xf32>
    %290 = math.tanh %289 : vector<8x128xf32>
    %291 = arith.mulf %286, %290 : vector<8x128xf32>
    %292 = tpu.concatenate %291, %259 in 1 : vector<8x128xf32>, vector<8x128xf32> -> vector<8x256xf32>
    %c0_79 = arith.constant 0 : index
    %c0_80 = arith.constant 0 : index
    %293 = vector.load %arg4[%c0_79, %c0_80] : memref<256x512xf32, #tpu.memory_space<vmem>>, vector<256x512xf32>
    %cst_81 = arith.constant dense<0.000000e+00> : vector<8x512xf32>
    %294 = tpu.matmul %292, %293, %cst_81 {dimension_numbers = #tpu.dot_dimension_numbers<[1], [0], [0], [1], [0, 0, 1, 1], [], []>} : vector<8x256xf32>, vector<256x512xf32>, vector<8x512xf32> -> vector<8x512xf32>
    %c0_82 = arith.constant 0 : index
    %c0_83 = arith.constant 0 : index
    %295 = vector.load %arg5[%c0_82, %c0_83] : memref<1x512xf32, #tpu.memory_space<vmem>>, vector<1x512xf32>
    %296 = vector.broadcast %295 : vector<1x512xf32> to vector<8x512xf32>
    %297 = arith.addf %294, %296 : vector<8x512xf32>
    %298 = vector.extract_strided_slice %297 {offsets = [0, 0], sizes = [8, 128], strides = [1, 1]} : vector<8x512xf32> to vector<8x128xf32>
    %299 = arith.negf %298 : vector<8x128xf32>
    %300 = math.exp %299 : vector<8x128xf32>
    %cst_84 = arith.constant 1.000000e+00 : f32
    %301 = vector.broadcast %cst_84 : f32 to vector<8x128xf32>
    %302 = arith.addf %301, %300 : vector<8x128xf32>
    %303 = arith.divf %301, %302 : vector<8x128xf32>
    %304 = vector.extract_strided_slice %297 {offsets = [0, 128], sizes = [8, 128], strides = [1, 1]} : vector<8x512xf32> to vector<8x128xf32>
    %305 = arith.negf %304 : vector<8x128xf32>
    %306 = math.exp %305 : vector<8x128xf32>
    %cst_85 = arith.constant 1.000000e+00 : f32
    %307 = vector.broadcast %cst_85 : f32 to vector<8x128xf32>
    %308 = arith.addf %307, %306 : vector<8x128xf32>
    %309 = arith.divf %307, %308 : vector<8x128xf32>
    %310 = vector.extract_strided_slice %297 {offsets = [0, 256], sizes = [8, 128], strides = [1, 1]} : vector<8x512xf32> to vector<8x128xf32>
    %311 = math.tanh %310 : vector<8x128xf32>
    %312 = vector.extract_strided_slice %297 {offsets = [0, 384], sizes = [8, 128], strides = [1, 1]} : vector<8x512xf32> to vector<8x128xf32>
    %313 = arith.negf %312 : vector<8x128xf32>
    %314 = math.exp %313 : vector<8x128xf32>
    %cst_86 = arith.constant 1.000000e+00 : f32
    %315 = vector.broadcast %cst_86 : f32 to vector<8x128xf32>
    %316 = arith.addf %315, %314 : vector<8x128xf32>
    %317 = arith.divf %315, %316 : vector<8x128xf32>
    %318 = arith.mulf %309, %257 : vector<8x128xf32>
    %319 = arith.mulf %303, %311 : vector<8x128xf32>
    %320 = arith.addf %318, %319 : vector<8x128xf32>
    %321 = math.tanh %320 : vector<8x128xf32>
    %322 = arith.mulf %317, %321 : vector<8x128xf32>
    %c5_i32 = arith.constant 5 : i32
    %c8_i32_87 = arith.constant 8 : i32
    %323 = arith.muli %c5_i32, %c8_i32_87 : i32
    %324 = tpu.assume_multiple %323, 8 : i32
    %325 = arith.index_cast %324 : i32 to index
    %c0_88 = arith.constant 0 : index
    %326 = vector.load %arg9[%325, %c0_88] : memref<64x512xf32, #tpu.memory_space<vmem>>, vector<8x512xf32>
    %c0_89 = arith.constant 0 : index
    %c0_90 = arith.constant 0 : index
    %327 = vector.load %arg2[%c0_89, %c0_90] : memref<128x512xf32, #tpu.memory_space<vmem>>, vector<128x512xf32>
    %cst_91 = arith.constant dense<0.000000e+00> : vector<8x512xf32>
    %328 = tpu.matmul %291, %327, %cst_91 {dimension_numbers = #tpu.dot_dimension_numbers<[1], [0], [0], [1], [0, 0, 1, 1], [], []>} : vector<8x128xf32>, vector<128x512xf32>, vector<8x512xf32> -> vector<8x512xf32>
    %329 = arith.addf %326, %328 : vector<8x512xf32>
    %330 = vector.extract_strided_slice %329 {offsets = [0, 0], sizes = [8, 128], strides = [1, 1]} : vector<8x512xf32> to vector<8x128xf32>
    %331 = arith.negf %330 : vector<8x128xf32>
    %332 = math.exp %331 : vector<8x128xf32>
    %cst_92 = arith.constant 1.000000e+00 : f32
    %333 = vector.broadcast %cst_92 : f32 to vector<8x128xf32>
    %334 = arith.addf %333, %332 : vector<8x128xf32>
    %335 = arith.divf %333, %334 : vector<8x128xf32>
    %336 = vector.extract_strided_slice %329 {offsets = [0, 128], sizes = [8, 128], strides = [1, 1]} : vector<8x512xf32> to vector<8x128xf32>
    %337 = arith.negf %336 : vector<8x128xf32>
    %338 = math.exp %337 : vector<8x128xf32>
    %cst_93 = arith.constant 1.000000e+00 : f32
    %339 = vector.broadcast %cst_93 : f32 to vector<8x128xf32>
    %340 = arith.addf %339, %338 : vector<8x128xf32>
    %341 = arith.divf %339, %340 : vector<8x128xf32>
    %342 = vector.extract_strided_slice %329 {offsets = [0, 256], sizes = [8, 128], strides = [1, 1]} : vector<8x512xf32> to vector<8x128xf32>
    %343 = math.tanh %342 : vector<8x128xf32>
    %344 = vector.extract_strided_slice %329 {offsets = [0, 384], sizes = [8, 128], strides = [1, 1]} : vector<8x512xf32> to vector<8x128xf32>
    %345 = arith.negf %344 : vector<8x128xf32>
    %346 = math.exp %345 : vector<8x128xf32>
    %cst_94 = arith.constant 1.000000e+00 : f32
    %347 = vector.broadcast %cst_94 : f32 to vector<8x128xf32>
    %348 = arith.addf %347, %346 : vector<8x128xf32>
    %349 = arith.divf %347, %348 : vector<8x128xf32>
    %350 = arith.mulf %341, %289 : vector<8x128xf32>
    %351 = arith.mulf %335, %343 : vector<8x128xf32>
    %352 = arith.addf %350, %351 : vector<8x128xf32>
    %353 = math.tanh %352 : vector<8x128xf32>
    %354 = arith.mulf %349, %353 : vector<8x128xf32>
    %355 = tpu.concatenate %354, %322 in 1 : vector<8x128xf32>, vector<8x128xf32> -> vector<8x256xf32>
    %c0_95 = arith.constant 0 : index
    %c0_96 = arith.constant 0 : index
    %356 = vector.load %arg4[%c0_95, %c0_96] : memref<256x512xf32, #tpu.memory_space<vmem>>, vector<256x512xf32>
    %cst_97 = arith.constant dense<0.000000e+00> : vector<8x512xf32>
    %357 = tpu.matmul %355, %356, %cst_97 {dimension_numbers = #tpu.dot_dimension_numbers<[1], [0], [0], [1], [0, 0, 1, 1], [], []>} : vector<8x256xf32>, vector<256x512xf32>, vector<8x512xf32> -> vector<8x512xf32>
    %c0_98 = arith.constant 0 : index
    %c0_99 = arith.constant 0 : index
    %358 = vector.load %arg5[%c0_98, %c0_99] : memref<1x512xf32, #tpu.memory_space<vmem>>, vector<1x512xf32>
    %359 = vector.broadcast %358 : vector<1x512xf32> to vector<8x512xf32>
    %360 = arith.addf %357, %359 : vector<8x512xf32>
    %361 = vector.extract_strided_slice %360 {offsets = [0, 0], sizes = [8, 128], strides = [1, 1]} : vector<8x512xf32> to vector<8x128xf32>
    %362 = arith.negf %361 : vector<8x128xf32>
    %363 = math.exp %362 : vector<8x128xf32>
    %cst_100 = arith.constant 1.000000e+00 : f32
    %364 = vector.broadcast %cst_100 : f32 to vector<8x128xf32>
    %365 = arith.addf %364, %363 : vector<8x128xf32>
    %366 = arith.divf %364, %365 : vector<8x128xf32>
    %367 = vector.extract_strided_slice %360 {offsets = [0, 128], sizes = [8, 128], strides = [1, 1]} : vector<8x512xf32> to vector<8x128xf32>
    %368 = arith.negf %367 : vector<8x128xf32>
    %369 = math.exp %368 : vector<8x128xf32>
    %cst_101 = arith.constant 1.000000e+00 : f32
    %370 = vector.broadcast %cst_101 : f32 to vector<8x128xf32>
    %371 = arith.addf %370, %369 : vector<8x128xf32>
    %372 = arith.divf %370, %371 : vector<8x128xf32>
    %373 = vector.extract_strided_slice %360 {offsets = [0, 256], sizes = [8, 128], strides = [1, 1]} : vector<8x512xf32> to vector<8x128xf32>
    %374 = math.tanh %373 : vector<8x128xf32>
    %375 = vector.extract_strided_slice %360 {offsets = [0, 384], sizes = [8, 128], strides = [1, 1]} : vector<8x512xf32> to vector<8x128xf32>
    %376 = arith.negf %375 : vector<8x128xf32>
    %377 = math.exp %376 : vector<8x128xf32>
    %cst_102 = arith.constant 1.000000e+00 : f32
    %378 = vector.broadcast %cst_102 : f32 to vector<8x128xf32>
    %379 = arith.addf %378, %377 : vector<8x128xf32>
    %380 = arith.divf %378, %379 : vector<8x128xf32>
    %381 = arith.mulf %372, %320 : vector<8x128xf32>
    %382 = arith.mulf %366, %374 : vector<8x128xf32>
    %383 = arith.addf %381, %382 : vector<8x128xf32>
    %384 = math.tanh %383 : vector<8x128xf32>
    %385 = arith.mulf %380, %384 : vector<8x128xf32>
    %c6_i32 = arith.constant 6 : i32
    %c8_i32_103 = arith.constant 8 : i32
    %386 = arith.muli %c6_i32, %c8_i32_103 : i32
    %387 = tpu.assume_multiple %386, 8 : i32
    %388 = arith.index_cast %387 : i32 to index
    %c0_104 = arith.constant 0 : index
    %389 = vector.load %arg9[%388, %c0_104] : memref<64x512xf32, #tpu.memory_space<vmem>>, vector<8x512xf32>
    %c0_105 = arith.constant 0 : index
    %c0_106 = arith.constant 0 : index
    %390 = vector.load %arg2[%c0_105, %c0_106] : memref<128x512xf32, #tpu.memory_space<vmem>>, vector<128x512xf32>
    %cst_107 = arith.constant dense<0.000000e+00> : vector<8x512xf32>
    %391 = tpu.matmul %354, %390, %cst_107 {dimension_numbers = #tpu.dot_dimension_numbers<[1], [0], [0], [1], [0, 0, 1, 1], [], []>} : vector<8x128xf32>, vector<128x512xf32>, vector<8x512xf32> -> vector<8x512xf32>
    %392 = arith.addf %389, %391 : vector<8x512xf32>
    %393 = vector.extract_strided_slice %392 {offsets = [0, 0], sizes = [8, 128], strides = [1, 1]} : vector<8x512xf32> to vector<8x128xf32>
    %394 = arith.negf %393 : vector<8x128xf32>
    %395 = math.exp %394 : vector<8x128xf32>
    %cst_108 = arith.constant 1.000000e+00 : f32
    %396 = vector.broadcast %cst_108 : f32 to vector<8x128xf32>
    %397 = arith.addf %396, %395 : vector<8x128xf32>
    %398 = arith.divf %396, %397 : vector<8x128xf32>
    %399 = vector.extract_strided_slice %392 {offsets = [0, 128], sizes = [8, 128], strides = [1, 1]} : vector<8x512xf32> to vector<8x128xf32>
    %400 = arith.negf %399 : vector<8x128xf32>
    %401 = math.exp %400 : vector<8x128xf32>
    %cst_109 = arith.constant 1.000000e+00 : f32
    %402 = vector.broadcast %cst_109 : f32 to vector<8x128xf32>
    %403 = arith.addf %402, %401 : vector<8x128xf32>
    %404 = arith.divf %402, %403 : vector<8x128xf32>
    %405 = vector.extract_strided_slice %392 {offsets = [0, 256], sizes = [8, 128], strides = [1, 1]} : vector<8x512xf32> to vector<8x128xf32>
    %406 = math.tanh %405 : vector<8x128xf32>
    %407 = vector.extract_strided_slice %392 {offsets = [0, 384], sizes = [8, 128], strides = [1, 1]} : vector<8x512xf32> to vector<8x128xf32>
    %408 = arith.negf %407 : vector<8x128xf32>
    %409 = math.exp %408 : vector<8x128xf32>
    %cst_110 = arith.constant 1.000000e+00 : f32
    %410 = vector.broadcast %cst_110 : f32 to vector<8x128xf32>
    %411 = arith.addf %410, %409 : vector<8x128xf32>
    %412 = arith.divf %410, %411 : vector<8x128xf32>
    %413 = arith.mulf %404, %352 : vector<8x128xf32>
    %414 = arith.mulf %398, %406 : vector<8x128xf32>
    %415 = arith.addf %413, %414 : vector<8x128xf32>
    %416 = math.tanh %415 : vector<8x128xf32>
    %417 = arith.mulf %412, %416 : vector<8x128xf32>
    %418 = tpu.concatenate %417, %385 in 1 : vector<8x128xf32>, vector<8x128xf32> -> vector<8x256xf32>
    %c0_111 = arith.constant 0 : index
    %c0_112 = arith.constant 0 : index
    %419 = vector.load %arg4[%c0_111, %c0_112] : memref<256x512xf32, #tpu.memory_space<vmem>>, vector<256x512xf32>
    %cst_113 = arith.constant dense<0.000000e+00> : vector<8x512xf32>
    %420 = tpu.matmul %418, %419, %cst_113 {dimension_numbers = #tpu.dot_dimension_numbers<[1], [0], [0], [1], [0, 0, 1, 1], [], []>} : vector<8x256xf32>, vector<256x512xf32>, vector<8x512xf32> -> vector<8x512xf32>
    %c0_114 = arith.constant 0 : index
    %c0_115 = arith.constant 0 : index
    %421 = vector.load %arg5[%c0_114, %c0_115] : memref<1x512xf32, #tpu.memory_space<vmem>>, vector<1x512xf32>
    %422 = vector.broadcast %421 : vector<1x512xf32> to vector<8x512xf32>
    %423 = arith.addf %420, %422 : vector<8x512xf32>
    %424 = vector.extract_strided_slice %423 {offsets = [0, 0], sizes = [8, 128], strides = [1, 1]} : vector<8x512xf32> to vector<8x128xf32>
    %425 = arith.negf %424 : vector<8x128xf32>
    %426 = math.exp %425 : vector<8x128xf32>
    %cst_116 = arith.constant 1.000000e+00 : f32
    %427 = vector.broadcast %cst_116 : f32 to vector<8x128xf32>
    %428 = arith.addf %427, %426 : vector<8x128xf32>
    %429 = arith.divf %427, %428 : vector<8x128xf32>
    %430 = vector.extract_strided_slice %423 {offsets = [0, 128], sizes = [8, 128], strides = [1, 1]} : vector<8x512xf32> to vector<8x128xf32>
    %431 = arith.negf %430 : vector<8x128xf32>
    %432 = math.exp %431 : vector<8x128xf32>
    %cst_117 = arith.constant 1.000000e+00 : f32
    %433 = vector.broadcast %cst_117 : f32 to vector<8x128xf32>
    %434 = arith.addf %433, %432 : vector<8x128xf32>
    %435 = arith.divf %433, %434 : vector<8x128xf32>
    %436 = vector.extract_strided_slice %423 {offsets = [0, 256], sizes = [8, 128], strides = [1, 1]} : vector<8x512xf32> to vector<8x128xf32>
    %437 = math.tanh %436 : vector<8x128xf32>
    %438 = vector.extract_strided_slice %423 {offsets = [0, 384], sizes = [8, 128], strides = [1, 1]} : vector<8x512xf32> to vector<8x128xf32>
    %439 = arith.negf %438 : vector<8x128xf32>
    %440 = math.exp %439 : vector<8x128xf32>
    %cst_118 = arith.constant 1.000000e+00 : f32
    %441 = vector.broadcast %cst_118 : f32 to vector<8x128xf32>
    %442 = arith.addf %441, %440 : vector<8x128xf32>
    %443 = arith.divf %441, %442 : vector<8x128xf32>
    %444 = arith.mulf %435, %383 : vector<8x128xf32>
    %445 = arith.mulf %429, %437 : vector<8x128xf32>
    %446 = arith.addf %444, %445 : vector<8x128xf32>
    %447 = math.tanh %446 : vector<8x128xf32>
    %448 = arith.mulf %443, %447 : vector<8x128xf32>
    %c7_i32 = arith.constant 7 : i32
    %c8_i32_119 = arith.constant 8 : i32
    %449 = arith.muli %c7_i32, %c8_i32_119 : i32
    %450 = tpu.assume_multiple %449, 8 : i32
    %451 = arith.index_cast %450 : i32 to index
    %c0_120 = arith.constant 0 : index
    %452 = vector.load %arg9[%451, %c0_120] : memref<64x512xf32, #tpu.memory_space<vmem>>, vector<8x512xf32>
    %c0_121 = arith.constant 0 : index
    %c0_122 = arith.constant 0 : index
    %453 = vector.load %arg2[%c0_121, %c0_122] : memref<128x512xf32, #tpu.memory_space<vmem>>, vector<128x512xf32>
    %cst_123 = arith.constant dense<0.000000e+00> : vector<8x512xf32>
    %454 = tpu.matmul %417, %453, %cst_123 {dimension_numbers = #tpu.dot_dimension_numbers<[1], [0], [0], [1], [0, 0, 1, 1], [], []>} : vector<8x128xf32>, vector<128x512xf32>, vector<8x512xf32> -> vector<8x512xf32>
    %455 = arith.addf %452, %454 : vector<8x512xf32>
    %456 = vector.extract_strided_slice %455 {offsets = [0, 0], sizes = [8, 128], strides = [1, 1]} : vector<8x512xf32> to vector<8x128xf32>
    %457 = arith.negf %456 : vector<8x128xf32>
    %458 = math.exp %457 : vector<8x128xf32>
    %cst_124 = arith.constant 1.000000e+00 : f32
    %459 = vector.broadcast %cst_124 : f32 to vector<8x128xf32>
    %460 = arith.addf %459, %458 : vector<8x128xf32>
    %461 = arith.divf %459, %460 : vector<8x128xf32>
    %462 = vector.extract_strided_slice %455 {offsets = [0, 128], sizes = [8, 128], strides = [1, 1]} : vector<8x512xf32> to vector<8x128xf32>
    %463 = arith.negf %462 : vector<8x128xf32>
    %464 = math.exp %463 : vector<8x128xf32>
    %cst_125 = arith.constant 1.000000e+00 : f32
    %465 = vector.broadcast %cst_125 : f32 to vector<8x128xf32>
    %466 = arith.addf %465, %464 : vector<8x128xf32>
    %467 = arith.divf %465, %466 : vector<8x128xf32>
    %468 = vector.extract_strided_slice %455 {offsets = [0, 256], sizes = [8, 128], strides = [1, 1]} : vector<8x512xf32> to vector<8x128xf32>
    %469 = math.tanh %468 : vector<8x128xf32>
    %470 = vector.extract_strided_slice %455 {offsets = [0, 384], sizes = [8, 128], strides = [1, 1]} : vector<8x512xf32> to vector<8x128xf32>
    %471 = arith.negf %470 : vector<8x128xf32>
    %472 = math.exp %471 : vector<8x128xf32>
    %cst_126 = arith.constant 1.000000e+00 : f32
    %473 = vector.broadcast %cst_126 : f32 to vector<8x128xf32>
    %474 = arith.addf %473, %472 : vector<8x128xf32>
    %475 = arith.divf %473, %474 : vector<8x128xf32>
    %476 = arith.mulf %467, %415 : vector<8x128xf32>
    %477 = arith.mulf %461, %469 : vector<8x128xf32>
    %478 = arith.addf %476, %477 : vector<8x128xf32>
    %479 = math.tanh %478 : vector<8x128xf32>
    %480 = arith.mulf %475, %479 : vector<8x128xf32>
    %481 = tpu.concatenate %480, %448 in 1 : vector<8x128xf32>, vector<8x128xf32> -> vector<8x256xf32>
    %c0_127 = arith.constant 0 : index
    %c0_128 = arith.constant 0 : index
    %482 = vector.load %arg4[%c0_127, %c0_128] : memref<256x512xf32, #tpu.memory_space<vmem>>, vector<256x512xf32>
    %cst_129 = arith.constant dense<0.000000e+00> : vector<8x512xf32>
    %483 = tpu.matmul %481, %482, %cst_129 {dimension_numbers = #tpu.dot_dimension_numbers<[1], [0], [0], [1], [0, 0, 1, 1], [], []>} : vector<8x256xf32>, vector<256x512xf32>, vector<8x512xf32> -> vector<8x512xf32>
    %c0_130 = arith.constant 0 : index
    %c0_131 = arith.constant 0 : index
    %484 = vector.load %arg5[%c0_130, %c0_131] : memref<1x512xf32, #tpu.memory_space<vmem>>, vector<1x512xf32>
    %485 = vector.broadcast %484 : vector<1x512xf32> to vector<8x512xf32>
    %486 = arith.addf %483, %485 : vector<8x512xf32>
    %487 = vector.extract_strided_slice %486 {offsets = [0, 0], sizes = [8, 128], strides = [1, 1]} : vector<8x512xf32> to vector<8x128xf32>
    %488 = arith.negf %487 : vector<8x128xf32>
    %489 = math.exp %488 : vector<8x128xf32>
    %cst_132 = arith.constant 1.000000e+00 : f32
    %490 = vector.broadcast %cst_132 : f32 to vector<8x128xf32>
    %491 = arith.addf %490, %489 : vector<8x128xf32>
    %492 = arith.divf %490, %491 : vector<8x128xf32>
    %493 = vector.extract_strided_slice %486 {offsets = [0, 128], sizes = [8, 128], strides = [1, 1]} : vector<8x512xf32> to vector<8x128xf32>
    %494 = arith.negf %493 : vector<8x128xf32>
    %495 = math.exp %494 : vector<8x128xf32>
    %cst_133 = arith.constant 1.000000e+00 : f32
    %496 = vector.broadcast %cst_133 : f32 to vector<8x128xf32>
    %497 = arith.addf %496, %495 : vector<8x128xf32>
    %498 = arith.divf %496, %497 : vector<8x128xf32>
    %499 = vector.extract_strided_slice %486 {offsets = [0, 256], sizes = [8, 128], strides = [1, 1]} : vector<8x512xf32> to vector<8x128xf32>
    %500 = math.tanh %499 : vector<8x128xf32>
    %501 = vector.extract_strided_slice %486 {offsets = [0, 384], sizes = [8, 128], strides = [1, 1]} : vector<8x512xf32> to vector<8x128xf32>
    %502 = arith.negf %501 : vector<8x128xf32>
    %503 = math.exp %502 : vector<8x128xf32>
    %cst_134 = arith.constant 1.000000e+00 : f32
    %504 = vector.broadcast %cst_134 : f32 to vector<8x128xf32>
    %505 = arith.addf %504, %503 : vector<8x128xf32>
    %506 = arith.divf %504, %505 : vector<8x128xf32>
    %507 = arith.mulf %498, %446 : vector<8x128xf32>
    %508 = arith.mulf %492, %500 : vector<8x128xf32>
    %509 = arith.addf %507, %508 : vector<8x128xf32>
    %510 = math.tanh %509 : vector<8x128xf32>
    %511 = arith.mulf %506, %510 : vector<8x128xf32>
    %c8_i32_135 = arith.constant 8 : i32
    %c0_136 = arith.constant 0 : index
    %c0_137 = arith.constant 0 : index
    %512 = vector.load %arg6[%c0_136, %c0_137] : memref<128x3xf32, #tpu.memory_space<vmem>>, vector<128x3xf32>
    %cst_138 = arith.constant dense<0.000000e+00> : vector<8x3xf32>
    %513 = tpu.matmul %511, %512, %cst_138 {dimension_numbers = #tpu.dot_dimension_numbers<[1], [0], [0], [1], [0, 0, 1, 1], [], []>} : vector<8x128xf32>, vector<128x3xf32>, vector<8x3xf32> -> vector<8x3xf32>
    %c0_139 = arith.constant 0 : index
    %c0_140 = arith.constant 0 : index
    %514 = vector.load %arg7[%c0_139, %c0_140] : memref<1x3xf32, #tpu.memory_space<vmem>>, vector<1x3xf32>
    %515 = vector.broadcast %514 : vector<1x3xf32> to vector<8x3xf32>
    %516 = arith.addf %513, %515 : vector<8x3xf32>
    %c0_141 = arith.constant 0 : index
    %c0_142 = arith.constant 0 : index
    %517 = vector.load %arg8[%c0_141, %c0_142] : memref<8x3xf32, #tpu.memory_space<vmem>>, vector<8x3xf32>
    tpu.vector_store %arg8[%c0_141, %c0_142], %516 {strides = array<i32>} : memref<8x3xf32, #tpu.memory_space<vmem>>, vector<8x3xf32>,
    return
  }
}

</mosaic_0001>

<llo_original>
// kernel: tpu_custom_call.1
$region0: #{tpu_custom_call.1}
  #allocation0 [shape = 'u32[]', space=smem, size = 0x4, offset = 0x4, fixed_abs, tag = 'smem constant byte address 0x4 - core index']
  #allocation1 [shape = 'u32[144,128]{1,0:T(1,128)}', space=vmem, size = 0x12000, scoped, tag = 'internal scratch']
  #allocation2 [shape = 'f32[64,512]{1,0:T(8,128)}', space=vmem, size = 0x20000, scoped, tag = 'scratch operand']
  %s0 = inlined_call_operand.vmem [shape: f32[64,25], index: 0, kind: input, shape index: {}]
  %s1 = inlined_call_operand.vmem [shape: f32[25,512], index: 1, kind: input, shape index: {}]
  %s2 = inlined_call_operand.hbm [shape: f32[128,512], index: 2, kind: input, shape index: {}]
  %s3 = inlined_call_operand.vmem [shape: f32[1,512], index: 3, kind: input, shape index: {}]
  %s4 = inlined_call_operand.hbm [shape: f32[256,512], index: 4, kind: input, shape index: {}]
  %s5 = inlined_call_operand.vmem [shape: f32[1,512], index: 5, kind: input, shape index: {}]
  %s6 = inlined_call_operand.vmem [shape: f32[128,3], index: 6, kind: input, shape index: {}]
  %s7 = inlined_call_operand.vmem [shape: f32[1,3], index: 7, kind: input, shape index: {}]
  %s8 = inlined_call_operand.vmem [shape: f32[8,3], index: 8, kind: output, shape index: {}]
  %s9 = sld [smem:[#allocation0]]
  $region50: #{tpu_custom_call.1} parent=0
    _
  %s11 = ssub.s32 1, %s9
  %s12 = scalar_select 0, %s11, %s9
  $region1: #{tpu_custom_call.1} parent=0
    #allocation3 [shape = 'u8[262144]{0}', space=vmem, size = 0x40000, scoped, tag = 'input window, operand 2, single buffered']
    #allocation4 [shape = 's32[1]{0}', space=sflag, size = 0x4, scoped, tag = 'scoped memory for tpu_custom_call.1']
    #allocation5 [shape = 'u8[524288]{0}', space=vmem, size = 0x80000, scoped, tag = 'input window, operand 4, single buffered']
    #allocation6 [shape = 's32[1]{0}', space=sflag, size = 0x4, scoped, tag = 'scoped memory for tpu_custom_call.1']
    %13 = vsyncpa [#allocation4], 0
    %14 = vsyncpa [#allocation6], 0
    // Predicated region
    $region2: #{tpu_custom_call.1} parent=1 // pred_check
      _
    $region3: #{tpu_custom_call.1} parent=1 // pred_check_branch
      %16 = sbr.rel (0) target = $region5
    $region4: #{tpu_custom_call.1} parent=1 // pred_region
      _
    $region5: #{tpu_custom_call.1} parent=1 // pred_fallthru
      _
    // Predicated region
    $region6: #{tpu_custom_call.1} parent=1 // pred_check
      _
    $region7: #{tpu_custom_call.1} parent=1 // pred_check_branch
      %18 = sbr.rel (0) target = $region9
    $region8: #{tpu_custom_call.1} parent=1 // pred_region
      _
    $region9: #{tpu_custom_call.1} parent=1 // pred_fallthru
      _
    // Predicated region
    $region10: #{tpu_custom_call.1} parent=1 // pred_check
      _
    $region11: #{tpu_custom_call.1} parent=1 // pred_check_branch
      %20 = sbr.rel (0) target = $region13
    $region12: #{tpu_custom_call.1} parent=1 // pred_region
      %s22 = ssub.s32 8192, 8192
      %23 = vsyncadd [#allocation4], %s22
      %s24 = sshll.u32 [#allocation3], 4
      %s25 = int_to_ptr.vmem [resolvable:$true] %s24
      %30 = dma.hbm_to_vmem [thread:$0]  %s2, 8192, %s25, [#allocation4], 512, 512, 32
    $region13: #{tpu_custom_call.1} parent=1 // pred_fallthru
      _
    // Predicated region
    $region14: #{tpu_custom_call.1} parent=1 // pred_check
      _
    $region15: #{tpu_custom_call.1} parent=1 // pred_check_branch
      %32 = sbr.rel (0) target = $region17
    $region16: #{tpu_custom_call.1} parent=1 // pred_region
      _
    $region17: #{tpu_custom_call.1} parent=1 // pred_fallthru
      _
    // Predicated region
    $region18: #{tpu_custom_call.1} parent=1 // pred_check
      _
    $region19: #{tpu_custom_call.1} parent=1 // pred_check_branch
      %34 = sbr.rel (0) target = $region21
    $region20: #{tpu_custom_call.1} parent=1 // pred_region
      %s36 = ssub.s32 16384, 16384
      %37 = vsyncadd [#allocation6], %s36
      %s38 = sshll.u32 [#allocation5], 4
      %s39 = int_to_ptr.vmem [resolvable:$true] %s38
      %44 = dma.hbm_to_vmem [thread:$0]  %s4, 16384, %s39, [#allocation6], 512, 512, 32
    $region21: #{tpu_custom_call.1} parent=1 // pred_fallthru
      _
    // Predicated region
    $region22: #{tpu_custom_call.1} parent=1 // pred_check
      _
    $region23: #{tpu_custom_call.1} parent=1 // pred_check_branch
      %46 = sbr.rel (0) target = $region25
    $region24: #{tpu_custom_call.1} parent=1 // pred_region
      _
    $region25: #{tpu_custom_call.1} parent=1 // pred_fallthru
      _
    // Predicated region
    $region26: #{tpu_custom_call.1} parent=1 // pred_check
      _
    $region27: #{tpu_custom_call.1} parent=1 // pred_check_branch
      %48 = sbr.rel (0) target = $region29
    $region28: #{tpu_custom_call.1} parent=1 // pred_region
      _
    $region29: #{tpu_custom_call.1} parent=1 // pred_fallthru
      _
    // Predicated region
    $region30: #{tpu_custom_call.1} parent=1 // pred_check
      _
    $region31: #{tpu_custom_call.1} parent=1 // pred_check_branch
      %50 = sbr.rel (0) target = $region33
    $region32: #{tpu_custom_call.1} parent=1 // pred_region
      _
    $region33: #{tpu_custom_call.1} parent=1 // pred_fallthru
      _
    // Predicated region
    $region34: #{tpu_custom_call.1} parent=1 // pred_check
      _
    $region35: #{tpu_custom_call.1} parent=1 // pred_check_branch
      %52 = sbr.rel (0) target = $region37
    $region36: #{tpu_custom_call.1} parent=1 // pred_region
      %53 = dma.done [#allocation4], 8192
    $region37: #{tpu_custom_call.1} parent=1 // pred_fallthru
      _
    // Predicated region
    $region38: #{tpu_custom_call.1} parent=1 // pred_check
      _
    $region39: #{tpu_custom_call.1} parent=1 // pred_check_branch
      %55 = sbr.rel (0) target = $region41
    $region40: #{tpu_custom_call.1} parent=1 // pred_region
      %56 = dma.done [#allocation6], 16384
    $region41: #{tpu_custom_call.1} parent=1 // pred_fallthru
      _
    %v57 = vld [vmem:[%s0] sm:$0xff]
    %v58 = vld [vmem:[%s0 + $0x8] sm:$0xff]
    %v59 = vld [vmem:[%s0 + $0x10] sm:$0xff]
    %v60 = vld [vmem:[%s0 + $0x18] sm:$0xff]
    %v61 = vld [vmem:[%s0 + $0x20] sm:$0xff]
    %v62 = vld [vmem:[%s0 + $0x28] sm:$0xff]
    %v63 = vld [vmem:[%s0 + $0x30] sm:$0xff]
    %v64 = vld [vmem:[%s0 + $0x38] sm:$0xff]
    %v65 = vld [vmem:[%s1] sm:$0xff]
    %v66 = vld [vmem:[%s1 + $0x8] sm:$0xff]
    %v67 = vld [vmem:[%s1 + $0x10] sm:$0xff]
    %v68 = vld [vmem:[%s1 + $0x18] sm:$0xff]
    %v69 = vld [vmem:[%s1 + $0x20] sm:$0xff]
    %v70 = vld [vmem:[%s1 + $0x28] sm:$0xff]
    %v71 = vld [vmem:[%s1 + $0x30] sm:$0xff]
    %v72 = vld [vmem:[%s1 + $0x38] sm:$0xff]
    %v73 = vld [vmem:[%s1 + $0x40] sm:$0xff]
    %v74 = vld [vmem:[%s1 + $0x48] sm:$0xff]
    %v75 = vld [vmem:[%s1 + $0x50] sm:$0xff]
    %v76 = vld [vmem:[%s1 + $0x58] sm:$0xff]
    %v77 = vld [vmem:[%s1 + $0x60] sm:$0x1]
    %v78 = vld [vmem:[%s1 + $0x68] sm:$0x1]
    %v79 = vld [vmem:[%s1 + $0x70] sm:$0x1]
    %v80 = vld [vmem:[%s1 + $0x78] sm:$0x1]
    %v81 = vld [vmem:[%s3] sm:$0xf]
    %v83 = vlaneseq
    %v84 = vshrl.u32 %v83, 7
    %v85 = vsub.s32 0, %v84
    %v86 = vrot.slane %v81, %v85
    %v87 = vlaneseq
    %v88 = vshrl.u32 %v87, 7
    %v89 = vsub.s32 1, %v88
    %v90 = vrot.slane %v81, %v89
    %v91 = vlaneseq
    %v92 = vshrl.u32 %v91, 7
    %v93 = vsub.s32 2, %v92
    %v94 = vrot.slane %v81, %v93
    %v95 = vlaneseq
    %v96 = vshrl.u32 %v95, 7
    %v97 = vsub.s32 3, %v96
    %v98 = vrot.slane %v81, %v97
    %vm103 = vcmask 203776
    %v105 = vsel %vm103, %v57, 0
    %v108 = vsel %vm103, %v58, 0
    %v111 = vsel %vm103, %v59, 0
    %v114 = vsel %vm103, %v60, 0
    %v117 = vsel %vm103, %v61, 0
    %v120 = vsel %vm103, %v62, 0
    %v123 = vsel %vm103, %v63, 0
    %v126 = vsel %vm103, %v64, 0
    %vm128 = vcmask 1040384
    %v130 = vsel %vm128, %v77, 0
    %v133 = vsel %vm128, %v78, 0
    %v136 = vsel %vm128, %v79, 0
    %v139 = vsel %vm128, %v80, 0
    %141 = vmatprep.subr.mxu0 0.0
    %142 = vmatpush1.msra.mxu0 0.0
    %143 = vmatprep.subr.mxu0 0.0
    %144 = vmatpush1.msra.mxu0 0.0
    %145 = vmatprep.subr.mxu0 0.0
    %146 = vmatpush1.msra.mxu0 0.0
    %147 = vmatprep.subr.mxu0 0.0
    %148 = vmatpush1.msra.mxu0 0.0
    %149 = vmatprep.subr.mxu0 0.0
    %150 = vmatpush1.msra.mxu0 0.0
    %151 = vmatprep.subr.mxu0 0.0
    %152 = vmatpush1.msra.mxu0 0.0
    %153 = vmatprep.subr.mxu0 0.0
    %154 = vmatpush1.msra.mxu0 0.0
    %155 = vmatprep.subr.mxu0 0.0
    %156 = vmatpush1.msra.mxu0 0.0
    %157 = vmatprep.subr.mxu0 0.0
    %158 = vmatpush1.msra.mxu0 0.0
    %159 = vmatprep.subr.mxu0 0.0
    %160 = vmatpush1.msra.mxu0 0.0
    %161 = vmatprep.subr.mxu0 0.0
    %162 = vmatpush1.msra.mxu0 0.0
    %163 = vmatprep.subr.mxu0 0.0
    %164 = vmatpush1.msra.mxu0 0.0
    %165 = vmatprep.subr.mxu0 %v133
    %166 = vmatpush1.msra.mxu0 %v130
    %167 = vmatprep.subr.mxu0 %v74
    %168 = vmatpush1.msra.mxu0 %v73
    %169 = vmatprep.subr.mxu0 %v70
    %170 = vmatpush1.msra.mxu0 %v69
    %171 = vmatprep.subr.mxu0 %v66
    %172 = vmatpush1.msra.mxu0 %v65
    %173 = vmatprep.subr.mxu0 0.0
    %174 = vmatpush2.msra.mxu0 0.0
    %175 = vmatprep.subr.mxu0 0.0
    %176 = vmatpush2.msra.mxu0 0.0
    %177 = vmatprep.subr.mxu0 0.0
    %178 = vmatpush2.msra.mxu0 0.0
    %179 = vmatprep.subr.mxu0 0.0
    %180 = vmatpush2.msra.mxu0 0.0
    %181 = vmatprep.subr.mxu0 0.0
    %182 = vmatpush2.msra.mxu0 0.0
    %183 = vmatprep.subr.mxu0 0.0
    %184 = vmatpush2.msra.mxu0 0.0
    %185 = vmatprep.subr.mxu0 0.0
    %186 = vmatpush2.msra.mxu0 0.0
    %187 = vmatprep.subr.mxu0 0.0
    %188 = vmatpush2.msra.mxu0 0.0
    %189 = vmatprep.subr.mxu0 0.0
    %190 = vmatpush2.msra.mxu0 0.0
    %191 = vmatprep.subr.mxu0 0.0
    %192 = vmatpush2.msra.mxu0 0.0
    %193 = vmatprep.subr.mxu0 0.0
    %194 = vmatpush2.msra.mxu0 0.0
    %195 = vmatprep.subr.mxu0 0.0
    %196 = vmatpush2.msra.mxu0 0.0
    %197 = vmatprep.subr.mxu0 0.0
    %198 = vmatpush2.msra.mxu0 0.0
    %199 = vmatprep.subr.mxu0 0.0
    %200 = vmatpush2.msra.mxu0 0.0
    %201 = vmatprep.subr.mxu0 0.0
    %202 = vmatpush2.msra.mxu0 0.0
    %203 = vmatprep.subr.mxu0 0.0
    %204 = vmatpush2.msra.mxu0 0.0
    %205 = vmatprep.mubr.f32.mxu0 0.0
    %206 = vmatmul.mubr.f32.gmra.mxu0 %v105
    %v207 = vpop.f32.mrf.mxu0
    %v208 = vadd.f32 %v86, %v207
    %v209 = vpop.f32.mrf.mxu0
    %v210 = vadd.f32 %v90, %v209
    %211 = vmatprep.mubr.f32.mxu0 0.0
    %212 = vmatmul.mubr.f32.gmra.mxu0 %v108
    %v213 = vpop.f32.mrf.mxu0
    %v214 = vadd.f32 %v86, %v213
    %v215 = vpop.f32.mrf.mxu0
    %v216 = vadd.f32 %v90, %v215
    %217 = vmatprep.mubr.f32.mxu0 0.0
    %218 = vmatmul.mubr.f32.gmra.mxu0 %v111
    %v219 = vpop.f32.mrf.mxu0
    %v220 = vadd.f32 %v86, %v219
    %v221 = vpop.f32.mrf.mxu0
    %v222 = vadd.f32 %v90, %v221
    %223 = vmatprep.mubr.f32.mxu0 0.0
    %224 = vmatmul.mubr.f32.gmra.mxu0 %v114
    %v225 = vpop.f32.mrf.mxu0
    %v226 = vadd.f32 %v86, %v225
    %v227 = vpop.f32.mrf.mxu0
    %v228 = vadd.f32 %v90, %v227
    %229 = vmatprep.mubr.f32.mxu0 0.0
    %230 = vmatmul.mubr.f32.gmra.mxu0 %v117
    %v231 = vpop.f32.mrf.mxu0
    %v232 = vadd.f32 %v86, %v231
    %v233 = vpop.f32.mrf.mxu0
    %v234 = vadd.f32 %v90, %v233
    %235 = vmatprep.mubr.f32.mxu0 0.0
    %236 = vmatmul.mubr.f32.gmra.mxu0 %v120
    %v237 = vpop.f32.mrf.mxu0
    %v238 = vadd.f32 %v86, %v237
    %v239 = vpop.f32.mrf.mxu0
    %v240 = vadd.f32 %v90, %v239
    %241 = vmatprep.mubr.f32.mxu0 0.0
    %242 = vmatmul.mubr.f32.gmra.mxu0 %v123
    %v243 = vpop.f32.mrf.mxu0
    %v244 = vadd.f32 %v86, %v243
    %v245 = vpop.f32.mrf.mxu0
    %v246 = vadd.f32 %v90, %v245
    %247 = vmatprep.mubr.f32.mxu0 0.0
    %248 = vmatmul.mubr.f32.gmra.mxu0 %v126
    %v249 = vpop.f32.mrf.mxu0
    %v250 = vadd.f32 %v86, %v249
    %v251 = vpop.f32.mrf.mxu0
    %v252 = vadd.f32 %v90, %v251
    %253 = vdwg.mxu0
    %254 = vmatprep.subr.mxu0 0.0
    %255 = vmatpush1.msra.mxu0 0.0
    %256 = vmatprep.subr.mxu0 0.0
    %257 = vmatpush1.msra.mxu0 0.0
    %258 = vmatprep.subr.mxu0 0.0
    %259 = vmatpush1.msra.mxu0 0.0
    %260 = vmatprep.subr.mxu0 0.0
    %261 = vmatpush1.msra.mxu0 0.0
    %262 = vmatprep.subr.mxu0 0.0
    %263 = vmatpush1.msra.mxu0 0.0
    %264 = vmatprep.subr.mxu0 0.0
    %265 = vmatpush1.msra.mxu0 0.0
    %266 = vmatprep.subr.mxu0 0.0
    %267 = vmatpush1.msra.mxu0 0.0
    %268 = vmatprep.subr.mxu0 0.0
    %269 = vmatpush1.msra.mxu0 0.0
    %270 = vmatprep.subr.mxu0 0.0
    %271 = vmatpush1.msra.mxu0 0.0
    %272 = vmatprep.subr.mxu0 0.0
    %273 = vmatpush1.msra.mxu0 0.0
    %274 = vmatprep.subr.mxu0 0.0
    %275 = vmatpush1.msra.mxu0 0.0
    %276 = vmatprep.subr.mxu0 0.0
    %277 = vmatpush1.msra.mxu0 0.0
    %278 = vmatprep.subr.mxu0 %v139
    %279 = vmatpush1.msra.mxu0 %v136
    %280 = vmatprep.subr.mxu0 %v76
    %281 = vmatpush1.msra.mxu0 %v75
    %282 = vmatprep.subr.mxu0 %v72
    %283 = vmatpush1.msra.mxu0 %v71
    %284 = vmatprep.subr.mxu0 %v68
    %285 = vmatpush1.msra.mxu0 %v67
    %286 = vmatprep.subr.mxu0 0.0
    %287 = vmatpush2.msra.mxu0 0.0
    %288 = vmatprep.subr.mxu0 0.0
    %289 = vmatpush2.msra.mxu0 0.0
    %290 = vmatprep.subr.mxu0 0.0
    %291 = vmatpush2.msra.mxu0 0.0
    %292 = vmatprep.subr.mxu0 0.0
    %293 = vmatpush2.msra.mxu0 0.0
    %294 = vmatprep.subr.mxu0 0.0
    %295 = vmatpush2.msra.mxu0 0.0
    %296 = vmatprep.subr.mxu0 0.0
    %297 = vmatpush2.msra.mxu0 0.0
    %298 = vmatprep.subr.mxu0 0.0
    %299 = vmatpush2.msra.mxu0 0.0
    %300 = vmatprep.subr.mxu0 0.0
    %301 = vmatpush2.msra.mxu0 0.0
    %302 = vmatprep.subr.mxu0 0.0
    %303 = vmatpush2.msra.mxu0 0.0
    %304 = vmatprep.subr.mxu0 0.0
    %305 = vmatpush2.msra.mxu0 0.0
    %306 = vmatprep.subr.mxu0 0.0
    %307 = vmatpush2.msra.mxu0 0.0
    %308 = vmatprep.subr.mxu0 0.0
    %309 = vmatpush2.msra.mxu0 0.0
    %310 = vmatprep.subr.mxu0 0.0
    %311 = vmatpush2.msra.mxu0 0.0
    %312 = vmatprep.subr.mxu0 0.0
    %313 = vmatpush2.msra.mxu0 0.0
    %314 = vmatprep.subr.mxu0 0.0
    %315 = vmatpush2.msra.mxu0 0.0
    %316 = vmatprep.subr.mxu0 0.0
    %317 = vmatpush2.msra.mxu0 0.0
    %318 = vmatprep.mubr.f32.mxu0 0.0
    %319 = vmatmul.mubr.f32.gmra.mxu0 %v105
    %v320 = vpop.f32.mrf.mxu0
    %v321 = vadd.f32 %v94, %v320
    %v322 = vpop.f32.mrf.mxu0
    %v323 = vadd.f32 %v98, %v322
    %324 = vmatprep.mubr.f32.mxu0 0.0
    %325 = vmatmul.mubr.f32.gmra.mxu0 %v108
    %v326 = vpop.f32.mrf.mxu0
    %v327 = vadd.f32 %v94, %v326
    %v328 = vpop.f32.mrf.mxu0
    %v329 = vadd.f32 %v98, %v328
    %330 = vmatprep.mubr.f32.mxu0 0.0
    %331 = vmatmul.mubr.f32.gmra.mxu0 %v111
    %v332 = vpop.f32.mrf.mxu0
    %v333 = vadd.f32 %v94, %v332
    %v334 = vpop.f32.mrf.mxu0
    %v335 = vadd.f32 %v98, %v334
    %336 = vmatprep.mubr.f32.mxu0 0.0
    %337 = vmatmul.mubr.f32.gmra.mxu0 %v114
    %v338 = vpop.f32.mrf.mxu0
    %v339 = vadd.f32 %v94, %v338
    %v340 = vpop.f32.mrf.mxu0
    %v341 = vadd.f32 %v98, %v340
    %342 = vmatprep.mubr.f32.mxu0 0.0
    %343 = vmatmul.mubr.f32.gmra.mxu0 %v117
    %v344 = vpop.f32.mrf.mxu0
    %v345 = vadd.f32 %v94, %v344
    %v346 = vpop.f32.mrf.mxu0
    %v347 = vadd.f32 %v98, %v346
    %348 = vmatprep.mubr.f32.mxu0 0.0
    %349 = vmatmul.mubr.f32.gmra.mxu0 %v120
    %v350 = vpop.f32.mrf.mxu0
    %v351 = vadd.f32 %v94, %v350
    %v352 = vpop.f32.mrf.mxu0
    %v353 = vadd.f32 %v98, %v352
    %354 = vmatprep.mubr.f32.mxu0 0.0
    %355 = vmatmul.mubr.f32.gmra.mxu0 %v123
    %v356 = vpop.f32.mrf.mxu0
    %v357 = vadd.f32 %v94, %v356
    %v358 = vpop.f32.mrf.mxu0
    %v359 = vadd.f32 %v98, %v358
    %360 = vmatprep.mubr.f32.mxu0 0.0
    %361 = vmatmul.mubr.f32.gmra.mxu0 %v126
    %v362 = vpop.f32.mrf.mxu0
    %v363 = vadd.f32 %v94, %v362
    %v364 = vpop.f32.mrf.mxu0
    %v365 = vadd.f32 %v98, %v364
    %366 = vdwg.mxu0
    %367 = vst [vmem:[#allocation2] sm:$0xff] %v208
    %368 = vst [vmem:[#allocation2 + $0x8] sm:$0xff] %v210
    %369 = vst [vmem:[#allocation2 + $0x10] sm:$0xff] %v321
    %370 = vst [vmem:[#allocation2 + $0x18] sm:$0xff] %v323
    %371 = vst [vmem:[#allocation2 + $0x20] sm:$0xff] %v214
    %372 = vst [vmem:[#allocation2 + $0x28] sm:$0xff] %v216
    %373 = vst [vmem:[#allocation2 + $0x30] sm:$0xff] %v327
    %374 = vst [vmem:[#allocation2 + $0x38] sm:$0xff] %v329
    %375 = vst [vmem:[#allocation2 + $0x40] sm:$0xff] %v220
    %376 = vst [vmem:[#allocation2 + $0x48] sm:$0xff] %v222
    %377 = vst [vmem:[#allocation2 + $0x50] sm:$0xff] %v333
    %378 = vst [vmem:[#allocation2 + $0x58] sm:$0xff] %v335
    %379 = vst [vmem:[#allocation2 + $0x60] sm:$0xff] %v226
    %380 = vst [vmem:[#allocation2 + $0x68] sm:$0xff] %v228
    %381 = vst [vmem:[#allocation2 + $0x70] sm:$0xff] %v339
    %382 = vst [vmem:[#allocation2 + $0x78] sm:$0xff] %v341
    %383 = vst [vmem:[#allocation2 + $0x80] sm:$0xff] %v232
    %384 = vst [vmem:[#allocation2 + $0x88] sm:$0xff] %v234
    %385 = vst [vmem:[#allocation2 + $0x90] sm:$0xff] %v345
    %386 = vst [vmem:[#allocation2 + $0x98] sm:$0xff] %v347
    %387 = vst [vmem:[#allocation2 + $0xa0] sm:$0xff] %v238
    %388 = vst [vmem:[#allocation2 + $0xa8] sm:$0xff] %v240
    %389 = vst [vmem:[#allocation2 + $0xb0] sm:$0xff] %v351
    %390 = vst [vmem:[#allocation2 + $0xb8] sm:$0xff] %v353
    %391 = vst [vmem:[#allocation2 + $0xc0] sm:$0xff] %v244
    %392 = vst [vmem:[#allocation2 + $0xc8] sm:$0xff] %v246
    %393 = vst [vmem:[#allocation2 + $0xd0] sm:$0xff] %v357
    %394 = vst [vmem:[#allocation2 + $0xd8] sm:$0xff] %v359
    %395 = vst [vmem:[#allocation2 + $0xe0] sm:$0xff] %v250
    %396 = vst [vmem:[#allocation2 + $0xe8] sm:$0xff] %v252
    %397 = vst [vmem:[#allocation2 + $0xf0] sm:$0xff] %v363
    %398 = vst [vmem:[#allocation2 + $0xf8] sm:$0xff] %v365
    %s399 = smul.u32 0, 4
    %s400 = smul.addr %s399, 8
    %s401 = scalar_lea.vmem [#allocation2], %s400
    %v402 = vld [vmem:[%s401] sm:$0xff]
    %v403 = vld [vmem:[%s401 + $0x8] sm:$0xff]
    %v404 = vld [vmem:[%s401 + $0x10] sm:$0xff]
    %v405 = vld [vmem:[%s401 + $0x18] sm:$0xff]
    %v406 = vld [vmem:[#allocation3] sm:$0xff]
    %v407 = vld [vmem:[#allocation3 + $0x8] sm:$0xff]
    %v408 = vld [vmem:[#allocation3 + $0x10] sm:$0xff]
    %v409 = vld [vmem:[#allocation3 + $0x18] sm:$0xff]
    %v410 = vld [vmem:[#allocation3 + $0x20] sm:$0xff]
    %v411 = vld [vmem:[#allocation3 + $0x28] sm:$0xff]
    %v412 = vld [vmem:[#allocation3 + $0x30] sm:$0xff]
    %v413 = vld [vmem:[#allocation3 + $0x38] sm:$0xff]
    %v414 = vld [vmem:[#allocation3 + $0x40] sm:$0xff]
    %v415 = vld [vmem:[#allocation3 + $0x48] sm:$0xff]
    %v416 = vld [vmem:[#allocation3 + $0x50] sm:$0xff]
    %v417 = vld [vmem:[#allocation3 + $0x58] sm:$0xff]
    %v418 = vld [vmem:[#allocation3 + $0x60] sm:$0xff]
    %v419 = vld [vmem:[#allocation3 + $0x68] sm:$0xff]
    %v420 = vld [vmem:[#allocation3 + $0x70] sm:$0xff]
    %v421 = vld [vmem:[#allocation3 + $0x78] sm:$0xff]
    %v422 = vld [vmem:[#allocation3 + $0x80] sm:$0xff]
    %v423 = vld [vmem:[#allocation3 + $0x88] sm:$0xff]
    %v424 = vld [vmem:[#allocation3 + $0x90] sm:$0xff]
    %v425 = vld [vmem:[#allocation3 + $0x98] sm:$0xff]
    %v426 = vld [vmem:[#allocation3 + $0xa0] sm:$0xff]
    %v427 = vld [vmem:[#allocation3 + $0xa8] sm:$0xff]
    %v428 = vld [vmem:[#allocation3 + $0xb0] sm:$0xff]
    %v429 = vld [vmem:[#allocation3 + $0xb8] sm:$0xff]
    %v430 = vld [vmem:[#allocation3 + $0xc0] sm:$0xff]
    %v431 = vld [vmem:[#allocation3 + $0xc8] sm:$0xff]
    %v432 = vld [vmem:[#allocation3 + $0xd0] sm:$0xff]
    %v433 = vld [vmem:[#allocation3 + $0xd8] sm:$0xff]
    %v434 = vld [vmem:[#allocation3 + $0xe0] sm:$0xff]
    %v435 = vld [vmem:[#allocation3 + $0xe8] sm:$0xff]
    %v436 = vld [vmem:[#allocation3 + $0xf0] sm:$0xff]
    %v437 = vld [vmem:[#allocation3 + $0xf8] sm:$0xff]
    %v438 = vld [vmem:[#allocation3 + $0x100] sm:$0xff]
    %v439 = vld [vmem:[#allocation3 + $0x108] sm:$0xff]
    %v440 = vld [vmem:[#allocation3 + $0x110] sm:$0xff]
    %v441 = vld [vmem:[#allocation3 + $0x118] sm:$0xff]
    %v442 = vld [vmem:[#allocation3 + $0x120] sm:$0xff]
    %v443 = vld [vmem:[#allocation3 + $0x128] sm:$0xff]
    %v444 = vld [vmem:[#allocation3 + $0x130] sm:$0xff]
    %v445 = vld [vmem:[#allocation3 + $0x138] sm:$0xff]
    %v446 = vld [vmem:[#allocation3 + $0x140] sm:$0xff]
    %v447 = vld [vmem:[#allocation3 + $0x148] sm:$0xff]
    %v448 = vld [vmem:[#allocation3 + $0x150] sm:$0xff]
    %v449 = vld [vmem:[#allocation3 + $0x158] sm:$0xff]
    %v450 = vld [vmem:[#allocation3 + $0x160] sm:$0xff]
    %v451 = vld [vmem:[#allocation3 + $0x168] sm:$0xff]
    %v452 = vld [vmem:[#allocation3 + $0x170] sm:$0xff]
    %v453 = vld [vmem:[#allocation3 + $0x178] sm:$0xff]
    %v454 = vld [vmem:[#allocation3 + $0x180] sm:$0xff]
    %v455 = vld [vmem:[#allocation3 + $0x188] sm:$0xff]
    %v456 = vld [vmem:[#allocation3 + $0x190] sm:$0xff]
    %v457 = vld [vmem:[#allocation3 + $0x198] sm:$0xff]
    %v458 = vld [vmem:[#allocation3 + $0x1a0] sm:$0xff]
    %v459 = vld [vmem:[#allocation3 + $0x1a8] sm:$0xff]
    %v460 = vld [vmem:[#allocation3 + $0x1b0] sm:$0xff]
    %v461 = vld [vmem:[#allocation3 + $0x1b8] sm:$0xff]
    %v462 = vld [vmem:[#allocation3 + $0x1c0] sm:$0xff]
    %v463 = vld [vmem:[#allocation3 + $0x1c8] sm:$0xff]
    %v464 = vld [vmem:[#allocation3 + $0x1d0] sm:$0xff]
    %v465 = vld [vmem:[#allocation3 + $0x1d8] sm:$0xff]
    %v466 = vld [vmem:[#allocation3 + $0x1e0] sm:$0xff]
    %v467 = vld [vmem:[#allocation3 + $0x1e8] sm:$0xff]
    %v468 = vld [vmem:[#allocation3 + $0x1f0] sm:$0xff]
    %v469 = vld [vmem:[#allocation3 + $0x1f8] sm:$0xff]
    %470 = vmatprep.subr.mxu0 %v467
    %471 = vmatpush1.msra.mxu0 %v466
    %472 = vmatprep.subr.mxu0 %v463
    %473 = vmatpush1.msra.mxu0 %v462
    %474 = vmatprep.subr.mxu0 %v459
    %475 = vmatpush1.msra.mxu0 %v458
    %476 = vmatprep.subr.mxu0 %v455
    %477 = vmatpush1.msra.mxu0 %v454
    %478 = vmatprep.subr.mxu0 %v451
    %479 = vmatpush1.msra.mxu0 %v450
    %480 = vmatprep.subr.mxu0 %v447
    %481 = vmatpush1.msra.mxu0 %v446
    %482 = vmatprep.subr.mxu0 %v443
    %483 = vmatpush1.msra.mxu0 %v442
    %484 = vmatprep.subr.mxu0 %v439
    %485 = vmatpush1.msra.mxu0 %v438
    %486 = vmatprep.subr.mxu0 %v435
    %487 = vmatpush1.msra.mxu0 %v434
    %488 = vmatprep.subr.mxu0 %v431
    %489 = vmatpush1.msra.mxu0 %v430
    %490 = vmatprep.subr.mxu0 %v427
    %491 = vmatpush1.msra.mxu0 %v426
    %492 = vmatprep.subr.mxu0 %v423
    %493 = vmatpush1.msra.mxu0 %v422
    %494 = vmatprep.subr.mxu0 %v419
    %495 = vmatpush1.msra.mxu0 %v418
    %496 = vmatprep.subr.mxu0 %v415
    %497 = vmatpush1.msra.mxu0 %v414
    %498 = vmatprep.subr.mxu0 %v411
    %499 = vmatpush1.msra.mxu0 %v410
    %500 = vmatprep.subr.mxu0 %v407
    %501 = vmatpush1.msra.mxu0 %v406
    %502 = vmatprep.subr.mxu0 0.0
    %503 = vmatpush2.msra.mxu0 0.0
    %504 = vmatprep.subr.mxu0 0.0
    %505 = vmatpush2.msra.mxu0 0.0
    %506 = vmatprep.subr.mxu0 0.0
    %507 = vmatpush2.msra.mxu0 0.0
    %508 = vmatprep.subr.mxu0 0.0
    %509 = vmatpush2.msra.mxu0 0.0
    %510 = vmatprep.subr.mxu0 0.0
    %511 = vmatpush2.msra.mxu0 0.0
    %512 = vmatprep.subr.mxu0 0.0
    %513 = vmatpush2.msra.mxu0 0.0
    %514 = vmatprep.subr.mxu0 0.0
    %515 = vmatpush2.msra.mxu0 0.0
    %516 = vmatprep.subr.mxu0 0.0
    %517 = vmatpush2.msra.mxu0 0.0
    %518 = vmatprep.subr.mxu0 0.0
    %519 = vmatpush2.msra.mxu0 0.0
    %520 = vmatprep.subr.mxu0 0.0
    %521 = vmatpush2.msra.mxu0 0.0
    %522 = vmatprep.subr.mxu0 0.0
    %523 = vmatpush2.msra.mxu0 0.0
    %524 = vmatprep.subr.mxu0 0.0
    %525 = vmatpush2.msra.mxu0 0.0
    %526 = vmatprep.subr.mxu0 0.0
    %527 = vmatpush2.msra.mxu0 0.0
    %528 = vmatprep.subr.mxu0 0.0
    %529 = vmatpush2.msra.mxu0 0.0
    %530 = vmatprep.subr.mxu0 0.0
    %531 = vmatpush2.msra.mxu0 0.0
    %532 = vmatprep.subr.mxu0 0.0
    %533 = vmatpush2.msra.mxu0 0.0
    %534 = vmatprep.mubr.f32.mxu0 0.0
    %535 = vmatmul.mubr.f32.gmra.mxu0 0.0
    %v536 = vpop.f32.mrf.mxu0
    %v537 = vadd.f32 0.0, %v536
    %v538 = vpop.f32.mrf.mxu0
    %v539 = vadd.f32 0.0, %v538
    %540 = vdwg.mxu0
    %541 = vmatprep.subr.mxu0 %v469
    %542 = vmatpush1.msra.mxu0 %v468
    %543 = vmatprep.subr.mxu0 %v465
    %544 = vmatpush1.msra.mxu0 %v464
    %545 = vmatprep.subr.mxu0 %v461
    %546 = vmatpush1.msra.mxu0 %v460
    %547 = vmatprep.subr.mxu0 %v457
    %548 = vmatpush1.msra.mxu0 %v456
    %549 = vmatprep.subr.mxu0 %v453
    %550 = vmatpush1.msra.mxu0 %v452
    %551 = vmatprep.subr.mxu0 %v449
    %552 = vmatpush1.msra.mxu0 %v448
    %553 = vmatprep.subr.mxu0 %v445
    %554 = vmatpush1.msra.mxu0 %v444
    %555 = vmatprep.subr.mxu0 %v441
    %556 = vmatpush1.msra.mxu0 %v440
    %557 = vmatprep.subr.mxu0 %v437
    %558 = vmatpush1.msra.mxu0 %v436
    %559 = vmatprep.subr.mxu0 %v433
    %560 = vmatpush1.msra.mxu0 %v432
    %561 = vmatprep.subr.mxu0 %v429
    %562 = vmatpush1.msra.mxu0 %v428
    %563 = vmatprep.subr.mxu0 %v425
    %564 = vmatpush1.msra.mxu0 %v424
    %565 = vmatprep.subr.mxu0 %v421
    %566 = vmatpush1.msra.mxu0 %v420
    %567 = vmatprep.subr.mxu0 %v417
    %568 = vmatpush1.msra.mxu0 %v416
    %569 = vmatprep.subr.mxu0 %v413
    %570 = vmatpush1.msra.mxu0 %v412
    %571 = vmatprep.subr.mxu0 %v409
    %572 = vmatpush1.msra.mxu0 %v408
    %573 = vmatprep.subr.mxu0 0.0
    %574 = vmatpush2.msra.mxu0 0.0
    %575 = vmatprep.subr.mxu0 0.0
    %576 = vmatpush2.msra.mxu0 0.0
    %577 = vmatprep.subr.mxu0 0.0
    %578 = vmatpush2.msra.mxu0 0.0
    %579 = vmatprep.subr.mxu0 0.0
    %580 = vmatpush2.msra.mxu0 0.0
    %581 = vmatprep.subr.mxu0 0.0
    %582 = vmatpush2.msra.mxu0 0.0
    %583 = vmatprep.subr.mxu0 0.0
    %584 = vmatpush2.msra.mxu0 0.0
    %585 = vmatprep.subr.mxu0 0.0
    %586 = vmatpush2.msra.mxu0 0.0
    %587 = vmatprep.subr.mxu0 0.0
    %588 = vmatpush2.msra.mxu0 0.0
    %589 = vmatprep.subr.mxu0 0.0
    %590 = vmatpush2.msra.mxu0 0.0
    %591 = vmatprep.subr.mxu0 0.0
    %592 = vmatpush2.msra.mxu0 0.0
    %593 = vmatprep.subr.mxu0 0.0
    %594 = vmatpush2.msra.mxu0 0.0
    %595 = vmatprep.subr.mxu0 0.0
    %596 = vmatpush2.msra.mxu0 0.0
    %597 = vmatprep.subr.mxu0 0.0
    %598 = vmatpush2.msra.mxu0 0.0
    %599 = vmatprep.subr.mxu0 0.0
    %600 = vmatpush2.msra.mxu0 0.0
    %601 = vmatprep.subr.mxu0 0.0
    %602 = vmatpush2.msra.mxu0 0.0
    %603 = vmatprep.subr.mxu0 0.0
    %604 = vmatpush2.msra.mxu0 0.0
    %605 = vmatprep.mubr.f32.mxu0 0.0
    %606 = vmatmul.mubr.f32.gmra.mxu0 0.0
    %v607 = vpop.f32.mrf.mxu0
    %v608 = vadd.f32 0.0, %v607
    %v609 = vpop.f32.mrf.mxu0
    %v610 = vadd.f32 0.0, %v609
    %611 = vdwg.mxu0
    %v612 = vadd.f32 %v402, %v537
    %v613 = vadd.f32 %v403, %v539
    %v614 = vadd.f32 %v404, %v608
    %v615 = vadd.f32 %v405, %v610
    %v616 = vxor.u32 %v612, 2147483648
    %v617 = vmul.f32 %v616, 1.442695
    %v618 = vpow.pop %v617
    %v619 = vadd.f32 %v618, 1.0
    %v620 = vrcp.pop %v619
    %v621 = vmul.f32 1.0, %v620
    %v622 = vxor.u32 %v613, 2147483648
    %v623 = vmul.f32 %v622, 1.442695
    %v624 = vpow.pop %v623
    %v625 = vadd.f32 %v624, 1.0
    %v626 = vrcp.pop %v625
    %v627 = vmul.f32 1.0, %v626
    %v628 = vtanh.pop %v614
    %v629 = vxor.u32 %v615, 2147483648
    %v630 = vmul.f32 %v629, 1.442695
    %v631 = vpow.pop %v630
    %v632 = vadd.f32 %v631, 1.0
    %v633 = vrcp.pop %v632
    %v634 = vmul.f32 1.0, %v633
    %v635 = vmul.f32 %v627, 0.0
    %v636 = vmul.f32 %v621, %v628
    %v637 = vadd.f32 %v635, %v636
    %v638 = vtanh.pop %v637
    %v639 = vmul.f32 %v634, %v638
    %v640 = vld [vmem:[#allocation5] sm:$0xff]
    %v641 = vld [vmem:[#allocation5 + $0x8] sm:$0xff]
    %v642 = vld [vmem:[#allocation5 + $0x10] sm:$0xff]
    %v643 = vld [vmem:[#allocation5 + $0x18] sm:$0xff]
    %v644 = vld [vmem:[#allocation5 + $0x20] sm:$0xff]
    %v645 = vld [vmem:[#allocation5 + $0x28] sm:$0xff]
    %v646 = vld [vmem:[#allocation5 + $0x30] sm:$0xff]
    %v647 = vld [vmem:[#allocation5 + $0x38] sm:$0xff]
    %v648 = vld [vmem:[#allocation5 + $0x40] sm:$0xff]
    %v649 = vld [vmem:[#allocation5 + $0x48] sm:$0xff]
    %v650 = vld [vmem:[#allocation5 + $0x50] sm:$0xff]
    %v651 = vld [vmem:[#allocation5 + $0x58] sm:$0xff]
    %v652 = vld [vmem:[#allocation5 + $0x60] sm:$0xff]
    %v653 = vld [vmem:[#allocation5 + $0x68] sm:$0xff]
    %v654 = vld [vmem:[#allocation5 + $0x70] sm:$0xff]
    %v655 = vld [vmem:[#allocation5 + $0x78] sm:$0xff]
    %v656 = vld [vmem:[#allocation5 + $0x80] sm:$0xff]
    %v657 = vld [vmem:[#allocation5 + $0x88] sm:$0xff]
    %v658 = vld [vmem:[#allocation5 + $0x90] sm:$0xff]
    %v659 = vld [vmem:[#allocation5 + $0x98] sm:$0xff]
    %v660 = vld [vmem:[#allocation5 + $0xa0] sm:$0xff]
    %v661 = vld [vmem:[#allocation5 + $0xa8] sm:$0xff]
    %v662 = vld [vmem:[#allocation5 + $0xb0] sm:$0xff]
    %v663 = vld [vmem:[#allocation5 + $0xb8] sm:$0xff]
    %v664 = vld [vmem:[#allocation5 + $0xc0] sm:$0xff]
    %v665 = vld [vmem:[#allocation5 + $0xc8] sm:$0xff]
    %v666 = vld [vmem:[#allocation5 + $0xd0] sm:$0xff]
    %v667 = vld [vmem:[#allocation5 + $0xd8] sm:$0xff]
    %v668 = vld [vmem:[#allocation5 + $0xe0] sm:$0xff]
    %v669 = vld [vmem:[#allocation5 + $0xe8] sm:$0xff]
    %v670 = vld [vmem:[#allocation5 + $0xf0] sm:$0xff]
    %v671 = vld [vmem:[#allocation5 + $0xf8] sm:$0xff]
    %v672 = vld [vmem:[#allocation5 + $0x100] sm:$0xff]
    %v673 = vld [vmem:[#allocation5 + $0x108] sm:$0xff]
    %v674 = vld [vmem:[#allocation5 + $0x110] sm:$0xff]
    %v675 = vld [vmem:[#allocation5 + $0x118] sm:$0xff]
    %v676 = vld [vmem:[#allocation5 + $0x120] sm:$0xff]
    %v677 = vld [vmem:[#allocation5 + $0x128] sm:$0xff]
    %v678 = vld [vmem:[#allocation5 + $0x130] sm:$0xff]
    %v679 = vld [vmem:[#allocation5 + $0x138] sm:$0xff]
    %v680 = vld [vmem:[#allocation5 + $0x140] sm:$0xff]
    %v681 = vld [vmem:[#allocation5 + $0x148] sm:$0xff]
    %v682 = vld [vmem:[#allocation5 + $0x150] sm:$0xff]
    %v683 = vld [vmem:[#allocation5 + $0x158] sm:$0xff]
    %v684 = vld [vmem:[#allocation5 + $0x160] sm:$0xff]
    %v685 = vld [vmem:[#allocation5 + $0x168] sm:$0xff]
    %v686 = vld [vmem:[#allocation5 + $0x170] sm:$0xff]
    %v687 = vld [vmem:[#allocation5 + $0x178] sm:$0xff]
    %v688 = vld [vmem:[#allocation5 + $0x180] sm:$0xff]
    %v689 = vld [vmem:[#allocation5 + $0x188] sm:$0xff]
    %v690 = vld [vmem:[#allocation5 + $0x190] sm:$0xff]
    %v691 = vld [vmem:[#allocation5 + $0x198] sm:$0xff]
    %v692 = vld [vmem:[#allocation5 + $0x1a0] sm:$0xff]
    %v693 = vld [vmem:[#allocation5 + $0x1a8] sm:$0xff]
    %v694 = vld [vmem:[#allocation5 + $0x1b0] sm:$0xff]
    %v695 = vld [vmem:[#allocation5 + $0x1b8] sm:$0xff]
    %v696 = vld [vmem:[#allocation5 + $0x1c0] sm:$0xff]
    %v697 = vld [vmem:[#allocation5 + $0x1c8] sm:$0xff]
    %v698 = vld [vmem:[#allocation5 + $0x1d0] sm:$0xff]
    %v699 = vld [vmem:[#allocation5 + $0x1d8] sm:$0xff]
    %v700 = vld [vmem:[#allocation5 + $0x1e0] sm:$0xff]
    %v701 = vld [vmem:[#allocation5 + $0x1e8] sm:$0xff]
    %v702 = vld [vmem:[#allocation5 + $0x1f0] sm:$0xff]
    %v703 = vld [vmem:[#allocation5 + $0x1f8] sm:$0xff]
    %v704 = vld [vmem:[#allocation5 + $0x200] sm:$0xff]
    %v705 = vld [vmem:[#allocation5 + $0x208] sm:$0xff]
    %v706 = vld [vmem:[#allocation5 + $0x210] sm:$0xff]
    %v707 = vld [vmem:[#allocation5 + $0x218] sm:$0xff]
    %v708 = vld [vmem:[#allocation5 + $0x220] sm:$0xff]
    %v709 = vld [vmem:[#allocation5 + $0x228] sm:$0xff]
    %v710 = vld [vmem:[#allocation5 + $0x230] sm:$0xff]
    %v711 = vld [vmem:[#allocation5 + $0x238] sm:$0xff]
    %v712 = vld [vmem:[#allocation5 + $0x240] sm:$0xff]
    %v713 = vld [vmem:[#allocation5 + $0x248] sm:$0xff]
    %v714 = vld [vmem:[#allocation5 + $0x250] sm:$0xff]
    %v715 = vld [vmem:[#allocation5 + $0x258] sm:$0xff]
    %v716 = vld [vmem:[#allocation5 + $0x260] sm:$0xff]
    %v717 = vld [vmem:[#allocation5 + $0x268] sm:$0xff]
    %v718 = vld [vmem:[#allocation5 + $0x270] sm:$0xff]
    %v719 = vld [vmem:[#allocation5 + $0x278] sm:$0xff]
    %v720 = vld [vmem:[#allocation5 + $0x280] sm:$0xff]
    %v721 = vld [vmem:[#allocation5 + $0x288] sm:$0xff]
    %v722 = vld [vmem:[#allocation5 + $0x290] sm:$0xff]
    %v723 = vld [vmem:[#allocation5 + $0x298] sm:$0xff]
    %v724 = vld [vmem:[#allocation5 + $0x2a0] sm:$0xff]
    %v725 = vld [vmem:[#allocation5 + $0x2a8] sm:$0xff]
    %v726 = vld [vmem:[#allocation5 + $0x2b0] sm:$0xff]
    %v727 = vld [vmem:[#allocation5 + $0x2b8] sm:$0xff]
    %v728 = vld [vmem:[#allocation5 + $0x2c0] sm:$0xff]
    %v729 = vld [vmem:[#allocation5 + $0x2c8] sm:$0xff]
    %v730 = vld [vmem:[#allocation5 + $0x2d0] sm:$0xff]
    %v731 = vld [vmem:[#allocation5 + $0x2d8] sm:$0xff]
    %v732 = vld [vmem:[#allocation5 + $0x2e0] sm:$0xff]
    %v733 = vld [vmem:[#allocation5 + $0x2e8] sm:$0xff]
    %v734 = vld [vmem:[#allocation5 + $0x2f0] sm:$0xff]
    %v735 = vld [vmem:[#allocation5 + $0x2f8] sm:$0xff]
    %v736 = vld [vmem:[#allocation5 + $0x300] sm:$0xff]
    %v737 = vld [vmem:[#allocation5 + $0x308] sm:$0xff]
    %v738 = vld [vmem:[#allocation5 + $0x310] sm:$0xff]
    %v739 = vld [vmem:[#allocation5 + $0x318] sm:$0xff]
    %v740 = vld [vmem:[#allocation5 + $0x320] sm:$0xff]
    %v741 = vld [vmem:[#allocation5 + $0x328] sm:$0xff]
    %v742 = vld [vmem:[#allocation5 + $0x330] sm:$0xff]
    %v743 = vld [vmem:[#allocation5 + $0x338] sm:$0xff]
    %v744 = vld [vmem:[#allocation5 + $0x340] sm:$0xff]
    %v745 = vld [vmem:[#allocation5 + $0x348] sm:$0xff]
    %v746 = vld [vmem:[#allocation5 + $0x350] sm:$0xff]
    %v747 = vld [vmem:[#allocation5 + $0x358] sm:$0xff]
    %v748 = vld [vmem:[#allocation5 + $0x360] sm:$0xff]
    %v749 = vld [vmem:[#allocation5 + $0x368] sm:$0xff]
    %v750 = vld [vmem:[#allocation5 + $0x370] sm:$0xff]
    %v751 = vld [vmem:[#allocation5 + $0x378] sm:$0xff]
    %v752 = vld [vmem:[#allocation5 + $0x380] sm:$0xff]
    %v753 = vld [vmem:[#allocation5 + $0x388] sm:$0xff]
    %v754 = vld [vmem:[#allocation5 + $0x390] sm:$0xff]
    %v755 = vld [vmem:[#allocation5 + $0x398] sm:$0xff]
    %v756 = vld [vmem:[#allocation5 + $0x3a0] sm:$0xff]
    %v757 = vld [vmem:[#allocation5 + $0x3a8] sm:$0xff]
    %v758 = vld [vmem:[#allocation5 + $0x3b0] sm:$0xff]
    %v759 = vld [vmem:[#allocation5 + $0x3b8] sm:$0xff]
    %v760 = vld [vmem:[#allocation5 + $0x3c0] sm:$0xff]
    %v761 = vld [vmem:[#allocation5 + $0x3c8] sm:$0xff]
    %v762 = vld [vmem:[#allocation5 + $0x3d0] sm:$0xff]
    %v763 = vld [vmem:[#allocation5 + $0x3d8] sm:$0xff]
    %v764 = vld [vmem:[#allocation5 + $0x3e0] sm:$0xff]
    %v765 = vld [vmem:[#allocation5 + $0x3e8] sm:$0xff]
    %v766 = vld [vmem:[#allocation5 + $0x3f0] sm:$0xff]
    %v767 = vld [vmem:[#allocation5 + $0x3f8] sm:$0xff]
    %v768 = vld [vmem:[%s5] sm:$0xf]
    %v770 = vlaneseq
    %v771 = vshrl.u32 %v770, 7
    %v772 = vsub.s32 0, %v771
    %v773 = vrot.slane %v768, %v772
    %v774 = vlaneseq
    %v775 = vshrl.u32 %v774, 7
    %v776 = vsub.s32 1, %v775
    %v777 = vrot.slane %v768, %v776
    %v778 = vlaneseq
    %v779 = vshrl.u32 %v778, 7
    %v780 = vsub.s32 2, %v779
    %v781 = vrot.slane %v768, %v780
    %v782 = vlaneseq
    %v783 = vshrl.u32 %v782, 7
    %v784 = vsub.s32 3, %v783
    %v785 = vrot.slane %v768, %v784
    %790 = vmatprep.subr.mxu0 %v701
    %791 = vmatpush1.msra.mxu0 %v700
    %792 = vmatprep.subr.mxu0 %v697
    %793 = vmatpush1.msra.mxu0 %v696
    %794 = vmatprep.subr.mxu0 %v693
    %795 = vmatpush1.msra.mxu0 %v692
    %796 = vmatprep.subr.mxu0 %v689
    %797 = vmatpush1.msra.mxu0 %v688
    %798 = vmatprep.subr.mxu0 %v685
    %799 = vmatpush1.msra.mxu0 %v684
    %800 = vmatprep.subr.mxu0 %v681
    %801 = vmatpush1.msra.mxu0 %v680
    %802 = vmatprep.subr.mxu0 %v677
    %803 = vmatpush1.msra.mxu0 %v676
    %804 = vmatprep.subr.mxu0 %v673
    %805 = vmatpush1.msra.mxu0 %v672
    %806 = vmatprep.subr.mxu0 %v669
    %807 = vmatpush1.msra.mxu0 %v668
    %808 = vmatprep.subr.mxu0 %v665
    %809 = vmatpush1.msra.mxu0 %v664
    %810 = vmatprep.subr.mxu0 %v661
    %811 = vmatpush1.msra.mxu0 %v660
    %812 = vmatprep.subr.mxu0 %v657
    %813 = vmatpush1.msra.mxu0 %v656
    %814 = vmatprep.subr.mxu0 %v653
    %815 = vmatpush1.msra.mxu0 %v652
    %816 = vmatprep.subr.mxu0 %v649
    %817 = vmatpush1.msra.mxu0 %v648
    %818 = vmatprep.subr.mxu0 %v645
    %819 = vmatpush1.msra.mxu0 %v644
    %820 = vmatprep.subr.mxu0 %v641
    %821 = vmatpush1.msra.mxu0 %v640
    %822 = vmatprep.subr.mxu0 %v765
    %823 = vmatpush2.msra.mxu0 %v764
    %824 = vmatprep.subr.mxu0 %v761
    %825 = vmatpush2.msra.mxu0 %v760
    %826 = vmatprep.subr.mxu0 %v757
    %827 = vmatpush2.msra.mxu0 %v756
    %828 = vmatprep.subr.mxu0 %v753
    %829 = vmatpush2.msra.mxu0 %v752
    %830 = vmatprep.subr.mxu0 %v749
    %831 = vmatpush2.msra.mxu0 %v748
    %832 = vmatprep.subr.mxu0 %v745
    %833 = vmatpush2.msra.mxu0 %v744
    %834 = vmatprep.subr.mxu0 %v741
    %835 = vmatpush2.msra.mxu0 %v740
    %836 = vmatprep.subr.mxu0 %v737
    %837 = vmatpush2.msra.mxu0 %v736
    %838 = vmatprep.subr.mxu0 %v733
    %839 = vmatpush2.msra.mxu0 %v732
    %840 = vmatprep.subr.mxu0 %v729
    %841 = vmatpush2.msra.mxu0 %v728
    %842 = vmatprep.subr.mxu0 %v725
    %843 = vmatpush2.msra.mxu0 %v724
    %844 = vmatprep.subr.mxu0 %v721
    %845 = vmatpush2.msra.mxu0 %v720
    %846 = vmatprep.subr.mxu0 %v717
    %847 = vmatpush2.msra.mxu0 %v716
    %848 = vmatprep.subr.mxu0 %v713
    %849 = vmatpush2.msra.mxu0 %v712
    %850 = vmatprep.subr.mxu0 %v709
    %851 = vmatpush2.msra.mxu0 %v708
    %852 = vmatprep.subr.mxu0 %v705
    %853 = vmatpush2.msra.mxu0 %v704
    %854 = vmatprep.mubr.f32.mxu0 0.0
    %855 = vmatmul.mubr.f32.gmra.mxu0 %v639
    %v856 = vpop.f32.mrf.mxu0
    %v857 = vadd.f32 %v773, %v856
    %v858 = vpop.f32.mrf.mxu0
    %v859 = vadd.f32 %v777, %v858
    %860 = vdwg.mxu0
    %861 = vmatprep.subr.mxu0 %v703
    %862 = vmatpush1.msra.mxu0 %v702
    %863 = vmatprep.subr.mxu0 %v699
    %864 = vmatpush1.msra.mxu0 %v698
    %865 = vmatprep.subr.mxu0 %v695
    %866 = vmatpush1.msra.mxu0 %v694
    %867 = vmatprep.subr.mxu0 %v691
    %868 = vmatpush1.msra.mxu0 %v690
    %869 = vmatprep.subr.mxu0 %v687
    %870 = vmatpush1.msra.mxu0 %v686
    %871 = vmatprep.subr.mxu0 %v683
    %872 = vmatpush1.msra.mxu0 %v682
    %873 = vmatprep.subr.mxu0 %v679
    %874 = vmatpush1.msra.mxu0 %v678
    %875 = vmatprep.subr.mxu0 %v675
    %876 = vmatpush1.msra.mxu0 %v674
    %877 = vmatprep.subr.mxu0 %v671
    %878 = vmatpush1.msra.mxu0 %v670
    %879 = vmatprep.subr.mxu0 %v667
    %880 = vmatpush1.msra.mxu0 %v666
    %881 = vmatprep.subr.mxu0 %v663
    %882 = vmatpush1.msra.mxu0 %v662
    %883 = vmatprep.subr.mxu0 %v659
    %884 = vmatpush1.msra.mxu0 %v658
    %885 = vmatprep.subr.mxu0 %v655
    %886 = vmatpush1.msra.mxu0 %v654
    %887 = vmatprep.subr.mxu0 %v651
    %888 = vmatpush1.msra.mxu0 %v650
    %889 = vmatprep.subr.mxu0 %v647
    %890 = vmatpush1.msra.mxu0 %v646
    %891 = vmatprep.subr.mxu0 %v643
    %892 = vmatpush1.msra.mxu0 %v642
    %893 = vmatprep.subr.mxu0 %v767
    %894 = vmatpush2.msra.mxu0 %v766
    %895 = vmatprep.subr.mxu0 %v763
    %896 = vmatpush2.msra.mxu0 %v762
    %897 = vmatprep.subr.mxu0 %v759
    %898 = vmatpush2.msra.mxu0 %v758
    %899 = vmatprep.subr.mxu0 %v755
    %900 = vmatpush2.msra.mxu0 %v754
    %901 = vmatprep.subr.mxu0 %v751
    %902 = vmatpush2.msra.mxu0 %v750
    %903 = vmatprep.subr.mxu0 %v747
    %904 = vmatpush2.msra.mxu0 %v746
    %905 = vmatprep.subr.mxu0 %v743
    %906 = vmatpush2.msra.mxu0 %v742
    %907 = vmatprep.subr.mxu0 %v739
    %908 = vmatpush2.msra.mxu0 %v738
    %909 = vmatprep.subr.mxu0 %v735
    %910 = vmatpush2.msra.mxu0 %v734
    %911 = vmatprep.subr.mxu0 %v731
    %912 = vmatpush2.msra.mxu0 %v730
    %913 = vmatprep.subr.mxu0 %v727
    %914 = vmatpush2.msra.mxu0 %v726
    %915 = vmatprep.subr.mxu0 %v723
    %916 = vmatpush2.msra.mxu0 %v722
    %917 = vmatprep.subr.mxu0 %v719
    %918 = vmatpush2.msra.mxu0 %v718
    %919 = vmatprep.subr.mxu0 %v715
    %920 = vmatpush2.msra.mxu0 %v714
    %921 = vmatprep.subr.mxu0 %v711
    %922 = vmatpush2.msra.mxu0 %v710
    %923 = vmatprep.subr.mxu0 %v707
    %924 = vmatpush2.msra.mxu0 %v706
    %925 = vmatprep.mubr.f32.mxu0 0.0
    %926 = vmatmul.mubr.f32.gmra.mxu0 %v639
    %v927 = vpop.f32.mrf.mxu0
    %v928 = vadd.f32 %v781, %v927
    %v929 = vpop.f32.mrf.mxu0
    %v930 = vadd.f32 %v785, %v929
    %931 = vdwg.mxu0
    %v932 = vxor.u32 %v857, 2147483648
    %v933 = vmul.f32 %v932, 1.442695
    %v934 = vpow.pop %v933
    %v935 = vadd.f32 %v934, 1.0
    %v936 = vrcp.pop %v935
    %v937 = vmul.f32 1.0, %v936
    %v938 = vxor.u32 %v859, 2147483648
    %v939 = vmul.f32 %v938, 1.442695
    %v940 = vpow.pop %v939
    %v941 = vadd.f32 %v940, 1.0
    %v942 = vrcp.pop %v941
    %v943 = vmul.f32 1.0, %v942
    %v944 = vtanh.pop %v928
    %v945 = vxor.u32 %v930, 2147483648
    %v946 = vmul.f32 %v945, 1.442695
    %v947 = vpow.pop %v946
    %v948 = vadd.f32 %v947, 1.0
    %v949 = vrcp.pop %v948
    %v950 = vmul.f32 1.0, %v949
    %v951 = vmul.f32 %v943, 0.0
    %v952 = vmul.f32 %v937, %v944
    %v953 = vadd.f32 %v951, %v952
    %v954 = vtanh.pop %v953
    %v955 = vmul.f32 %v950, %v954
    %s956 = smul.u32 1, 4
    %s957 = smul.addr %s956, 8
    %s958 = scalar_lea.vmem [#allocation2], %s957
    %v959 = vld [vmem:[%s958] sm:$0xff]
    %v960 = vld [vmem:[%s958 + $0x8] sm:$0xff]
    %v961 = vld [vmem:[%s958 + $0x10] sm:$0xff]
    %v962 = vld [vmem:[%s958 + $0x18] sm:$0xff]
    %963 = vmatprep.subr.mxu0 %v467
    %964 = vmatpush1.msra.mxu0 %v466
    %965 = vmatprep.subr.mxu0 %v463
    %966 = vmatpush1.msra.mxu0 %v462
    %967 = vmatprep.subr.mxu0 %v459
    %968 = vmatpush1.msra.mxu0 %v458
    %969 = vmatprep.subr.mxu0 %v455
    %970 = vmatpush1.msra.mxu0 %v454
    %971 = vmatprep.subr.mxu0 %v451
    %972 = vmatpush1.msra.mxu0 %v450
    %973 = vmatprep.subr.mxu0 %v447
    %974 = vmatpush1.msra.mxu0 %v446
    %975 = vmatprep.subr.mxu0 %v443
    %976 = vmatpush1.msra.mxu0 %v442
    %977 = vmatprep.subr.mxu0 %v439
    %978 = vmatpush1.msra.mxu0 %v438
    %979 = vmatprep.subr.mxu0 %v435
    %980 = vmatpush1.msra.mxu0 %v434
    %981 = vmatprep.subr.mxu0 %v431
    %982 = vmatpush1.msra.mxu0 %v430
    %983 = vmatprep.subr.mxu0 %v427
    %984 = vmatpush1.msra.mxu0 %v426
    %985 = vmatprep.subr.mxu0 %v423
    %986 = vmatpush1.msra.mxu0 %v422
    %987 = vmatprep.subr.mxu0 %v419
    %988 = vmatpush1.msra.mxu0 %v418
    %989 = vmatprep.subr.mxu0 %v415
    %990 = vmatpush1.msra.mxu0 %v414
    %991 = vmatprep.subr.mxu0 %v411
    %992 = vmatpush1.msra.mxu0 %v410
    %993 = vmatprep.subr.mxu0 %v407
    %994 = vmatpush1.msra.mxu0 %v406
    %995 = vmatprep.subr.mxu0 0.0
    %996 = vmatpush2.msra.mxu0 0.0
    %997 = vmatprep.subr.mxu0 0.0
    %998 = vmatpush2.msra.mxu0 0.0
    %999 = vmatprep.subr.mxu0 0.0
    %1000 = vmatpush2.msra.mxu0 0.0
    %1001 = vmatprep.subr.mxu0 0.0
    %1002 = vmatpush2.msra.mxu0 0.0
    %1003 = vmatprep.subr.mxu0 0.0
    %1004 = vmatpush2.msra.mxu0 0.0
    %1005 = vmatprep.subr.mxu0 0.0
    %1006 = vmatpush2.msra.mxu0 0.0
    %1007 = vmatprep.subr.mxu0 0.0
    %1008 = vmatpush2.msra.mxu0 0.0
    %1009 = vmatprep.subr.mxu0 0.0
    %1010 = vmatpush2.msra.mxu0 0.0
    %1011 = vmatprep.subr.mxu0 0.0
    %1012 = vmatpush2.msra.mxu0 0.0
    %1013 = vmatprep.subr.mxu0 0.0
    %1014 = vmatpush2.msra.mxu0 0.0
    %1015 = vmatprep.subr.mxu0 0.0
    %1016 = vmatpush2.msra.mxu0 0.0
    %1017 = vmatprep.subr.mxu0 0.0
    %1018 = vmatpush2.msra.mxu0 0.0
    %1019 = vmatprep.subr.mxu0 0.0
    %1020 = vmatpush2.msra.mxu0 0.0
    %1021 = vmatprep.subr.mxu0 0.0
    %1022 = vmatpush2.msra.mxu0 0.0
    %1023 = vmatprep.subr.mxu0 0.0
    %1024 = vmatpush2.msra.mxu0 0.0
    %1025 = vmatprep.subr.mxu0 0.0
    %1026 = vmatpush2.msra.mxu0 0.0
    %1027 = vmatprep.mubr.f32.mxu0 0.0
    %1028 = vmatmul.mubr.f32.gmra.mxu0 %v639
    %v1029 = vpop.f32.mrf.mxu0
    %v1030 = vadd.f32 0.0, %v1029
    %v1031 = vpop.f32.mrf.mxu0
    %v1032 = vadd.f32 0.0, %v1031
    %1033 = vdwg.mxu0
    %1034 = vmatprep.subr.mxu0 %v469
    %1035 = vmatpush1.msra.mxu0 %v468
    %1036 = vmatprep.subr.mxu0 %v465
    %1037 = vmatpush1.msra.mxu0 %v464
    %1038 = vmatprep.subr.mxu0 %v461
    %1039 = vmatpush1.msra.mxu0 %v460
    %1040 = vmatprep.subr.mxu0 %v457
    %1041 = vmatpush1.msra.mxu0 %v456
    %1042 = vmatprep.subr.mxu0 %v453
    %1043 = vmatpush1.msra.mxu0 %v452
    %1044 = vmatprep.subr.mxu0 %v449
    %1045 = vmatpush1.msra.mxu0 %v448
    %1046 = vmatprep.subr.mxu0 %v445
    %1047 = vmatpush1.msra.mxu0 %v444
    %1048 = vmatprep.subr.mxu0 %v441
    %1049 = vmatpush1.msra.mxu0 %v440
    %1050 = vmatprep.subr.mxu0 %v437
    %1051 = vmatpush1.msra.mxu0 %v436
    %1052 = vmatprep.subr.mxu0 %v433
    %1053 = vmatpush1.msra.mxu0 %v432
    %1054 = vmatprep.subr.mxu0 %v429
    %1055 = vmatpush1.msra.mxu0 %v428
    %1056 = vmatprep.subr.mxu0 %v425
    %1057 = vmatpush1.msra.mxu0 %v424
    %1058 = vmatprep.subr.mxu0 %v421
    %1059 = vmatpush1.msra.mxu0 %v420
    %1060 = vmatprep.subr.mxu0 %v417
    %1061 = vmatpush1.msra.mxu0 %v416
    %1062 = vmatprep.subr.mxu0 %v413
    %1063 = vmatpush1.msra.mxu0 %v412
    %1064 = vmatprep.subr.mxu0 %v409
    %1065 = vmatpush1.msra.mxu0 %v408
    %1066 = vmatprep.subr.mxu0 0.0
    %1067 = vmatpush2.msra.mxu0 0.0
    %1068 = vmatprep.subr.mxu0 0.0
    %1069 = vmatpush2.msra.mxu0 0.0
    %1070 = vmatprep.subr.mxu0 0.0
    %1071 = vmatpush2.msra.mxu0 0.0
    %1072 = vmatprep.subr.mxu0 0.0
    %1073 = vmatpush2.msra.mxu0 0.0
    %1074 = vmatprep.subr.mxu0 0.0
    %1075 = vmatpush2.msra.mxu0 0.0
    %1076 = vmatprep.subr.mxu0 0.0
    %1077 = vmatpush2.msra.mxu0 0.0
    %1078 = vmatprep.subr.mxu0 0.0
    %1079 = vmatpush2.msra.mxu0 0.0
    %1080 = vmatprep.subr.mxu0 0.0
    %1081 = vmatpush2.msra.mxu0 0.0
    %1082 = vmatprep.subr.mxu0 0.0
    %1083 = vmatpush2.msra.mxu0 0.0
    %1084 = vmatprep.subr.mxu0 0.0
    %1085 = vmatpush2.msra.mxu0 0.0
    %1086 = vmatprep.subr.mxu0 0.0
    %1087 = vmatpush2.msra.mxu0 0.0
    %1088 = vmatprep.subr.mxu0 0.0
    %1089 = vmatpush2.msra.mxu0 0.0
    %1090 = vmatprep.subr.mxu0 0.0
    %1091 = vmatpush2.msra.mxu0 0.0
    %1092 = vmatprep.subr.mxu0 0.0
    %1093 = vmatpush2.msra.mxu0 0.0
    %1094 = vmatprep.subr.mxu0 0.0
    %1095 = vmatpush2.msra.mxu0 0.0
    %1096 = vmatprep.subr.mxu0 0.0
    %1097 = vmatpush2.msra.mxu0 0.0
    %1098 = vmatprep.mubr.f32.mxu0 0.0
    %1099 = vmatmul.mubr.f32.gmra.mxu0 %v639
    %v1100 = vpop.f32.mrf.mxu0
    %v1101 = vadd.f32 0.0, %v1100
    %v1102 = vpop.f32.mrf.mxu0
    %v1103 = vadd.f32 0.0, %v1102
    %1104 = vdwg.mxu0
    %v1105 = vadd.f32 %v959, %v1030
    %v1106 = vadd.f32 %v960, %v1032
    %v1107 = vadd.f32 %v961, %v1101
    %v1108 = vadd.f32 %v962, %v1103
    %v1109 = vxor.u32 %v1105, 2147483648
    %v1110 = vmul.f32 %v1109, 1.442695
    %v1111 = vpow.pop %v1110
    %v1112 = vadd.f32 %v1111, 1.0
    %v1113 = vrcp.pop %v1112
    %v1114 = vmul.f32 1.0, %v1113
    %v1115 = vxor.u32 %v1106, 2147483648
    %v1116 = vmul.f32 %v1115, 1.442695
    %v1117 = vpow.pop %v1116
    %v1118 = vadd.f32 %v1117, 1.0
    %v1119 = vrcp.pop %v1118
    %v1120 = vmul.f32 1.0, %v1119
    %v1121 = vtanh.pop %v1107
    %v1122 = vxor.u32 %v1108, 2147483648
    %v1123 = vmul.f32 %v1122, 1.442695
    %v1124 = vpow.pop %v1123
    %v1125 = vadd.f32 %v1124, 1.0
    %v1126 = vrcp.pop %v1125
    %v1127 = vmul.f32 1.0, %v1126
    %v1128 = vmul.f32 %v1120, %v637
    %v1129 = vmul.f32 %v1114, %v1121
    %v1130 = vadd.f32 %v1128, %v1129
    %v1131 = vtanh.pop %v1130
    %v1132 = vmul.f32 %v1127, %v1131
    %1133 = vmatprep.subr.mxu0 %v701
    %1134 = vmatpush1.msra.mxu0 %v700
    %1135 = vmatprep.subr.mxu0 %v697
    %1136 = vmatpush1.msra.mxu0 %v696
    %1137 = vmatprep.subr.mxu0 %v693
    %1138 = vmatpush1.msra.mxu0 %v692
    %1139 = vmatprep.subr.mxu0 %v689
    %1140 = vmatpush1.msra.mxu0 %v688
    %1141 = vmatprep.subr.mxu0 %v685
    %1142 = vmatpush1.msra.mxu0 %v684
    %1143 = vmatprep.subr.mxu0 %v681
    %1144 = vmatpush1.msra.mxu0 %v680
    %1145 = vmatprep.subr.mxu0 %v677
    %1146 = vmatpush1.msra.mxu0 %v676
    %1147 = vmatprep.subr.mxu0 %v673
    %1148 = vmatpush1.msra.mxu0 %v672
    %1149 = vmatprep.subr.mxu0 %v669
    %1150 = vmatpush1.msra.mxu0 %v668
    %1151 = vmatprep.subr.mxu0 %v665
    %1152 = vmatpush1.msra.mxu0 %v664
    %1153 = vmatprep.subr.mxu0 %v661
    %1154 = vmatpush1.msra.mxu0 %v660
    %1155 = vmatprep.subr.mxu0 %v657
    %1156 = vmatpush1.msra.mxu0 %v656
    %1157 = vmatprep.subr.mxu0 %v653
    %1158 = vmatpush1.msra.mxu0 %v652
    %1159 = vmatprep.subr.mxu0 %v649
    %1160 = vmatpush1.msra.mxu0 %v648
    %1161 = vmatprep.subr.mxu0 %v645
    %1162 = vmatpush1.msra.mxu0 %v644
    %1163 = vmatprep.subr.mxu0 %v641
    %1164 = vmatpush1.msra.mxu0 %v640
    %1165 = vmatprep.subr.mxu0 %v765
    %1166 = vmatpush2.msra.mxu0 %v764
    %1167 = vmatprep.subr.mxu0 %v761
    %1168 = vmatpush2.msra.mxu0 %v760
    %1169 = vmatprep.subr.mxu0 %v757
    %1170 = vmatpush2.msra.mxu0 %v756
    %1171 = vmatprep.subr.mxu0 %v753
    %1172 = vmatpush2.msra.mxu0 %v752
    %1173 = vmatprep.subr.mxu0 %v749
    %1174 = vmatpush2.msra.mxu0 %v748
    %1175 = vmatprep.subr.mxu0 %v745
    %1176 = vmatpush2.msra.mxu0 %v744
    %1177 = vmatprep.subr.mxu0 %v741
    %1178 = vmatpush2.msra.mxu0 %v740
    %1179 = vmatprep.subr.mxu0 %v737
    %1180 = vmatpush2.msra.mxu0 %v736
    %1181 = vmatprep.subr.mxu0 %v733
    %1182 = vmatpush2.msra.mxu0 %v732
    %1183 = vmatprep.subr.mxu0 %v729
    %1184 = vmatpush2.msra.mxu0 %v728
    %1185 = vmatprep.subr.mxu0 %v725
    %1186 = vmatpush2.msra.mxu0 %v724
    %1187 = vmatprep.subr.mxu0 %v721
    %1188 = vmatpush2.msra.mxu0 %v720
    %1189 = vmatprep.subr.mxu0 %v717
    %1190 = vmatpush2.msra.mxu0 %v716
    %1191 = vmatprep.subr.mxu0 %v713
    %1192 = vmatpush2.msra.mxu0 %v712
    %1193 = vmatprep.subr.mxu0 %v709
    %1194 = vmatpush2.msra.mxu0 %v708
    %1195 = vmatprep.subr.mxu0 %v705
    %1196 = vmatpush2.msra.mxu0 %v704
    %1197 = vmatprep.mubr.f32.mxu0 %v955
    %1198 = vmatmul.mubr.f32.gmra.mxu0 %v1132
    %v1199 = vpop.f32.mrf.mxu0
    %v1200 = vadd.f32 %v773, %v1199
    %v1201 = vpop.f32.mrf.mxu0
    %v1202 = vadd.f32 %v777, %v1201
    %1203 = vdwg.mxu0
    %1204 = vmatprep.subr.mxu0 %v703
    %1205 = vmatpush1.msra.mxu0 %v702
    %1206 = vmatprep.subr.mxu0 %v699
    %1207 = vmatpush1.msra.mxu0 %v698
    %1208 = vmatprep.subr.mxu0 %v695
    %1209 = vmatpush1.msra.mxu0 %v694
    %1210 = vmatprep.subr.mxu0 %v691
    %1211 = vmatpush1.msra.mxu0 %v690
    %1212 = vmatprep.subr.mxu0 %v687
    %1213 = vmatpush1.msra.mxu0 %v686
    %1214 = vmatprep.subr.mxu0 %v683
    %1215 = vmatpush1.msra.mxu0 %v682
    %1216 = vmatprep.subr.mxu0 %v679
    %1217 = vmatpush1.msra.mxu0 %v678
    %1218 = vmatprep.subr.mxu0 %v675
    %1219 = vmatpush1.msra.mxu0 %v674
    %1220 = vmatprep.subr.mxu0 %v671
    %1221 = vmatpush1.msra.mxu0 %v670
    %1222 = vmatprep.subr.mxu0 %v667
    %1223 = vmatpush1.msra.mxu0 %v666
    %1224 = vmatprep.subr.mxu0 %v663
    %1225 = vmatpush1.msra.mxu0 %v662
    %1226 = vmatprep.subr.mxu0 %v659
    %1227 = vmatpush1.msra.mxu0 %v658
    %1228 = vmatprep.subr.mxu0 %v655
    %1229 = vmatpush1.msra.mxu0 %v654
    %1230 = vmatprep.subr.mxu0 %v651
    %1231 = vmatpush1.msra.mxu0 %v650
    %1232 = vmatprep.subr.mxu0 %v647
    %1233 = vmatpush1.msra.mxu0 %v646
    %1234 = vmatprep.subr.mxu0 %v643
    %1235 = vmatpush1.msra.mxu0 %v642
    %1236 = vmatprep.subr.mxu0 %v767
    %1237 = vmatpush2.msra.mxu0 %v766
    %1238 = vmatprep.subr.mxu0 %v763
    %1239 = vmatpush2.msra.mxu0 %v762
    %1240 = vmatprep.subr.mxu0 %v759
    %1241 = vmatpush2.msra.mxu0 %v758
    %1242 = vmatprep.subr.mxu0 %v755
    %1243 = vmatpush2.msra.mxu0 %v754
    %1244 = vmatprep.subr.mxu0 %v751
    %1245 = vmatpush2.msra.mxu0 %v750
    %1246 = vmatprep.subr.mxu0 %v747
    %1247 = vmatpush2.msra.mxu0 %v746
    %1248 = vmatprep.subr.mxu0 %v743
    %1249 = vmatpush2.msra.mxu0 %v742
    %1250 = vmatprep.subr.mxu0 %v739
    %1251 = vmatpush2.msra.mxu0 %v738
    %1252 = vmatprep.subr.mxu0 %v735
    %1253 = vmatpush2.msra.mxu0 %v734
    %1254 = vmatprep.subr.mxu0 %v731
    %1255 = vmatpush2.msra.mxu0 %v730
    %1256 = vmatprep.subr.mxu0 %v727
    %1257 = vmatpush2.msra.mxu0 %v726
    %1258 = vmatprep.subr.mxu0 %v723
    %1259 = vmatpush2.msra.mxu0 %v722
    %1260 = vmatprep.subr.mxu0 %v719
    %1261 = vmatpush2.msra.mxu0 %v718
    %1262 = vmatprep.subr.mxu0 %v715
    %1263 = vmatpush2.msra.mxu0 %v714
    %1264 = vmatprep.subr.mxu0 %v711
    %1265 = vmatpush2.msra.mxu0 %v710
    %1266 = vmatprep.subr.mxu0 %v707
    %1267 = vmatpush2.msra.mxu0 %v706
    %1268 = vmatprep.mubr.f32.mxu0 %v955
    %1269 = vmatmul.mubr.f32.gmra.mxu0 %v1132
    %v1270 = vpop.f32.mrf.mxu0
    %v1271 = vadd.f32 %v781, %v1270
    %v1272 = vpop.f32.mrf.mxu0
    %v1273 = vadd.f32 %v785, %v1272
    %1274 = vdwg.mxu0
    %v1275 = vxor.u32 %v1200, 2147483648
    %v1276 = vmul.f32 %v1275, 1.442695
    %v1277 = vpow.pop %v1276
    %v1278 = vadd.f32 %v1277, 1.0
    %v1279 = vrcp.pop %v1278
    %v1280 = vmul.f32 1.0, %v1279
    %v1281 = vxor.u32 %v1202, 2147483648
    %v1282 = vmul.f32 %v1281, 1.442695
    %v1283 = vpow.pop %v1282
    %v1284 = vadd.f32 %v1283, 1.0
    %v1285 = vrcp.pop %v1284
    %v1286 = vmul.f32 1.0, %v1285
    %v1287 = vtanh.pop %v1271
    %v1288 = vxor.u32 %v1273, 2147483648
    %v1289 = vmul.f32 %v1288, 1.442695
    %v1290 = vpow.pop %v1289
    %v1291 = vadd.f32 %v1290, 1.0
    %v1292 = vrcp.pop %v1291
    %v1293 = vmul.f32 1.0, %v1292
    %v1294 = vmul.f32 %v1286, %v953
    %v1295 = vmul.f32 %v1280, %v1287
    %v1296 = vadd.f32 %v1294, %v1295
    %v1297 = vtanh.pop %v1296
    %v1298 = vmul.f32 %v1293, %v1297
    %s1299 = smul.u32 2, 4
    %s1300 = smul.addr %s1299, 8
    %s1301 = scalar_lea.vmem [#allocation2], %s1300
    %v1302 = vld [vmem:[%s1301] sm:$0xff]
    %v1303 = vld [vmem:[%s1301 + $0x8] sm:$0xff]
    %v1304 = vld [vmem:[%s1301 + $0x10] sm:$0xff]
    %v1305 = vld [vmem:[%s1301 + $0x18] sm:$0xff]
    %1306 = vmatprep.subr.mxu0 %v467
    %1307 = vmatpush1.msra.mxu0 %v466
    %1308 = vmatprep.subr.mxu0 %v463
    %1309 = vmatpush1.msra.mxu0 %v462
    %1310 = vmatprep.subr.mxu0 %v459
    %1311 = vmatpush1.msra.mxu0 %v458
    %1312 = vmatprep.subr.mxu0 %v455
    %1313 = vmatpush1.msra.mxu0 %v454
    %1314 = vmatprep.subr.mxu0 %v451
    %1315 = vmatpush1.msra.mxu0 %v450
    %1316 = vmatprep.subr.mxu0 %v447
    %1317 = vmatpush1.msra.mxu0 %v446
    %1318 = vmatprep.subr.mxu0 %v443
    %1319 = vmatpush1.msra.mxu0 %v442
    %1320 = vmatprep.subr.mxu0 %v439
    %1321 = vmatpush1.msra.mxu0 %v438
    %1322 = vmatprep.subr.mxu0 %v435
    %1323 = vmatpush1.msra.mxu0 %v434
    %1324 = vmatprep.subr.mxu0 %v431
    %1325 = vmatpush1.msra.mxu0 %v430
    %1326 = vmatprep.subr.mxu0 %v427
    %1327 = vmatpush1.msra.mxu0 %v426
    %1328 = vmatprep.subr.mxu0 %v423
    %1329 = vmatpush1.msra.mxu0 %v422
    %1330 = vmatprep.subr.mxu0 %v419
    %1331 = vmatpush1.msra.mxu0 %v418
    %1332 = vmatprep.subr.mxu0 %v415
    %1333 = vmatpush1.msra.mxu0 %v414
    %1334 = vmatprep.subr.mxu0 %v411
    %1335 = vmatpush1.msra.mxu0 %v410
    %1336 = vmatprep.subr.mxu0 %v407
    %1337 = vmatpush1.msra.mxu0 %v406
    %1338 = vmatprep.subr.mxu0 0.0
    %1339 = vmatpush2.msra.mxu0 0.0
    %1340 = vmatprep.subr.mxu0 0.0
    %1341 = vmatpush2.msra.mxu0 0.0
    %1342 = vmatprep.subr.mxu0 0.0
    %1343 = vmatpush2.msra.mxu0 0.0
    %1344 = vmatprep.subr.mxu0 0.0
    %1345 = vmatpush2.msra.mxu0 0.0
    %1346 = vmatprep.subr.mxu0 0.0
    %1347 = vmatpush2.msra.mxu0 0.0
    %1348 = vmatprep.subr.mxu0 0.0
    %1349 = vmatpush2.msra.mxu0 0.0
    %1350 = vmatprep.subr.mxu0 0.0
    %1351 = vmatpush2.msra.mxu0 0.0
    %1352 = vmatprep.subr.mxu0 0.0
    %1353 = vmatpush2.msra.mxu0 0.0
    %1354 = vmatprep.subr.mxu0 0.0
    %1355 = vmatpush2.msra.mxu0 0.0
    %1356 = vmatprep.subr.mxu0 0.0
    %1357 = vmatpush2.msra.mxu0 0.0
    %1358 = vmatprep.subr.mxu0 0.0
    %1359 = vmatpush2.msra.mxu0 0.0
    %1360 = vmatprep.subr.mxu0 0.0
    %1361 = vmatpush2.msra.mxu0 0.0
    %1362 = vmatprep.subr.mxu0 0.0
    %1363 = vmatpush2.msra.mxu0 0.0
    %1364 = vmatprep.subr.mxu0 0.0
    %1365 = vmatpush2.msra.mxu0 0.0
    %1366 = vmatprep.subr.mxu0 0.0
    %1367 = vmatpush2.msra.mxu0 0.0
    %1368 = vmatprep.subr.mxu0 0.0
    %1369 = vmatpush2.msra.mxu0 0.0
    %1370 = vmatprep.mubr.f32.mxu0 0.0
    %1371 = vmatmul.mubr.f32.gmra.mxu0 %v1132
    %v1372 = vpop.f32.mrf.mxu0
    %v1373 = vadd.f32 0.0, %v1372
    %v1374 = vpop.f32.mrf.mxu0
    %v1375 = vadd.f32 0.0, %v1374
    %1376 = vdwg.mxu0
    %1377 = vmatprep.subr.mxu0 %v469
    %1378 = vmatpush1.msra.mxu0 %v468
    %1379 = vmatprep.subr.mxu0 %v465
    %1380 = vmatpush1.msra.mxu0 %v464
    %1381 = vmatprep.subr.mxu0 %v461
    %1382 = vmatpush1.msra.mxu0 %v460
    %1383 = vmatprep.subr.mxu0 %v457
    %1384 = vmatpush1.msra.mxu0 %v456
    %1385 = vmatprep.subr.mxu0 %v453
    %1386 = vmatpush1.msra.mxu0 %v452
    %1387 = vmatprep.subr.mxu0 %v449
    %1388 = vmatpush1.msra.mxu0 %v448
    %1389 = vmatprep.subr.mxu0 %v445
    %1390 = vmatpush1.msra.mxu0 %v444
    %1391 = vmatprep.subr.mxu0 %v441
    %1392 = vmatpush1.msra.mxu0 %v440
    %1393 = vmatprep.subr.mxu0 %v437
    %1394 = vmatpush1.msra.mxu0 %v436
    %1395 = vmatprep.subr.mxu0 %v433
    %1396 = vmatpush1.msra.mxu0 %v432
    %1397 = vmatprep.subr.mxu0 %v429
    %1398 = vmatpush1.msra.mxu0 %v428
    %1399 = vmatprep.subr.mxu0 %v425
    %1400 = vmatpush1.msra.mxu0 %v424
    %1401 = vmatprep.subr.mxu0 %v421
    %1402 = vmatpush1.msra.mxu0 %v420
    %1403 = vmatprep.subr.mxu0 %v417
    %1404 = vmatpush1.msra.mxu0 %v416
    %1405 = vmatprep.subr.mxu0 %v413
    %1406 = vmatpush1.msra.mxu0 %v412
    %1407 = vmatprep.subr.mxu0 %v409
    %1408 = vmatpush1.msra.mxu0 %v408
    %1409 = vmatprep.subr.mxu0 0.0
    %1410 = vmatpush2.msra.mxu0 0.0
    %1411 = vmatprep.subr.mxu0 0.0
    %1412 = vmatpush2.msra.mxu0 0.0
    %1413 = vmatprep.subr.mxu0 0.0
    %1414 = vmatpush2.msra.mxu0 0.0
    %1415 = vmatprep.subr.mxu0 0.0
    %1416 = vmatpush2.msra.mxu0 0.0
    %1417 = vmatprep.subr.mxu0 0.0
    %1418 = vmatpush2.msra.mxu0 0.0
    %1419 = vmatprep.subr.mxu0 0.0
    %1420 = vmatpush2.msra.mxu0 0.0
    %1421 = vmatprep.subr.mxu0 0.0
    %1422 = vmatpush2.msra.mxu0 0.0
    %1423 = vmatprep.subr.mxu0 0.0
    %1424 = vmatpush2.msra.mxu0 0.0
    %1425 = vmatprep.subr.mxu0 0.0
    %1426 = vmatpush2.msra.mxu0 0.0
    %1427 = vmatprep.subr.mxu0 0.0
    %1428 = vmatpush2.msra.mxu0 0.0
    %1429 = vmatprep.subr.mxu0 0.0
    %1430 = vmatpush2.msra.mxu0 0.0
    %1431 = vmatprep.subr.mxu0 0.0
    %1432 = vmatpush2.msra.mxu0 0.0
    %1433 = vmatprep.subr.mxu0 0.0
    %1434 = vmatpush2.msra.mxu0 0.0
    %1435 = vmatprep.subr.mxu0 0.0
    %1436 = vmatpush2.msra.mxu0 0.0
    %1437 = vmatprep.subr.mxu0 0.0
    %1438 = vmatpush2.msra.mxu0 0.0
    %1439 = vmatprep.subr.mxu0 0.0
    %1440 = vmatpush2.msra.mxu0 0.0
    %1441 = vmatprep.mubr.f32.mxu0 0.0
    %1442 = vmatmul.mubr.f32.gmra.mxu0 %v1132
    %v1443 = vpop.f32.mrf.mxu0
    %v1444 = vadd.f32 0.0, %v1443
    %v1445 = vpop.f32.mrf.mxu0
    %v1446 = vadd.f32 0.0, %v1445
    %1447 = vdwg.mxu0
    %v1448 = vadd.f32 %v1302, %v1373
    %v1449 = vadd.f32 %v1303, %v1375
    %v1450 = vadd.f32 %v1304, %v1444
    %v1451 = vadd.f32 %v1305, %v1446
    %v1452 = vxor.u32 %v1448, 2147483648
    %v1453 = vmul.f32 %v1452, 1.442695
    %v1454 = vpow.pop %v1453
    %v1455 = vadd.f32 %v1454, 1.0
    %v1456 = vrcp.pop %v1455
    %v1457 = vmul.f32 1.0, %v1456
    %v1458 = vxor.u32 %v1449, 2147483648
    %v1459 = vmul.f32 %v1458, 1.442695
    %v1460 = vpow.pop %v1459
    %v1461 = vadd.f32 %v1460, 1.0
    %v1462 = vrcp.pop %v1461
    %v1463 = vmul.f32 1.0, %v1462
    %v1464 = vtanh.pop %v1450
    %v1465 = vxor.u32 %v1451, 2147483648
    %v1466 = vmul.f32 %v1465, 1.442695
    %v1467 = vpow.pop %v1466
    %v1468 = vadd.f32 %v1467, 1.0
    %v1469 = vrcp.pop %v1468
    %v1470 = vmul.f32 1.0, %v1469
    %v1471 = vmul.f32 %v1463, %v1130
    %v1472 = vmul.f32 %v1457, %v1464
    %v1473 = vadd.f32 %v1471, %v1472
    %v1474 = vtanh.pop %v1473
    %v1475 = vmul.f32 %v1470, %v1474
    %1476 = vmatprep.subr.mxu0 %v701
    %1477 = vmatpush1.msra.mxu0 %v700
    %1478 = vmatprep.subr.mxu0 %v697
    %1479 = vmatpush1.msra.mxu0 %v696
    %1480 = vmatprep.subr.mxu0 %v693
    %1481 = vmatpush1.msra.mxu0 %v692
    %1482 = vmatprep.subr.mxu0 %v689
    %1483 = vmatpush1.msra.mxu0 %v688
    %1484 = vmatprep.subr.mxu0 %v685
    %1485 = vmatpush1.msra.mxu0 %v684
    %1486 = vmatprep.subr.mxu0 %v681
    %1487 = vmatpush1.msra.mxu0 %v680
    %1488 = vmatprep.subr.mxu0 %v677
    %1489 = vmatpush1.msra.mxu0 %v676
    %1490 = vmatprep.subr.mxu0 %v673
    %1491 = vmatpush1.msra.mxu0 %v672
    %1492 = vmatprep.subr.mxu0 %v669
    %1493 = vmatpush1.msra.mxu0 %v668
    %1494 = vmatprep.subr.mxu0 %v665
    %1495 = vmatpush1.msra.mxu0 %v664
    %1496 = vmatprep.subr.mxu0 %v661
    %1497 = vmatpush1.msra.mxu0 %v660
    %1498 = vmatprep.subr.mxu0 %v657
    %1499 = vmatpush1.msra.mxu0 %v656
    %1500 = vmatprep.subr.mxu0 %v653
    %1501 = vmatpush1.msra.mxu0 %v652
    %1502 = vmatprep.subr.mxu0 %v649
    %1503 = vmatpush1.msra.mxu0 %v648
    %1504 = vmatprep.subr.mxu0 %v645
    %1505 = vmatpush1.msra.mxu0 %v644
    %1506 = vmatprep.subr.mxu0 %v641
    %1507 = vmatpush1.msra.mxu0 %v640
    %1508 = vmatprep.subr.mxu0 %v765
    %1509 = vmatpush2.msra.mxu0 %v764
    %1510 = vmatprep.subr.mxu0 %v761
    %1511 = vmatpush2.msra.mxu0 %v760
    %1512 = vmatprep.subr.mxu0 %v757
    %1513 = vmatpush2.msra.mxu0 %v756
    %1514 = vmatprep.subr.mxu0 %v753
    %1515 = vmatpush2.msra.mxu0 %v752
    %1516 = vmatprep.subr.mxu0 %v749
    %1517 = vmatpush2.msra.mxu0 %v748
    %1518 = vmatprep.subr.mxu0 %v745
    %1519 = vmatpush2.msra.mxu0 %v744
    %1520 = vmatprep.subr.mxu0 %v741
    %1521 = vmatpush2.msra.mxu0 %v740
    %1522 = vmatprep.subr.mxu0 %v737
    %1523 = vmatpush2.msra.mxu0 %v736
    %1524 = vmatprep.subr.mxu0 %v733
    %1525 = vmatpush2.msra.mxu0 %v732
    %1526 = vmatprep.subr.mxu0 %v729
    %1527 = vmatpush2.msra.mxu0 %v728
    %1528 = vmatprep.subr.mxu0 %v725
    %1529 = vmatpush2.msra.mxu0 %v724
    %1530 = vmatprep.subr.mxu0 %v721
    %1531 = vmatpush2.msra.mxu0 %v720
    %1532 = vmatprep.subr.mxu0 %v717
    %1533 = vmatpush2.msra.mxu0 %v716
    %1534 = vmatprep.subr.mxu0 %v713
    %1535 = vmatpush2.msra.mxu0 %v712
    %1536 = vmatprep.subr.mxu0 %v709
    %1537 = vmatpush2.msra.mxu0 %v708
    %1538 = vmatprep.subr.mxu0 %v705
    %1539 = vmatpush2.msra.mxu0 %v704
    %1540 = vmatprep.mubr.f32.mxu0 %v1298
    %1541 = vmatmul.mubr.f32.gmra.mxu0 %v1475
    %v1542 = vpop.f32.mrf.mxu0
    %v1543 = vadd.f32 %v773, %v1542
    %v1544 = vpop.f32.mrf.mxu0
    %v1545 = vadd.f32 %v777, %v1544
    %1546 = vdwg.mxu0
    %1547 = vmatprep.subr.mxu0 %v703
    %1548 = vmatpush1.msra.mxu0 %v702
    %1549 = vmatprep.subr.mxu0 %v699
    %1550 = vmatpush1.msra.mxu0 %v698
    %1551 = vmatprep.subr.mxu0 %v695
    %1552 = vmatpush1.msra.mxu0 %v694
    %1553 = vmatprep.subr.mxu0 %v691
    %1554 = vmatpush1.msra.mxu0 %v690
    %1555 = vmatprep.subr.mxu0 %v687
    %1556 = vmatpush1.msra.mxu0 %v686
    %1557 = vmatprep.subr.mxu0 %v683
    %1558 = vmatpush1.msra.mxu0 %v682
    %1559 = vmatprep.subr.mxu0 %v679
    %1560 = vmatpush1.msra.mxu0 %v678
    %1561 = vmatprep.subr.mxu0 %v675
    %1562 = vmatpush1.msra.mxu0 %v674
    %1563 = vmatprep.subr.mxu0 %v671
    %1564 = vmatpush1.msra.mxu0 %v670
    %1565 = vmatprep.subr.mxu0 %v667
    %1566 = vmatpush1.msra.mxu0 %v666
    %1567 = vmatprep.subr.mxu0 %v663
    %1568 = vmatpush1.msra.mxu0 %v662
    %1569 = vmatprep.subr.mxu0 %v659
    %1570 = vmatpush1.msra.mxu0 %v658
    %1571 = vmatprep.subr.mxu0 %v655
    %1572 = vmatpush1.msra.mxu0 %v654
    %1573 = vmatprep.subr.mxu0 %v651
    %1574 = vmatpush1.msra.mxu0 %v650
    %1575 = vmatprep.subr.mxu0 %v647
    %1576 = vmatpush1.msra.mxu0 %v646
    %1577 = vmatprep.subr.mxu0 %v643
    %1578 = vmatpush1.msra.mxu0 %v642
    %1579 = vmatprep.subr.mxu0 %v767
    %1580 = vmatpush2.msra.mxu0 %v766
    %1581 = vmatprep.subr.mxu0 %v763
    %1582 = vmatpush2.msra.mxu0 %v762
    %1583 = vmatprep.subr.mxu0 %v759
    %1584 = vmatpush2.msra.mxu0 %v758
    %1585 = vmatprep.subr.mxu0 %v755
    %1586 = vmatpush2.msra.mxu0 %v754
    %1587 = vmatprep.subr.mxu0 %v751
    %1588 = vmatpush2.msra.mxu0 %v750
    %1589 = vmatprep.subr.mxu0 %v747
    %1590 = vmatpush2.msra.mxu0 %v746
    %1591 = vmatprep.subr.mxu0 %v743
    %1592 = vmatpush2.msra.mxu0 %v742
    %1593 = vmatprep.subr.mxu0 %v739
    %1594 = vmatpush2.msra.mxu0 %v738
    %1595 = vmatprep.subr.mxu0 %v735
    %1596 = vmatpush2.msra.mxu0 %v734
    %1597 = vmatprep.subr.mxu0 %v731
    %1598 = vmatpush2.msra.mxu0 %v730
    %1599 = vmatprep.subr.mxu0 %v727
    %1600 = vmatpush2.msra.mxu0 %v726
    %1601 = vmatprep.subr.mxu0 %v723
    %1602 = vmatpush2.msra.mxu0 %v722
    %1603 = vmatprep.subr.mxu0 %v719
    %1604 = vmatpush2.msra.mxu0 %v718
    %1605 = vmatprep.subr.mxu0 %v715
    %1606 = vmatpush2.msra.mxu0 %v714
    %1607 = vmatprep.subr.mxu0 %v711
    %1608 = vmatpush2.msra.mxu0 %v710
    %1609 = vmatprep.subr.mxu0 %v707
    %1610 = vmatpush2.msra.mxu0 %v706
    %1611 = vmatprep.mubr.f32.mxu0 %v1298
    %1612 = vmatmul.mubr.f32.gmra.mxu0 %v1475
    %v1613 = vpop.f32.mrf.mxu0
    %v1614 = vadd.f32 %v781, %v1613
    %v1615 = vpop.f32.mrf.mxu0
    %v1616 = vadd.f32 %v785, %v1615
    %1617 = vdwg.mxu0
    %v1618 = vxor.u32 %v1543, 2147483648
    %v1619 = vmul.f32 %v1618, 1.442695
    %v1620 = vpow.pop %v1619
    %v1621 = vadd.f32 %v1620, 1.0
    %v1622 = vrcp.pop %v1621
    %v1623 = vmul.f32 1.0, %v1622
    %v1624 = vxor.u32 %v1545, 2147483648
    %v1625 = vmul.f32 %v1624, 1.442695
    %v1626 = vpow.pop %v1625
    %v1627 = vadd.f32 %v1626, 1.0
    %v1628 = vrcp.pop %v1627
    %v1629 = vmul.f32 1.0, %v1628
    %v1630 = vtanh.pop %v1614
    %v1631 = vxor.u32 %v1616, 2147483648
    %v1632 = vmul.f32 %v1631, 1.442695
    %v1633 = vpow.pop %v1632
    %v1634 = vadd.f32 %v1633, 1.0
    %v1635 = vrcp.pop %v1634
    %v1636 = vmul.f32 1.0, %v1635
    %v1637 = vmul.f32 %v1629, %v1296
    %v1638 = vmul.f32 %v1623, %v1630
    %v1639 = vadd.f32 %v1637, %v1638
    %v1640 = vtanh.pop %v1639
    %v1641 = vmul.f32 %v1636, %v1640
    %s1642 = smul.u32 3, 4
    %s1643 = smul.addr %s1642, 8
    %s1644 = scalar_lea.vmem [#allocation2], %s1643
    %v1645 = vld [vmem:[%s1644] sm:$0xff]
    %v1646 = vld [vmem:[%s1644 + $0x8] sm:$0xff]
    %v1647 = vld [vmem:[%s1644 + $0x10] sm:$0xff]
    %v1648 = vld [vmem:[%s1644 + $0x18] sm:$0xff]
    %1649 = vmatprep.subr.mxu0 %v467
    %1650 = vmatpush1.msra.mxu0 %v466
    %1651 = vmatprep.subr.mxu0 %v463
    %1652 = vmatpush1.msra.mxu0 %v462
    %1653 = vmatprep.subr.mxu0 %v459
    %1654 = vmatpush1.msra.mxu0 %v458
    %1655 = vmatprep.subr.mxu0 %v455
    %1656 = vmatpush1.msra.mxu0 %v454
    %1657 = vmatprep.subr.mxu0 %v451
    %1658 = vmatpush1.msra.mxu0 %v450
    %1659 = vmatprep.subr.mxu0 %v447
    %1660 = vmatpush1.msra.mxu0 %v446
    %1661 = vmatprep.subr.mxu0 %v443
    %1662 = vmatpush1.msra.mxu0 %v442
    %1663 = vmatprep.subr.mxu0 %v439
    %1664 = vmatpush1.msra.mxu0 %v438
    %1665 = vmatprep.subr.mxu0 %v435
    %1666 = vmatpush1.msra.mxu0 %v434
    %1667 = vmatprep.subr.mxu0 %v431
    %1668 = vmatpush1.msra.mxu0 %v430
    %1669 = vmatprep.subr.mxu0 %v427
    %1670 = vmatpush1.msra.mxu0 %v426
    %1671 = vmatprep.subr.mxu0 %v423
    %1672 = vmatpush1.msra.mxu0 %v422
    %1673 = vmatprep.subr.mxu0 %v419
    %1674 = vmatpush1.msra.mxu0 %v418
    %1675 = vmatprep.subr.mxu0 %v415
    %1676 = vmatpush1.msra.mxu0 %v414
    %1677 = vmatprep.subr.mxu0 %v411
    %1678 = vmatpush1.msra.mxu0 %v410
    %1679 = vmatprep.subr.mxu0 %v407
    %1680 = vmatpush1.msra.mxu0 %v406
    %1681 = vmatprep.subr.mxu0 0.0
    %1682 = vmatpush2.msra.mxu0 0.0
    %1683 = vmatprep.subr.mxu0 0.0
    %1684 = vmatpush2.msra.mxu0 0.0
    %1685 = vmatprep.subr.mxu0 0.0
    %1686 = vmatpush2.msra.mxu0 0.0
    %1687 = vmatprep.subr.mxu0 0.0
    %1688 = vmatpush2.msra.mxu0 0.0
    %1689 = vmatprep.subr.mxu0 0.0
    %1690 = vmatpush2.msra.mxu0 0.0
    %1691 = vmatprep.subr.mxu0 0.0
    %1692 = vmatpush2.msra.mxu0 0.0
    %1693 = vmatprep.subr.mxu0 0.0
    %1694 = vmatpush2.msra.mxu0 0.0
    %1695 = vmatprep.subr.mxu0 0.0
    %1696 = vmatpush2.msra.mxu0 0.0
    %1697 = vmatprep.subr.mxu0 0.0
    %1698 = vmatpush2.msra.mxu0 0.0
    %1699 = vmatprep.subr.mxu0 0.0
    %1700 = vmatpush2.msra.mxu0 0.0
    %1701 = vmatprep.subr.mxu0 0.0
    %1702 = vmatpush2.msra.mxu0 0.0
    %1703 = vmatprep.subr.mxu0 0.0
    %1704 = vmatpush2.msra.mxu0 0.0
    %1705 = vmatprep.subr.mxu0 0.0
    %1706 = vmatpush2.msra.mxu0 0.0
    %1707 = vmatprep.subr.mxu0 0.0
    %1708 = vmatpush2.msra.mxu0 0.0
    %1709 = vmatprep.subr.mxu0 0.0
    %1710 = vmatpush2.msra.mxu0 0.0
    %1711 = vmatprep.subr.mxu0 0.0
    %1712 = vmatpush2.msra.mxu0 0.0
    %1713 = vmatprep.mubr.f32.mxu0 0.0
    %1714 = vmatmul.mubr.f32.gmra.mxu0 %v1475
    %v1715 = vpop.f32.mrf.mxu0
    %v1716 = vadd.f32 0.0, %v1715
    %v1717 = vpop.f32.mrf.mxu0
    %v1718 = vadd.f32 0.0, %v1717
    %1719 = vdwg.mxu0
    %1720 = vmatprep.subr.mxu0 %v469
    %1721 = vmatpush1.msra.mxu0 %v468
    %1722 = vmatprep.subr.mxu0 %v465
    %1723 = vmatpush1.msra.mxu0 %v464
    %1724 = vmatprep.subr.mxu0 %v461
    %1725 = vmatpush1.msra.mxu0 %v460
    %1726 = vmatprep.subr.mxu0 %v457
    %1727 = vmatpush1.msra.mxu0 %v456
    %1728 = vmatprep.subr.mxu0 %v453
    %1729 = vmatpush1.msra.mxu0 %v452
    %1730 = vmatprep.subr.mxu0 %v449
    %1731 = vmatpush1.msra.mxu0 %v448
    %1732 = vmatprep.subr.mxu0 %v445
    %1733 = vmatpush1.msra.mxu0 %v444
    %1734 = vmatprep.subr.mxu0 %v441
    %1735 = vmatpush1.msra.mxu0 %v440
    %1736 = vmatprep.subr.mxu0 %v437
    %1737 = vmatpush1.msra.mxu0 %v436
    %1738 = vmatprep.subr.mxu0 %v433
    %1739 = vmatpush1.msra.mxu0 %v432
    %1740 = vmatprep.subr.mxu0 %v429
    %1741 = vmatpush1.msra.mxu0 %v428
    %1742 = vmatprep.subr.mxu0 %v425
    %1743 = vmatpush1.msra.mxu0 %v424
    %1744 = vmatprep.subr.mxu0 %v421
    %1745 = vmatpush1.msra.mxu0 %v420
    %1746 = vmatprep.subr.mxu0 %v417
    %1747 = vmatpush1.msra.mxu0 %v416
    %1748 = vmatprep.subr.mxu0 %v413
    %1749 = vmatpush1.msra.mxu0 %v412
    %1750 = vmatprep.subr.mxu0 %v409
    %1751 = vmatpush1.msra.mxu0 %v408
    %1752 = vmatprep.subr.mxu0 0.0
    %1753 = vmatpush2.msra.mxu0 0.0
    %1754 = vmatprep.subr.mxu0 0.0
    %1755 = vmatpush2.msra.mxu0 0.0
    %1756 = vmatprep.subr.mxu0 0.0
    %1757 = vmatpush2.msra.mxu0 0.0
    %1758 = vmatprep.subr.mxu0 0.0
    %1759 = vmatpush2.msra.mxu0 0.0
    %1760 = vmatprep.subr.mxu0 0.0
    %1761 = vmatpush2.msra.mxu0 0.0
    %1762 = vmatprep.subr.mxu0 0.0
    %1763 = vmatpush2.msra.mxu0 0.0
    %1764 = vmatprep.subr.mxu0 0.0
    %1765 = vmatpush2.msra.mxu0 0.0
    %1766 = vmatprep.subr.mxu0 0.0
    %1767 = vmatpush2.msra.mxu0 0.0
    %1768 = vmatprep.subr.mxu0 0.0
    %1769 = vmatpush2.msra.mxu0 0.0
    %1770 = vmatprep.subr.mxu0 0.0
    %1771 = vmatpush2.msra.mxu0 0.0
    %1772 = vmatprep.subr.mxu0 0.0
    %1773 = vmatpush2.msra.mxu0 0.0
    %1774 = vmatprep.subr.mxu0 0.0
    %1775 = vmatpush2.msra.mxu0 0.0
    %1776 = vmatprep.subr.mxu0 0.0
    %1777 = vmatpush2.msra.mxu0 0.0
    %1778 = vmatprep.subr.mxu0 0.0
    %1779 = vmatpush2.msra.mxu0 0.0
    %1780 = vmatprep.subr.mxu0 0.0
    %1781 = vmatpush2.msra.mxu0 0.0
    %1782 = vmatprep.subr.mxu0 0.0
    %1783 = vmatpush2.msra.mxu0 0.0
    %1784 = vmatprep.mubr.f32.mxu0 0.0
    %1785 = vmatmul.mubr.f32.gmra.mxu0 %v1475
    %v1786 = vpop.f32.mrf.mxu0
    %v1787 = vadd.f32 0.0, %v1786
    %v1788 = vpop.f32.mrf.mxu0
    %v1789 = vadd.f32 0.0, %v1788
    %1790 = vdwg.mxu0
    %v1791 = vadd.f32 %v1645, %v1716
    %v1792 = vadd.f32 %v1646, %v1718
    %v1793 = vadd.f32 %v1647, %v1787
    %v1794 = vadd.f32 %v1648, %v1789
    %v1795 = vxor.u32 %v1791, 2147483648
    %v1796 = vmul.f32 %v1795, 1.442695
    %v1797 = vpow.pop %v1796
    %v1798 = vadd.f32 %v1797, 1.0
    %v1799 = vrcp.pop %v1798
    %v1800 = vmul.f32 1.0, %v1799
    %v1801 = vxor.u32 %v1792, 2147483648
    %v1802 = vmul.f32 %v1801, 1.442695
    %v1803 = vpow.pop %v1802
    %v1804 = vadd.f32 %v1803, 1.0
    %v1805 = vrcp.pop %v1804
    %v1806 = vmul.f32 1.0, %v1805
    %v1807 = vtanh.pop %v1793
    %v1808 = vxor.u32 %v1794, 2147483648
    %v1809 = vmul.f32 %v1808, 1.442695
    %v1810 = vpow.pop %v1809
    %v1811 = vadd.f32 %v1810, 1.0
    %v1812 = vrcp.pop %v1811
    %v1813 = vmul.f32 1.0, %v1812
    %v1814 = vmul.f32 %v1806, %v1473
    %v1815 = vmul.f32 %v1800, %v1807
    %v1816 = vadd.f32 %v1814, %v1815
    %v1817 = vtanh.pop %v1816
    %v1818 = vmul.f32 %v1813, %v1817
    %1819 = vmatprep.subr.mxu0 %v701
    %1820 = vmatpush1.msra.mxu0 %v700
    %1821 = vmatprep.subr.mxu0 %v697
    %1822 = vmatpush1.msra.mxu0 %v696
    %1823 = vmatprep.subr.mxu0 %v693
    %1824 = vmatpush1.msra.mxu0 %v692
    %1825 = vmatprep.subr.mxu0 %v689
    %1826 = vmatpush1.msra.mxu0 %v688
    %1827 = vmatprep.subr.mxu0 %v685
    %1828 = vmatpush1.msra.mxu0 %v684
    %1829 = vmatprep.subr.mxu0 %v681
    %1830 = vmatpush1.msra.mxu0 %v680
    %1831 = vmatprep.subr.mxu0 %v677
    %1832 = vmatpush1.msra.mxu0 %v676
    %1833 = vmatprep.subr.mxu0 %v673
    %1834 = vmatpush1.msra.mxu0 %v672
    %1835 = vmatprep.subr.mxu0 %v669
    %1836 = vmatpush1.msra.mxu0 %v668
    %1837 = vmatprep.subr.mxu0 %v665
    %1838 = vmatpush1.msra.mxu0 %v664
    %1839 = vmatprep.subr.mxu0 %v661
    %1840 = vmatpush1.msra.mxu0 %v660
    %1841 = vmatprep.subr.mxu0 %v657
    %1842 = vmatpush1.msra.mxu0 %v656
    %1843 = vmatprep.subr.mxu0 %v653
    %1844 = vmatpush1.msra.mxu0 %v652
    %1845 = vmatprep.subr.mxu0 %v649
    %1846 = vmatpush1.msra.mxu0 %v648
    %1847 = vmatprep.subr.mxu0 %v645
    %1848 = vmatpush1.msra.mxu0 %v644
    %1849 = vmatprep.subr.mxu0 %v641
    %1850 = vmatpush1.msra.mxu0 %v640
    %1851 = vmatprep.subr.mxu0 %v765
    %1852 = vmatpush2.msra.mxu0 %v764
    %1853 = vmatprep.subr.mxu0 %v761
    %1854 = vmatpush2.msra.mxu0 %v760
    %1855 = vmatprep.subr.mxu0 %v757
    %1856 = vmatpush2.msra.mxu0 %v756
    %1857 = vmatprep.subr.mxu0 %v753
    %1858 = vmatpush2.msra.mxu0 %v752
    %1859 = vmatprep.subr.mxu0 %v749
    %1860 = vmatpush2.msra.mxu0 %v748
    %1861 = vmatprep.subr.mxu0 %v745
    %1862 = vmatpush2.msra.mxu0 %v744
    %1863 = vmatprep.subr.mxu0 %v741
    %1864 = vmatpush2.msra.mxu0 %v740
    %1865 = vmatprep.subr.mxu0 %v737
    %1866 = vmatpush2.msra.mxu0 %v736
    %1867 = vmatprep.subr.mxu0 %v733
    %1868 = vmatpush2.msra.mxu0 %v732
    %1869 = vmatprep.subr.mxu0 %v729
    %1870 = vmatpush2.msra.mxu0 %v728
    %1871 = vmatprep.subr.mxu0 %v725
    %1872 = vmatpush2.msra.mxu0 %v724
    %1873 = vmatprep.subr.mxu0 %v721
    %1874 = vmatpush2.msra.mxu0 %v720
    %1875 = vmatprep.subr.mxu0 %v717
    %1876 = vmatpush2.msra.mxu0 %v716
    %1877 = vmatprep.subr.mxu0 %v713
    %1878 = vmatpush2.msra.mxu0 %v712
    %1879 = vmatprep.subr.mxu0 %v709
    %1880 = vmatpush2.msra.mxu0 %v708
    %1881 = vmatprep.subr.mxu0 %v705
    %1882 = vmatpush2.msra.mxu0 %v704
    %1883 = vmatprep.mubr.f32.mxu0 %v1641
    %1884 = vmatmul.mubr.f32.gmra.mxu0 %v1818
    %v1885 = vpop.f32.mrf.mxu0
    %v1886 = vadd.f32 %v773, %v1885
    %v1887 = vpop.f32.mrf.mxu0
    %v1888 = vadd.f32 %v777, %v1887
    %1889 = vdwg.mxu0
    %1890 = vmatprep.subr.mxu0 %v703
    %1891 = vmatpush1.msra.mxu0 %v702
    %1892 = vmatprep.subr.mxu0 %v699
    %1893 = vmatpush1.msra.mxu0 %v698
    %1894 = vmatprep.subr.mxu0 %v695
    %1895 = vmatpush1.msra.mxu0 %v694
    %1896 = vmatprep.subr.mxu0 %v691
    %1897 = vmatpush1.msra.mxu0 %v690
    %1898 = vmatprep.subr.mxu0 %v687
    %1899 = vmatpush1.msra.mxu0 %v686
    %1900 = vmatprep.subr.mxu0 %v683
    %1901 = vmatpush1.msra.mxu0 %v682
    %1902 = vmatprep.subr.mxu0 %v679
    %1903 = vmatpush1.msra.mxu0 %v678
    %1904 = vmatprep.subr.mxu0 %v675
    %1905 = vmatpush1.msra.mxu0 %v674
    %1906 = vmatprep.subr.mxu0 %v671
    %1907 = vmatpush1.msra.mxu0 %v670
    %1908 = vmatprep.subr.mxu0 %v667
    %1909 = vmatpush1.msra.mxu0 %v666
    %1910 = vmatprep.subr.mxu0 %v663
    %1911 = vmatpush1.msra.mxu0 %v662
    %1912 = vmatprep.subr.mxu0 %v659
    %1913 = vmatpush1.msra.mxu0 %v658
    %1914 = vmatprep.subr.mxu0 %v655
    %1915 = vmatpush1.msra.mxu0 %v654
    %1916 = vmatprep.subr.mxu0 %v651
    %1917 = vmatpush1.msra.mxu0 %v650
    %1918 = vmatprep.subr.mxu0 %v647
    %1919 = vmatpush1.msra.mxu0 %v646
    %1920 = vmatprep.subr.mxu0 %v643
    %1921 = vmatpush1.msra.mxu0 %v642
    %1922 = vmatprep.subr.mxu0 %v767
    %1923 = vmatpush2.msra.mxu0 %v766
    %1924 = vmatprep.subr.mxu0 %v763
    %1925 = vmatpush2.msra.mxu0 %v762
    %1926 = vmatprep.subr.mxu0 %v759
    %1927 = vmatpush2.msra.mxu0 %v758
    %1928 = vmatprep.subr.mxu0 %v755
    %1929 = vmatpush2.msra.mxu0 %v754
    %1930 = vmatprep.subr.mxu0 %v751
    %1931 = vmatpush2.msra.mxu0 %v750
    %1932 = vmatprep.subr.mxu0 %v747
    %1933 = vmatpush2.msra.mxu0 %v746
    %1934 = vmatprep.subr.mxu0 %v743
    %1935 = vmatpush2.msra.mxu0 %v742
    %1936 = vmatprep.subr.mxu0 %v739
    %1937 = vmatpush2.msra.mxu0 %v738
    %1938 = vmatprep.subr.mxu0 %v735
    %1939 = vmatpush2.msra.mxu0 %v734
    %1940 = vmatprep.subr.mxu0 %v731
    %1941 = vmatpush2.msra.mxu0 %v730
    %1942 = vmatprep.subr.mxu0 %v727
    %1943 = vmatpush2.msra.mxu0 %v726
    %1944 = vmatprep.subr.mxu0 %v723
    %1945 = vmatpush2.msra.mxu0 %v722
    %1946 = vmatprep.subr.mxu0 %v719
    %1947 = vmatpush2.msra.mxu0 %v718
    %1948 = vmatprep.subr.mxu0 %v715
    %1949 = vmatpush2.msra.mxu0 %v714
    %1950 = vmatprep.subr.mxu0 %v711
    %1951 = vmatpush2.msra.mxu0 %v710
    %1952 = vmatprep.subr.mxu0 %v707
    %1953 = vmatpush2.msra.mxu0 %v706
    %1954 = vmatprep.mubr.f32.mxu0 %v1641
    %1955 = vmatmul.mubr.f32.gmra.mxu0 %v1818
    %v1956 = vpop.f32.mrf.mxu0
    %v1957 = vadd.f32 %v781, %v1956
    %v1958 = vpop.f32.mrf.mxu0
    %v1959 = vadd.f32 %v785, %v1958
    %1960 = vdwg.mxu0
    %v1961 = vxor.u32 %v1886, 2147483648
    %v1962 = vmul.f32 %v1961, 1.442695
    %v1963 = vpow.pop %v1962
    %v1964 = vadd.f32 %v1963, 1.0
    %v1965 = vrcp.pop %v1964
    %v1966 = vmul.f32 1.0, %v1965
    %v1967 = vxor.u32 %v1888, 2147483648
    %v1968 = vmul.f32 %v1967, 1.442695
    %v1969 = vpow.pop %v1968
    %v1970 = vadd.f32 %v1969, 1.0
    %v1971 = vrcp.pop %v1970
    %v1972 = vmul.f32 1.0, %v1971
    %v1973 = vtanh.pop %v1957
    %v1974 = vxor.u32 %v1959, 2147483648
    %v1975 = vmul.f32 %v1974, 1.442695
    %v1976 = vpow.pop %v1975
    %v1977 = vadd.f32 %v1976, 1.0
    %v1978 = vrcp.pop %v1977
    %v1979 = vmul.f32 1.0, %v1978
    %v1980 = vmul.f32 %v1972, %v1639
    %v1981 = vmul.f32 %v1966, %v1973
    %v1982 = vadd.f32 %v1980, %v1981
    %v1983 = vtanh.pop %v1982
    %v1984 = vmul.f32 %v1979, %v1983
    %s1985 = smul.u32 4, 4
    %s1986 = smul.addr %s1985, 8
    %s1987 = scalar_lea.vmem [#allocation2], %s1986
    %v1988 = vld [vmem:[%s1987] sm:$0xff]
    %v1989 = vld [vmem:[%s1987 + $0x8] sm:$0xff]
    %v1990 = vld [vmem:[%s1987 + $0x10] sm:$0xff]
    %v1991 = vld [vmem:[%s1987 + $0x18] sm:$0xff]
    %1992 = vmatprep.subr.mxu0 %v467
    %1993 = vmatpush1.msra.mxu0 %v466
    %1994 = vmatprep.subr.mxu0 %v463
    %1995 = vmatpush1.msra.mxu0 %v462
    %1996 = vmatprep.subr.mxu0 %v459
    %1997 = vmatpush1.msra.mxu0 %v458
    %1998 = vmatprep.subr.mxu0 %v455
    %1999 = vmatpush1.msra.mxu0 %v454
    %2000 = vmatprep.subr.mxu0 %v451
    %2001 = vmatpush1.msra.mxu0 %v450
    %2002 = vmatprep.subr.mxu0 %v447
    %2003 = vmatpush1.msra.mxu0 %v446
    %2004 = vmatprep.subr.mxu0 %v443
    %2005 = vmatpush1.msra.mxu0 %v442
    %2006 = vmatprep.subr.mxu0 %v439
    %2007 = vmatpush1.msra.mxu0 %v438
    %2008 = vmatprep.subr.mxu0 %v435
    %2009 = vmatpush1.msra.mxu0 %v434
    %2010 = vmatprep.subr.mxu0 %v431
    %2011 = vmatpush1.msra.mxu0 %v430
    %2012 = vmatprep.subr.mxu0 %v427
    %2013 = vmatpush1.msra.mxu0 %v426
    %2014 = vmatprep.subr.mxu0 %v423
    %2015 = vmatpush1.msra.mxu0 %v422
    %2016 = vmatprep.subr.mxu0 %v419
    %2017 = vmatpush1.msra.mxu0 %v418
    %2018 = vmatprep.subr.mxu0 %v415
    %2019 = vmatpush1.msra.mxu0 %v414
    %2020 = vmatprep.subr.mxu0 %v411
    %2021 = vmatpush1.msra.mxu0 %v410
    %2022 = vmatprep.subr.mxu0 %v407
    %2023 = vmatpush1.msra.mxu0 %v406
    %2024 = vmatprep.subr.mxu0 0.0
    %2025 = vmatpush2.msra.mxu0 0.0
    %2026 = vmatprep.subr.mxu0 0.0
    %2027 = vmatpush2.msra.mxu0 0.0
    %2028 = vmatprep.subr.mxu0 0.0
    %2029 = vmatpush2.msra.mxu0 0.0
    %2030 = vmatprep.subr.mxu0 0.0
    %2031 = vmatpush2.msra.mxu0 0.0
    %2032 = vmatprep.subr.mxu0 0.0
    %2033 = vmatpush2.msra.mxu0 0.0
    %2034 = vmatprep.subr.mxu0 0.0
    %2035 = vmatpush2.msra.mxu0 0.0
    %2036 = vmatprep.subr.mxu0 0.0
    %2037 = vmatpush2.msra.mxu0 0.0
    %2038 = vmatprep.subr.mxu0 0.0
    %2039 = vmatpush2.msra.mxu0 0.0
    %2040 = vmatprep.subr.mxu0 0.0
    %2041 = vmatpush2.msra.mxu0 0.0
    %2042 = vmatprep.subr.mxu0 0.0
    %2043 = vmatpush2.msra.mxu0 0.0
    %2044 = vmatprep.subr.mxu0 0.0
    %2045 = vmatpush2.msra.mxu0 0.0
    %2046 = vmatprep.subr.mxu0 0.0
    %2047 = vmatpush2.msra.mxu0 0.0
    %2048 = vmatprep.subr.mxu0 0.0
    %2049 = vmatpush2.msra.mxu0 0.0
    %2050 = vmatprep.subr.mxu0 0.0
    %2051 = vmatpush2.msra.mxu0 0.0
    %2052 = vmatprep.subr.mxu0 0.0
    %2053 = vmatpush2.msra.mxu0 0.0
    %2054 = vmatprep.subr.mxu0 0.0
    %2055 = vmatpush2.msra.mxu0 0.0
    %2056 = vmatprep.mubr.f32.mxu0 0.0
    %2057 = vmatmul.mubr.f32.gmra.mxu0 %v1818
    %v2058 = vpop.f32.mrf.mxu0
    %v2059 = vadd.f32 0.0, %v2058
    %v2060 = vpop.f32.mrf.mxu0
    %v2061 = vadd.f32 0.0, %v2060
    %2062 = vdwg.mxu0
    %2063 = vmatprep.subr.mxu0 %v469
    %2064 = vmatpush1.msra.mxu0 %v468
    %2065 = vmatprep.subr.mxu0 %v465
    %2066 = vmatpush1.msra.mxu0 %v464
    %2067 = vmatprep.subr.mxu0 %v461
    %2068 = vmatpush1.msra.mxu0 %v460
    %2069 = vmatprep.subr.mxu0 %v457
    %2070 = vmatpush1.msra.mxu0 %v456
    %2071 = vmatprep.subr.mxu0 %v453
    %2072 = vmatpush1.msra.mxu0 %v452
    %2073 = vmatprep.subr.mxu0 %v449
    %2074 = vmatpush1.msra.mxu0 %v448
    %2075 = vmatprep.subr.mxu0 %v445
    %2076 = vmatpush1.msra.mxu0 %v444
    %2077 = vmatprep.subr.mxu0 %v441
    %2078 = vmatpush1.msra.mxu0 %v440
    %2079 = vmatprep.subr.mxu0 %v437
    %2080 = vmatpush1.msra.mxu0 %v436
    %2081 = vmatprep.subr.mxu0 %v433
    %2082 = vmatpush1.msra.mxu0 %v432
    %2083 = vmatprep.subr.mxu0 %v429
    %2084 = vmatpush1.msra.mxu0 %v428
    %2085 = vmatprep.subr.mxu0 %v425
    %2086 = vmatpush1.msra.mxu0 %v424
    %2087 = vmatprep.subr.mxu0 %v421
    %2088 = vmatpush1.msra.mxu0 %v420
    %2089 = vmatprep.subr.mxu0 %v417
    %2090 = vmatpush1.msra.mxu0 %v416
    %2091 = vmatprep.subr.mxu0 %v413
    %2092 = vmatpush1.msra.mxu0 %v412
    %2093 = vmatprep.subr.mxu0 %v409
    %2094 = vmatpush1.msra.mxu0 %v408
    %2095 = vmatprep.subr.mxu0 0.0
    %2096 = vmatpush2.msra.mxu0 0.0
    %2097 = vmatprep.subr.mxu0 0.0
    %2098 = vmatpush2.msra.mxu0 0.0
    %2099 = vmatprep.subr.mxu0 0.0
    %2100 = vmatpush2.msra.mxu0 0.0
    %2101 = vmatprep.subr.mxu0 0.0
    %2102 = vmatpush2.msra.mxu0 0.0
    %2103 = vmatprep.subr.mxu0 0.0
    %2104 = vmatpush2.msra.mxu0 0.0
    %2105 = vmatprep.subr.mxu0 0.0
    %2106 = vmatpush2.msra.mxu0 0.0
    %2107 = vmatprep.subr.mxu0 0.0
    %2108 = vmatpush2.msra.mxu0 0.0
    %2109 = vmatprep.subr.mxu0 0.0
    %2110 = vmatpush2.msra.mxu0 0.0
    %2111 = vmatprep.subr.mxu0 0.0
    %2112 = vmatpush2.msra.mxu0 0.0
    %2113 = vmatprep.subr.mxu0 0.0
    %2114 = vmatpush2.msra.mxu0 0.0
    %2115 = vmatprep.subr.mxu0 0.0
    %2116 = vmatpush2.msra.mxu0 0.0
    %2117 = vmatprep.subr.mxu0 0.0
    %2118 = vmatpush2.msra.mxu0 0.0
    %2119 = vmatprep.subr.mxu0 0.0
    %2120 = vmatpush2.msra.mxu0 0.0
    %2121 = vmatprep.subr.mxu0 0.0
    %2122 = vmatpush2.msra.mxu0 0.0
    %2123 = vmatprep.subr.mxu0 0.0
    %2124 = vmatpush2.msra.mxu0 0.0
    %2125 = vmatprep.subr.mxu0 0.0
    %2126 = vmatpush2.msra.mxu0 0.0
    %2127 = vmatprep.mubr.f32.mxu0 0.0
    %2128 = vmatmul.mubr.f32.gmra.mxu0 %v1818
    %v2129 = vpop.f32.mrf.mxu0
    %v2130 = vadd.f32 0.0, %v2129
    %v2131 = vpop.f32.mrf.mxu0
    %v2132 = vadd.f32 0.0, %v2131
    %2133 = vdwg.mxu0
    %v2134 = vadd.f32 %v1988, %v2059
    %v2135 = vadd.f32 %v1989, %v2061
    %v2136 = vadd.f32 %v1990, %v2130
    %v2137 = vadd.f32 %v1991, %v2132
    %v2138 = vxor.u32 %v2134, 2147483648
    %v2139 = vmul.f32 %v2138, 1.442695
    %v2140 = vpow.pop %v2139
    %v2141 = vadd.f32 %v2140, 1.0
    %v2142 = vrcp.pop %v2141
    %v2143 = vmul.f32 1.0, %v2142
    %v2144 = vxor.u32 %v2135, 2147483648
    %v2145 = vmul.f32 %v2144, 1.442695
    %v2146 = vpow.pop %v2145
    %v2147 = vadd.f32 %v2146, 1.0
    %v2148 = vrcp.pop %v2147
    %v2149 = vmul.f32 1.0, %v2148
    %v2150 = vtanh.pop %v2136
    %v2151 = vxor.u32 %v2137, 2147483648
    %v2152 = vmul.f32 %v2151, 1.442695
    %v2153 = vpow.pop %v2152
    %v2154 = vadd.f32 %v2153, 1.0
    %v2155 = vrcp.pop %v2154
    %v2156 = vmul.f32 1.0, %v2155
    %v2157 = vmul.f32 %v2149, %v1816
    %v2158 = vmul.f32 %v2143, %v2150
    %v2159 = vadd.f32 %v2157, %v2158
    %v2160 = vtanh.pop %v2159
    %v2161 = vmul.f32 %v2156, %v2160
    %2162 = vmatprep.subr.mxu0 %v701
    %2163 = vmatpush1.msra.mxu0 %v700
    %2164 = vmatprep.subr.mxu0 %v697
    %2165 = vmatpush1.msra.mxu0 %v696
    %2166 = vmatprep.subr.mxu0 %v693
    %2167 = vmatpush1.msra.mxu0 %v692
    %2168 = vmatprep.subr.mxu0 %v689
    %2169 = vmatpush1.msra.mxu0 %v688
    %2170 = vmatprep.subr.mxu0 %v685
    %2171 = vmatpush1.msra.mxu0 %v684
    %2172 = vmatprep.subr.mxu0 %v681
    %2173 = vmatpush1.msra.mxu0 %v680
    %2174 = vmatprep.subr.mxu0 %v677
    %2175 = vmatpush1.msra.mxu0 %v676
    %2176 = vmatprep.subr.mxu0 %v673
    %2177 = vmatpush1.msra.mxu0 %v672
    %2178 = vmatprep.subr.mxu0 %v669
    %2179 = vmatpush1.msra.mxu0 %v668
    %2180 = vmatprep.subr.mxu0 %v665
    %2181 = vmatpush1.msra.mxu0 %v664
    %2182 = vmatprep.subr.mxu0 %v661
    %2183 = vmatpush1.msra.mxu0 %v660
    %2184 = vmatprep.subr.mxu0 %v657
    %2185 = vmatpush1.msra.mxu0 %v656
    %2186 = vmatprep.subr.mxu0 %v653
    %2187 = vmatpush1.msra.mxu0 %v652
    %2188 = vmatprep.subr.mxu0 %v649
    %2189 = vmatpush1.msra.mxu0 %v648
    %2190 = vmatprep.subr.mxu0 %v645
    %2191 = vmatpush1.msra.mxu0 %v644
    %2192 = vmatprep.subr.mxu0 %v641
    %2193 = vmatpush1.msra.mxu0 %v640
    %2194 = vmatprep.subr.mxu0 %v765
    %2195 = vmatpush2.msra.mxu0 %v764
    %2196 = vmatprep.subr.mxu0 %v761
    %2197 = vmatpush2.msra.mxu0 %v760
    %2198 = vmatprep.subr.mxu0 %v757
    %2199 = vmatpush2.msra.mxu0 %v756
    %2200 = vmatprep.subr.mxu0 %v753
    %2201 = vmatpush2.msra.mxu0 %v752
    %2202 = vmatprep.subr.mxu0 %v749
    %2203 = vmatpush2.msra.mxu0 %v748
    %2204 = vmatprep.subr.mxu0 %v745
    %2205 = vmatpush2.msra.mxu0 %v744
    %2206 = vmatprep.subr.mxu0 %v741
    %2207 = vmatpush2.msra.mxu0 %v740
    %2208 = vmatprep.subr.mxu0 %v737
    %2209 = vmatpush2.msra.mxu0 %v736
    %2210 = vmatprep.subr.mxu0 %v733
    %2211 = vmatpush2.msra.mxu0 %v732
    %2212 = vmatprep.subr.mxu0 %v729
    %2213 = vmatpush2.msra.mxu0 %v728
    %2214 = vmatprep.subr.mxu0 %v725
    %2215 = vmatpush2.msra.mxu0 %v724
    %2216 = vmatprep.subr.mxu0 %v721
    %2217 = vmatpush2.msra.mxu0 %v720
    %2218 = vmatprep.subr.mxu0 %v717
    %2219 = vmatpush2.msra.mxu0 %v716
    %2220 = vmatprep.subr.mxu0 %v713
    %2221 = vmatpush2.msra.mxu0 %v712
    %2222 = vmatprep.subr.mxu0 %v709
    %2223 = vmatpush2.msra.mxu0 %v708
    %2224 = vmatprep.subr.mxu0 %v705
    %2225 = vmatpush2.msra.mxu0 %v704
    %2226 = vmatprep.mubr.f32.mxu0 %v1984
    %2227 = vmatmul.mubr.f32.gmra.mxu0 %v2161
    %v2228 = vpop.f32.mrf.mxu0
    %v2229 = vadd.f32 %v773, %v2228
    %v2230 = vpop.f32.mrf.mxu0
    %v2231 = vadd.f32 %v777, %v2230
    %2232 = vdwg.mxu0
    %2233 = vmatprep.subr.mxu0 %v703
    %2234 = vmatpush1.msra.mxu0 %v702
    %2235 = vmatprep.subr.mxu0 %v699
    %2236 = vmatpush1.msra.mxu0 %v698
    %2237 = vmatprep.subr.mxu0 %v695
    %2238 = vmatpush1.msra.mxu0 %v694
    %2239 = vmatprep.subr.mxu0 %v691
    %2240 = vmatpush1.msra.mxu0 %v690
    %2241 = vmatprep.subr.mxu0 %v687
    %2242 = vmatpush1.msra.mxu0 %v686
    %2243 = vmatprep.subr.mxu0 %v683
    %2244 = vmatpush1.msra.mxu0 %v682
    %2245 = vmatprep.subr.mxu0 %v679
    %2246 = vmatpush1.msra.mxu0 %v678
    %2247 = vmatprep.subr.mxu0 %v675
    %2248 = vmatpush1.msra.mxu0 %v674
    %2249 = vmatprep.subr.mxu0 %v671
    %2250 = vmatpush1.msra.mxu0 %v670
    %2251 = vmatprep.subr.mxu0 %v667
    %2252 = vmatpush1.msra.mxu0 %v666
    %2253 = vmatprep.subr.mxu0 %v663
    %2254 = vmatpush1.msra.mxu0 %v662
    %2255 = vmatprep.subr.mxu0 %v659
    %2256 = vmatpush1.msra.mxu0 %v658
    %2257 = vmatprep.subr.mxu0 %v655
    %2258 = vmatpush1.msra.mxu0 %v654
    %2259 = vmatprep.subr.mxu0 %v651
    %2260 = vmatpush1.msra.mxu0 %v650
    %2261 = vmatprep.subr.mxu0 %v647
    %2262 = vmatpush1.msra.mxu0 %v646
    %2263 = vmatprep.subr.mxu0 %v643
    %2264 = vmatpush1.msra.mxu0 %v642
    %2265 = vmatprep.subr.mxu0 %v767
    %2266 = vmatpush2.msra.mxu0 %v766
    %2267 = vmatprep.subr.mxu0 %v763
    %2268 = vmatpush2.msra.mxu0 %v762
    %2269 = vmatprep.subr.mxu0 %v759
    %2270 = vmatpush2.msra.mxu0 %v758
    %2271 = vmatprep.subr.mxu0 %v755
    %2272 = vmatpush2.msra.mxu0 %v754
    %2273 = vmatprep.subr.mxu0 %v751
    %2274 = vmatpush2.msra.mxu0 %v750
    %2275 = vmatprep.subr.mxu0 %v747
    %2276 = vmatpush2.msra.mxu0 %v746
    %2277 = vmatprep.subr.mxu0 %v743
    %2278 = vmatpush2.msra.mxu0 %v742
    %2279 = vmatprep.subr.mxu0 %v739
    %2280 = vmatpush2.msra.mxu0 %v738
    %2281 = vmatprep.subr.mxu0 %v735
    %2282 = vmatpush2.msra.mxu0 %v734
    %2283 = vmatprep.subr.mxu0 %v731
    %2284 = vmatpush2.msra.mxu0 %v730
    %2285 = vmatprep.subr.mxu0 %v727
    %2286 = vmatpush2.msra.mxu0 %v726
    %2287 = vmatprep.subr.mxu0 %v723
    %2288 = vmatpush2.msra.mxu0 %v722
    %2289 = vmatprep.subr.mxu0 %v719
    %2290 = vmatpush2.msra.mxu0 %v718
    %2291 = vmatprep.subr.mxu0 %v715
    %2292 = vmatpush2.msra.mxu0 %v714
    %2293 = vmatprep.subr.mxu0 %v711
    %2294 = vmatpush2.msra.mxu0 %v710
    %2295 = vmatprep.subr.mxu0 %v707
    %2296 = vmatpush2.msra.mxu0 %v706
    %2297 = vmatprep.mubr.f32.mxu0 %v1984
    %2298 = vmatmul.mubr.f32.gmra.mxu0 %v2161
    %v2299 = vpop.f32.mrf.mxu0
    %v2300 = vadd.f32 %v781, %v2299
    %v2301 = vpop.f32.mrf.mxu0
    %v2302 = vadd.f32 %v785, %v2301
    %2303 = vdwg.mxu0
    %v2304 = vxor.u32 %v2229, 2147483648
    %v2305 = vmul.f32 %v2304, 1.442695
    %v2306 = vpow.pop %v2305
    %v2307 = vadd.f32 %v2306, 1.0
    %v2308 = vrcp.pop %v2307
    %v2309 = vmul.f32 1.0, %v2308
    %v2310 = vxor.u32 %v2231, 2147483648
    %v2311 = vmul.f32 %v2310, 1.442695
    %v2312 = vpow.pop %v2311
    %v2313 = vadd.f32 %v2312, 1.0
    %v2314 = vrcp.pop %v2313
    %v2315 = vmul.f32 1.0, %v2314
    %v2316 = vtanh.pop %v2300
    %v2317 = vxor.u32 %v2302, 2147483648
    %v2318 = vmul.f32 %v2317, 1.442695
    %v2319 = vpow.pop %v2318
    %v2320 = vadd.f32 %v2319, 1.0
    %v2321 = vrcp.pop %v2320
    %v2322 = vmul.f32 1.0, %v2321
    %v2323 = vmul.f32 %v2315, %v1982
    %v2324 = vmul.f32 %v2309, %v2316
    %v2325 = vadd.f32 %v2323, %v2324
    %v2326 = vtanh.pop %v2325
    %v2327 = vmul.f32 %v2322, %v2326
    %s2328 = smul.u32 5, 4
    %s2329 = smul.addr %s2328, 8
    %s2330 = scalar_lea.vmem [#allocation2], %s2329
    %v2331 = vld [vmem:[%s2330] sm:$0xff]
    %v2332 = vld [vmem:[%s2330 + $0x8] sm:$0xff]
    %v2333 = vld [vmem:[%s2330 + $0x10] sm:$0xff]
    %v2334 = vld [vmem:[%s2330 + $0x18] sm:$0xff]
    %2335 = vmatprep.subr.mxu0 %v467
    %2336 = vmatpush1.msra.mxu0 %v466
    %2337 = vmatprep.subr.mxu0 %v463
    %2338 = vmatpush1.msra.mxu0 %v462
    %2339 = vmatprep.subr.mxu0 %v459
    %2340 = vmatpush1.msra.mxu0 %v458
    %2341 = vmatprep.subr.mxu0 %v455
    %2342 = vmatpush1.msra.mxu0 %v454
    %2343 = vmatprep.subr.mxu0 %v451
    %2344 = vmatpush1.msra.mxu0 %v450
    %2345 = vmatprep.subr.mxu0 %v447
    %2346 = vmatpush1.msra.mxu0 %v446
    %2347 = vmatprep.subr.mxu0 %v443
    %2348 = vmatpush1.msra.mxu0 %v442
    %2349 = vmatprep.subr.mxu0 %v439
    %2350 = vmatpush1.msra.mxu0 %v438
    %2351 = vmatprep.subr.mxu0 %v435
    %2352 = vmatpush1.msra.mxu0 %v434
    %2353 = vmatprep.subr.mxu0 %v431
    %2354 = vmatpush1.msra.mxu0 %v430
    %2355 = vmatprep.subr.mxu0 %v427
    %2356 = vmatpush1.msra.mxu0 %v426
    %2357 = vmatprep.subr.mxu0 %v423
    %2358 = vmatpush1.msra.mxu0 %v422
    %2359 = vmatprep.subr.mxu0 %v419
    %2360 = vmatpush1.msra.mxu0 %v418
    %2361 = vmatprep.subr.mxu0 %v415
    %2362 = vmatpush1.msra.mxu0 %v414
    %2363 = vmatprep.subr.mxu0 %v411
    %2364 = vmatpush1.msra.mxu0 %v410
    %2365 = vmatprep.subr.mxu0 %v407
    %2366 = vmatpush1.msra.mxu0 %v406
    %2367 = vmatprep.subr.mxu0 0.0
    %2368 = vmatpush2.msra.mxu0 0.0
    %2369 = vmatprep.subr.mxu0 0.0
    %2370 = vmatpush2.msra.mxu0 0.0
    %2371 = vmatprep.subr.mxu0 0.0
    %2372 = vmatpush2.msra.mxu0 0.0
    %2373 = vmatprep.subr.mxu0 0.0
    %2374 = vmatpush2.msra.mxu0 0.0
    %2375 = vmatprep.subr.mxu0 0.0
    %2376 = vmatpush2.msra.mxu0 0.0
    %2377 = vmatprep.subr.mxu0 0.0
    %2378 = vmatpush2.msra.mxu0 0.0
    %2379 = vmatprep.subr.mxu0 0.0
    %2380 = vmatpush2.msra.mxu0 0.0
    %2381 = vmatprep.subr.mxu0 0.0
    %2382 = vmatpush2.msra.mxu0 0.0
    %2383 = vmatprep.subr.mxu0 0.0
    %2384 = vmatpush2.msra.mxu0 0.0
    %2385 = vmatprep.subr.mxu0 0.0
    %2386 = vmatpush2.msra.mxu0 0.0
    %2387 = vmatprep.subr.mxu0 0.0
    %2388 = vmatpush2.msra.mxu0 0.0
    %2389 = vmatprep.subr.mxu0 0.0
    %2390 = vmatpush2.msra.mxu0 0.0
    %2391 = vmatprep.subr.mxu0 0.0
    %2392 = vmatpush2.msra.mxu0 0.0
    %2393 = vmatprep.subr.mxu0 0.0
    %2394 = vmatpush2.msra.mxu0 0.0
    %2395 = vmatprep.subr.mxu0 0.0
    %2396 = vmatpush2.msra.mxu0 0.0
    %2397 = vmatprep.subr.mxu0 0.0
    %2398 = vmatpush2.msra.mxu0 0.0
    %2399 = vmatprep.mubr.f32.mxu0 0.0
    %2400 = vmatmul.mubr.f32.gmra.mxu0 %v2161
    %v2401 = vpop.f32.mrf.mxu0
    %v2402 = vadd.f32 0.0, %v2401
    %v2403 = vpop.f32.mrf.mxu0
    %v2404 = vadd.f32 0.0, %v2403
    %2405 = vdwg.mxu0
    %2406 = vmatprep.subr.mxu0 %v469
    %2407 = vmatpush1.msra.mxu0 %v468
    %2408 = vmatprep.subr.mxu0 %v465
    %2409 = vmatpush1.msra.mxu0 %v464
    %2410 = vmatprep.subr.mxu0 %v461
    %2411 = vmatpush1.msra.mxu0 %v460
    %2412 = vmatprep.subr.mxu0 %v457
    %2413 = vmatpush1.msra.mxu0 %v456
    %2414 = vmatprep.subr.mxu0 %v453
    %2415 = vmatpush1.msra.mxu0 %v452
    %2416 = vmatprep.subr.mxu0 %v449
    %2417 = vmatpush1.msra.mxu0 %v448
    %2418 = vmatprep.subr.mxu0 %v445
    %2419 = vmatpush1.msra.mxu0 %v444
    %2420 = vmatprep.subr.mxu0 %v441
    %2421 = vmatpush1.msra.mxu0 %v440
    %2422 = vmatprep.subr.mxu0 %v437
    %2423 = vmatpush1.msra.mxu0 %v436
    %2424 = vmatprep.subr.mxu0 %v433
    %2425 = vmatpush1.msra.mxu0 %v432
    %2426 = vmatprep.subr.mxu0 %v429
    %2427 = vmatpush1.msra.mxu0 %v428
    %2428 = vmatprep.subr.mxu0 %v425
    %2429 = vmatpush1.msra.mxu0 %v424
    %2430 = vmatprep.subr.mxu0 %v421
    %2431 = vmatpush1.msra.mxu0 %v420
    %2432 = vmatprep.subr.mxu0 %v417
    %2433 = vmatpush1.msra.mxu0 %v416
    %2434 = vmatprep.subr.mxu0 %v413
    %2435 = vmatpush1.msra.mxu0 %v412
    %2436 = vmatprep.subr.mxu0 %v409
    %2437 = vmatpush1.msra.mxu0 %v408
    %2438 = vmatprep.subr.mxu0 0.0
    %2439 = vmatpush2.msra.mxu0 0.0
    %2440 = vmatprep.subr.mxu0 0.0
    %2441 = vmatpush2.msra.mxu0 0.0
    %2442 = vmatprep.subr.mxu0 0.0
    %2443 = vmatpush2.msra.mxu0 0.0
    %2444 = vmatprep.subr.mxu0 0.0
    %2445 = vmatpush2.msra.mxu0 0.0
    %2446 = vmatprep.subr.mxu0 0.0
    %2447 = vmatpush2.msra.mxu0 0.0
    %2448 = vmatprep.subr.mxu0 0.0
    %2449 = vmatpush2.msra.mxu0 0.0
    %2450 = vmatprep.subr.mxu0 0.0
    %2451 = vmatpush2.msra.mxu0 0.0
    %2452 = vmatprep.subr.mxu0 0.0
    %2453 = vmatpush2.msra.mxu0 0.0
    %2454 = vmatprep.subr.mxu0 0.0
    %2455 = vmatpush2.msra.mxu0 0.0
    %2456 = vmatprep.subr.mxu0 0.0
    %2457 = vmatpush2.msra.mxu0 0.0
    %2458 = vmatprep.subr.mxu0 0.0
    %2459 = vmatpush2.msra.mxu0 0.0
    %2460 = vmatprep.subr.mxu0 0.0
    %2461 = vmatpush2.msra.mxu0 0.0
    %2462 = vmatprep.subr.mxu0 0.0
    %2463 = vmatpush2.msra.mxu0 0.0
    %2464 = vmatprep.subr.mxu0 0.0
    %2465 = vmatpush2.msra.mxu0 0.0
    %2466 = vmatprep.subr.mxu0 0.0
    %2467 = vmatpush2.msra.mxu0 0.0
    %2468 = vmatprep.subr.mxu0 0.0
    %2469 = vmatpush2.msra.mxu0 0.0
    %2470 = vmatprep.mubr.f32.mxu0 0.0
    %2471 = vmatmul.mubr.f32.gmra.mxu0 %v2161
    %v2472 = vpop.f32.mrf.mxu0
    %v2473 = vadd.f32 0.0, %v2472
    %v2474 = vpop.f32.mrf.mxu0
    %v2475 = vadd.f32 0.0, %v2474
    %2476 = vdwg.mxu0
    %v2477 = vadd.f32 %v2331, %v2402
    %v2478 = vadd.f32 %v2332, %v2404
    %v2479 = vadd.f32 %v2333, %v2473
    %v2480 = vadd.f32 %v2334, %v2475
    %v2481 = vxor.u32 %v2477, 2147483648
    %v2482 = vmul.f32 %v2481, 1.442695
    %v2483 = vpow.pop %v2482
    %v2484 = vadd.f32 %v2483, 1.0
    %v2485 = vrcp.pop %v2484
    %v2486 = vmul.f32 1.0, %v2485
    %v2487 = vxor.u32 %v2478, 2147483648
    %v2488 = vmul.f32 %v2487, 1.442695
    %v2489 = vpow.pop %v2488
    %v2490 = vadd.f32 %v2489, 1.0
    %v2491 = vrcp.pop %v2490
    %v2492 = vmul.f32 1.0, %v2491
    %v2493 = vtanh.pop %v2479
    %v2494 = vxor.u32 %v2480, 2147483648
    %v2495 = vmul.f32 %v2494, 1.442695
    %v2496 = vpow.pop %v2495
    %v2497 = vadd.f32 %v2496, 1.0
    %v2498 = vrcp.pop %v2497
    %v2499 = vmul.f32 1.0, %v2498
    %v2500 = vmul.f32 %v2492, %v2159
    %v2501 = vmul.f32 %v2486, %v2493
    %v2502 = vadd.f32 %v2500, %v2501
    %v2503 = vtanh.pop %v2502
    %v2504 = vmul.f32 %v2499, %v2503
    %2505 = vmatprep.subr.mxu0 %v701
    %2506 = vmatpush1.msra.mxu0 %v700
    %2507 = vmatprep.subr.mxu0 %v697
    %2508 = vmatpush1.msra.mxu0 %v696
    %2509 = vmatprep.subr.mxu0 %v693
    %2510 = vmatpush1.msra.mxu0 %v692
    %2511 = vmatprep.subr.mxu0 %v689
    %2512 = vmatpush1.msra.mxu0 %v688
    %2513 = vmatprep.subr.mxu0 %v685
    %2514 = vmatpush1.msra.mxu0 %v684
    %2515 = vmatprep.subr.mxu0 %v681
    %2516 = vmatpush1.msra.mxu0 %v680
    %2517 = vmatprep.subr.mxu0 %v677
    %2518 = vmatpush1.msra.mxu0 %v676
    %2519 = vmatprep.subr.mxu0 %v673
    %2520 = vmatpush1.msra.mxu0 %v672
    %2521 = vmatprep.subr.mxu0 %v669
    %2522 = vmatpush1.msra.mxu0 %v668
    %2523 = vmatprep.subr.mxu0 %v665
    %2524 = vmatpush1.msra.mxu0 %v664
    %2525 = vmatprep.subr.mxu0 %v661
    %2526 = vmatpush1.msra.mxu0 %v660
    %2527 = vmatprep.subr.mxu0 %v657
    %2528 = vmatpush1.msra.mxu0 %v656
    %2529 = vmatprep.subr.mxu0 %v653
    %2530 = vmatpush1.msra.mxu0 %v652
    %2531 = vmatprep.subr.mxu0 %v649
    %2532 = vmatpush1.msra.mxu0 %v648
    %2533 = vmatprep.subr.mxu0 %v645
    %2534 = vmatpush1.msra.mxu0 %v644
    %2535 = vmatprep.subr.mxu0 %v641
    %2536 = vmatpush1.msra.mxu0 %v640
    %2537 = vmatprep.subr.mxu0 %v765
    %2538 = vmatpush2.msra.mxu0 %v764
    %2539 = vmatprep.subr.mxu0 %v761
    %2540 = vmatpush2.msra.mxu0 %v760
    %2541 = vmatprep.subr.mxu0 %v757
    %2542 = vmatpush2.msra.mxu0 %v756
    %2543 = vmatprep.subr.mxu0 %v753
    %2544 = vmatpush2.msra.mxu0 %v752
    %2545 = vmatprep.subr.mxu0 %v749
    %2546 = vmatpush2.msra.mxu0 %v748
    %2547 = vmatprep.subr.mxu0 %v745
    %2548 = vmatpush2.msra.mxu0 %v744
    %2549 = vmatprep.subr.mxu0 %v741
    %2550 = vmatpush2.msra.mxu0 %v740
    %2551 = vmatprep.subr.mxu0 %v737
    %2552 = vmatpush2.msra.mxu0 %v736
    %2553 = vmatprep.subr.mxu0 %v733
    %2554 = vmatpush2.msra.mxu0 %v732
    %2555 = vmatprep.subr.mxu0 %v729
    %2556 = vmatpush2.msra.mxu0 %v728
    %2557 = vmatprep.subr.mxu0 %v725
    %2558 = vmatpush2.msra.mxu0 %v724
    %2559 = vmatprep.subr.mxu0 %v721
    %2560 = vmatpush2.msra.mxu0 %v720
    %2561 = vmatprep.subr.mxu0 %v717
    %2562 = vmatpush2.msra.mxu0 %v716
    %2563 = vmatprep.subr.mxu0 %v713
    %2564 = vmatpush2.msra.mxu0 %v712
    %2565 = vmatprep.subr.mxu0 %v709
    %2566 = vmatpush2.msra.mxu0 %v708
    %2567 = vmatprep.subr.mxu0 %v705
    %2568 = vmatpush2.msra.mxu0 %v704
    %2569 = vmatprep.mubr.f32.mxu0 %v2327
    %2570 = vmatmul.mubr.f32.gmra.mxu0 %v2504
    %v2571 = vpop.f32.mrf.mxu0
    %v2572 = vadd.f32 %v773, %v2571
    %v2573 = vpop.f32.mrf.mxu0
    %v2574 = vadd.f32 %v777, %v2573
    %2575 = vdwg.mxu0
    %2576 = vmatprep.subr.mxu0 %v703
    %2577 = vmatpush1.msra.mxu0 %v702
    %2578 = vmatprep.subr.mxu0 %v699
    %2579 = vmatpush1.msra.mxu0 %v698
    %2580 = vmatprep.subr.mxu0 %v695
    %2581 = vmatpush1.msra.mxu0 %v694
    %2582 = vmatprep.subr.mxu0 %v691
    %2583 = vmatpush1.msra.mxu0 %v690
    %2584 = vmatprep.subr.mxu0 %v687
    %2585 = vmatpush1.msra.mxu0 %v686
    %2586 = vmatprep.subr.mxu0 %v683
    %2587 = vmatpush1.msra.mxu0 %v682
    %2588 = vmatprep.subr.mxu0 %v679
    %2589 = vmatpush1.msra.mxu0 %v678
    %2590 = vmatprep.subr.mxu0 %v675
    %2591 = vmatpush1.msra.mxu0 %v674
    %2592 = vmatprep.subr.mxu0 %v671
    %2593 = vmatpush1.msra.mxu0 %v670
    %2594 = vmatprep.subr.mxu0 %v667
    %2595 = vmatpush1.msra.mxu0 %v666
    %2596 = vmatprep.subr.mxu0 %v663
    %2597 = vmatpush1.msra.mxu0 %v662
    %2598 = vmatprep.subr.mxu0 %v659
    %2599 = vmatpush1.msra.mxu0 %v658
    %2600 = vmatprep.subr.mxu0 %v655
    %2601 = vmatpush1.msra.mxu0 %v654
    %2602 = vmatprep.subr.mxu0 %v651
    %2603 = vmatpush1.msra.mxu0 %v650
    %2604 = vmatprep.subr.mxu0 %v647
    %2605 = vmatpush1.msra.mxu0 %v646
    %2606 = vmatprep.subr.mxu0 %v643
    %2607 = vmatpush1.msra.mxu0 %v642
    %2608 = vmatprep.subr.mxu0 %v767
    %2609 = vmatpush2.msra.mxu0 %v766
    %2610 = vmatprep.subr.mxu0 %v763
    %2611 = vmatpush2.msra.mxu0 %v762
    %2612 = vmatprep.subr.mxu0 %v759
    %2613 = vmatpush2.msra.mxu0 %v758
    %2614 = vmatprep.subr.mxu0 %v755
    %2615 = vmatpush2.msra.mxu0 %v754
    %2616 = vmatprep.subr.mxu0 %v751
    %2617 = vmatpush2.msra.mxu0 %v750
    %2618 = vmatprep.subr.mxu0 %v747
    %2619 = vmatpush2.msra.mxu0 %v746
    %2620 = vmatprep.subr.mxu0 %v743
    %2621 = vmatpush2.msra.mxu0 %v742
    %2622 = vmatprep.subr.mxu0 %v739
    %2623 = vmatpush2.msra.mxu0 %v738
    %2624 = vmatprep.subr.mxu0 %v735
    %2625 = vmatpush2.msra.mxu0 %v734
    %2626 = vmatprep.subr.mxu0 %v731
    %2627 = vmatpush2.msra.mxu0 %v730
    %2628 = vmatprep.subr.mxu0 %v727
    %2629 = vmatpush2.msra.mxu0 %v726
    %2630 = vmatprep.subr.mxu0 %v723
    %2631 = vmatpush2.msra.mxu0 %v722
    %2632 = vmatprep.subr.mxu0 %v719
    %2633 = vmatpush2.msra.mxu0 %v718
    %2634 = vmatprep.subr.mxu0 %v715
    %2635 = vmatpush2.msra.mxu0 %v714
    %2636 = vmatprep.subr.mxu0 %v711
    %2637 = vmatpush2.msra.mxu0 %v710
    %2638 = vmatprep.subr.mxu0 %v707
    %2639 = vmatpush2.msra.mxu0 %v706
    %2640 = vmatprep.mubr.f32.mxu0 %v2327
    %2641 = vmatmul.mubr.f32.gmra.mxu0 %v2504
    %v2642 = vpop.f32.mrf.mxu0
    %v2643 = vadd.f32 %v781, %v2642
    %v2644 = vpop.f32.mrf.mxu0
    %v2645 = vadd.f32 %v785, %v2644
    %2646 = vdwg.mxu0
    %v2647 = vxor.u32 %v2572, 2147483648
    %v2648 = vmul.f32 %v2647, 1.442695
    %v2649 = vpow.pop %v2648
    %v2650 = vadd.f32 %v2649, 1.0
    %v2651 = vrcp.pop %v2650
    %v2652 = vmul.f32 1.0, %v2651
    %v2653 = vxor.u32 %v2574, 2147483648
    %v2654 = vmul.f32 %v2653, 1.442695
    %v2655 = vpow.pop %v2654
    %v2656 = vadd.f32 %v2655, 1.0
    %v2657 = vrcp.pop %v2656
    %v2658 = vmul.f32 1.0, %v2657
    %v2659 = vtanh.pop %v2643
    %v2660 = vxor.u32 %v2645, 2147483648
    %v2661 = vmul.f32 %v2660, 1.442695
    %v2662 = vpow.pop %v2661
    %v2663 = vadd.f32 %v2662, 1.0
    %v2664 = vrcp.pop %v2663
    %v2665 = vmul.f32 1.0, %v2664
    %v2666 = vmul.f32 %v2658, %v2325
    %v2667 = vmul.f32 %v2652, %v2659
    %v2668 = vadd.f32 %v2666, %v2667
    %v2669 = vtanh.pop %v2668
    %v2670 = vmul.f32 %v2665, %v2669
    %s2671 = smul.u32 6, 4
    %s2672 = smul.addr %s2671, 8
    %s2673 = scalar_lea.vmem [#allocation2], %s2672
    %v2674 = vld [vmem:[%s2673] sm:$0xff]
    %v2675 = vld [vmem:[%s2673 + $0x8] sm:$0xff]
    %v2676 = vld [vmem:[%s2673 + $0x10] sm:$0xff]
    %v2677 = vld [vmem:[%s2673 + $0x18] sm:$0xff]
    %2678 = vmatprep.subr.mxu0 %v467
    %2679 = vmatpush1.msra.mxu0 %v466
    %2680 = vmatprep.subr.mxu0 %v463
    %2681 = vmatpush1.msra.mxu0 %v462
    %2682 = vmatprep.subr.mxu0 %v459
    %2683 = vmatpush1.msra.mxu0 %v458
    %2684 = vmatprep.subr.mxu0 %v455
    %2685 = vmatpush1.msra.mxu0 %v454
    %2686 = vmatprep.subr.mxu0 %v451
    %2687 = vmatpush1.msra.mxu0 %v450
    %2688 = vmatprep.subr.mxu0 %v447
    %2689 = vmatpush1.msra.mxu0 %v446
    %2690 = vmatprep.subr.mxu0 %v443
    %2691 = vmatpush1.msra.mxu0 %v442
    %2692 = vmatprep.subr.mxu0 %v439
    %2693 = vmatpush1.msra.mxu0 %v438
    %2694 = vmatprep.subr.mxu0 %v435
    %2695 = vmatpush1.msra.mxu0 %v434
    %2696 = vmatprep.subr.mxu0 %v431
    %2697 = vmatpush1.msra.mxu0 %v430
    %2698 = vmatprep.subr.mxu0 %v427
    %2699 = vmatpush1.msra.mxu0 %v426
    %2700 = vmatprep.subr.mxu0 %v423
    %2701 = vmatpush1.msra.mxu0 %v422
    %2702 = vmatprep.subr.mxu0 %v419
    %2703 = vmatpush1.msra.mxu0 %v418
    %2704 = vmatprep.subr.mxu0 %v415
    %2705 = vmatpush1.msra.mxu0 %v414
    %2706 = vmatprep.subr.mxu0 %v411
    %2707 = vmatpush1.msra.mxu0 %v410
    %2708 = vmatprep.subr.mxu0 %v407
    %2709 = vmatpush1.msra.mxu0 %v406
    %2710 = vmatprep.subr.mxu0 0.0
    %2711 = vmatpush2.msra.mxu0 0.0
    %2712 = vmatprep.subr.mxu0 0.0
    %2713 = vmatpush2.msra.mxu0 0.0
    %2714 = vmatprep.subr.mxu0 0.0
    %2715 = vmatpush2.msra.mxu0 0.0
    %2716 = vmatprep.subr.mxu0 0.0
    %2717 = vmatpush2.msra.mxu0 0.0
    %2718 = vmatprep.subr.mxu0 0.0
    %2719 = vmatpush2.msra.mxu0 0.0
    %2720 = vmatprep.subr.mxu0 0.0
    %2721 = vmatpush2.msra.mxu0 0.0
    %2722 = vmatprep.subr.mxu0 0.0
    %2723 = vmatpush2.msra.mxu0 0.0
    %2724 = vmatprep.subr.mxu0 0.0
    %2725 = vmatpush2.msra.mxu0 0.0
    %2726 = vmatprep.subr.mxu0 0.0
    %2727 = vmatpush2.msra.mxu0 0.0
    %2728 = vmatprep.subr.mxu0 0.0
    %2729 = vmatpush2.msra.mxu0 0.0
    %2730 = vmatprep.subr.mxu0 0.0
    %2731 = vmatpush2.msra.mxu0 0.0
    %2732 = vmatprep.subr.mxu0 0.0
    %2733 = vmatpush2.msra.mxu0 0.0
    %2734 = vmatprep.subr.mxu0 0.0
    %2735 = vmatpush2.msra.mxu0 0.0
    %2736 = vmatprep.subr.mxu0 0.0
    %2737 = vmatpush2.msra.mxu0 0.0
    %2738 = vmatprep.subr.mxu0 0.0
    %2739 = vmatpush2.msra.mxu0 0.0
    %2740 = vmatprep.subr.mxu0 0.0
    %2741 = vmatpush2.msra.mxu0 0.0
    %2742 = vmatprep.mubr.f32.mxu0 0.0
    %2743 = vmatmul.mubr.f32.gmra.mxu0 %v2504
    %v2744 = vpop.f32.mrf.mxu0
    %v2745 = vadd.f32 0.0, %v2744
    %v2746 = vpop.f32.mrf.mxu0
    %v2747 = vadd.f32 0.0, %v2746
    %2748 = vdwg.mxu0
    %2749 = vmatprep.subr.mxu0 %v469
    %2750 = vmatpush1.msra.mxu0 %v468
    %2751 = vmatprep.subr.mxu0 %v465
    %2752 = vmatpush1.msra.mxu0 %v464
    %2753 = vmatprep.subr.mxu0 %v461
    %2754 = vmatpush1.msra.mxu0 %v460
    %2755 = vmatprep.subr.mxu0 %v457
    %2756 = vmatpush1.msra.mxu0 %v456
    %2757 = vmatprep.subr.mxu0 %v453
    %2758 = vmatpush1.msra.mxu0 %v452
    %2759 = vmatprep.subr.mxu0 %v449
    %2760 = vmatpush1.msra.mxu0 %v448
    %2761 = vmatprep.subr.mxu0 %v445
    %2762 = vmatpush1.msra.mxu0 %v444
    %2763 = vmatprep.subr.mxu0 %v441
    %2764 = vmatpush1.msra.mxu0 %v440
    %2765 = vmatprep.subr.mxu0 %v437
    %2766 = vmatpush1.msra.mxu0 %v436
    %2767 = vmatprep.subr.mxu0 %v433
    %2768 = vmatpush1.msra.mxu0 %v432
    %2769 = vmatprep.subr.mxu0 %v429
    %2770 = vmatpush1.msra.mxu0 %v428
    %2771 = vmatprep.subr.mxu0 %v425
    %2772 = vmatpush1.msra.mxu0 %v424
    %2773 = vmatprep.subr.mxu0 %v421
    %2774 = vmatpush1.msra.mxu0 %v420
    %2775 = vmatprep.subr.mxu0 %v417
    %2776 = vmatpush1.msra.mxu0 %v416
    %2777 = vmatprep.subr.mxu0 %v413
    %2778 = vmatpush1.msra.mxu0 %v412
    %2779 = vmatprep.subr.mxu0 %v409
    %2780 = vmatpush1.msra.mxu0 %v408
    %2781 = vmatprep.subr.mxu0 0.0
    %2782 = vmatpush2.msra.mxu0 0.0
    %2783 = vmatprep.subr.mxu0 0.0
    %2784 = vmatpush2.msra.mxu0 0.0
    %2785 = vmatprep.subr.mxu0 0.0
    %2786 = vmatpush2.msra.mxu0 0.0
    %2787 = vmatprep.subr.mxu0 0.0
    %2788 = vmatpush2.msra.mxu0 0.0
    %2789 = vmatprep.subr.mxu0 0.0
    %2790 = vmatpush2.msra.mxu0 0.0
    %2791 = vmatprep.subr.mxu0 0.0
    %2792 = vmatpush2.msra.mxu0 0.0
    %2793 = vmatprep.subr.mxu0 0.0
    %2794 = vmatpush2.msra.mxu0 0.0
    %2795 = vmatprep.subr.mxu0 0.0
    %2796 = vmatpush2.msra.mxu0 0.0
    %2797 = vmatprep.subr.mxu0 0.0
    %2798 = vmatpush2.msra.mxu0 0.0
    %2799 = vmatprep.subr.mxu0 0.0
    %2800 = vmatpush2.msra.mxu0 0.0
    %2801 = vmatprep.subr.mxu0 0.0
    %2802 = vmatpush2.msra.mxu0 0.0
    %2803 = vmatprep.subr.mxu0 0.0
    %2804 = vmatpush2.msra.mxu0 0.0
    %2805 = vmatprep.subr.mxu0 0.0
    %2806 = vmatpush2.msra.mxu0 0.0
    %2807 = vmatprep.subr.mxu0 0.0
    %2808 = vmatpush2.msra.mxu0 0.0
    %2809 = vmatprep.subr.mxu0 0.0
    %2810 = vmatpush2.msra.mxu0 0.0
    %2811 = vmatprep.subr.mxu0 0.0
    %2812 = vmatpush2.msra.mxu0 0.0
    %2813 = vmatprep.mubr.f32.mxu0 0.0
    %2814 = vmatmul.mubr.f32.gmra.mxu0 %v2504
    %v2815 = vpop.f32.mrf.mxu0
    %v2816 = vadd.f32 0.0, %v2815
    %v2817 = vpop.f32.mrf.mxu0
    %v2818 = vadd.f32 0.0, %v2817
    %2819 = vdwg.mxu0
    %v2820 = vadd.f32 %v2674, %v2745
    %v2821 = vadd.f32 %v2675, %v2747
    %v2822 = vadd.f32 %v2676, %v2816
    %v2823 = vadd.f32 %v2677, %v2818
    %v2824 = vxor.u32 %v2820, 2147483648
    %v2825 = vmul.f32 %v2824, 1.442695
    %v2826 = vpow.pop %v2825
    %v2827 = vadd.f32 %v2826, 1.0
    %v2828 = vrcp.pop %v2827
    %v2829 = vmul.f32 1.0, %v2828
    %v2830 = vxor.u32 %v2821, 2147483648
    %v2831 = vmul.f32 %v2830, 1.442695
    %v2832 = vpow.pop %v2831
    %v2833 = vadd.f32 %v2832, 1.0
    %v2834 = vrcp.pop %v2833
    %v2835 = vmul.f32 1.0, %v2834
    %v2836 = vtanh.pop %v2822
    %v2837 = vxor.u32 %v2823, 2147483648
    %v2838 = vmul.f32 %v2837, 1.442695
    %v2839 = vpow.pop %v2838
    %v2840 = vadd.f32 %v2839, 1.0
    %v2841 = vrcp.pop %v2840
    %v2842 = vmul.f32 1.0, %v2841
    %v2843 = vmul.f32 %v2835, %v2502
    %v2844 = vmul.f32 %v2829, %v2836
    %v2845 = vadd.f32 %v2843, %v2844
    %v2846 = vtanh.pop %v2845
    %v2847 = vmul.f32 %v2842, %v2846
    %2848 = vmatprep.subr.mxu0 %v701
    %2849 = vmatpush1.msra.mxu0 %v700
    %2850 = vmatprep.subr.mxu0 %v697
    %2851 = vmatpush1.msra.mxu0 %v696
    %2852 = vmatprep.subr.mxu0 %v693
    %2853 = vmatpush1.msra.mxu0 %v692
    %2854 = vmatprep.subr.mxu0 %v689
    %2855 = vmatpush1.msra.mxu0 %v688
    %2856 = vmatprep.subr.mxu0 %v685
    %2857 = vmatpush1.msra.mxu0 %v684
    %2858 = vmatprep.subr.mxu0 %v681
    %2859 = vmatpush1.msra.mxu0 %v680
    %2860 = vmatprep.subr.mxu0 %v677
    %2861 = vmatpush1.msra.mxu0 %v676
    %2862 = vmatprep.subr.mxu0 %v673
    %2863 = vmatpush1.msra.mxu0 %v672
    %2864 = vmatprep.subr.mxu0 %v669
    %2865 = vmatpush1.msra.mxu0 %v668
    %2866 = vmatprep.subr.mxu0 %v665
    %2867 = vmatpush1.msra.mxu0 %v664
    %2868 = vmatprep.subr.mxu0 %v661
    %2869 = vmatpush1.msra.mxu0 %v660
    %2870 = vmatprep.subr.mxu0 %v657
    %2871 = vmatpush1.msra.mxu0 %v656
    %2872 = vmatprep.subr.mxu0 %v653
    %2873 = vmatpush1.msra.mxu0 %v652
    %2874 = vmatprep.subr.mxu0 %v649
    %2875 = vmatpush1.msra.mxu0 %v648
    %2876 = vmatprep.subr.mxu0 %v645
    %2877 = vmatpush1.msra.mxu0 %v644
    %2878 = vmatprep.subr.mxu0 %v641
    %2879 = vmatpush1.msra.mxu0 %v640
    %2880 = vmatprep.subr.mxu0 %v765
    %2881 = vmatpush2.msra.mxu0 %v764
    %2882 = vmatprep.subr.mxu0 %v761
    %2883 = vmatpush2.msra.mxu0 %v760
    %2884 = vmatprep.subr.mxu0 %v757
    %2885 = vmatpush2.msra.mxu0 %v756
    %2886 = vmatprep.subr.mxu0 %v753
    %2887 = vmatpush2.msra.mxu0 %v752
    %2888 = vmatprep.subr.mxu0 %v749
    %2889 = vmatpush2.msra.mxu0 %v748
    %2890 = vmatprep.subr.mxu0 %v745
    %2891 = vmatpush2.msra.mxu0 %v744
    %2892 = vmatprep.subr.mxu0 %v741
    %2893 = vmatpush2.msra.mxu0 %v740
    %2894 = vmatprep.subr.mxu0 %v737
    %2895 = vmatpush2.msra.mxu0 %v736
    %2896 = vmatprep.subr.mxu0 %v733
    %2897 = vmatpush2.msra.mxu0 %v732
    %2898 = vmatprep.subr.mxu0 %v729
    %2899 = vmatpush2.msra.mxu0 %v728
    %2900 = vmatprep.subr.mxu0 %v725
    %2901 = vmatpush2.msra.mxu0 %v724
    %2902 = vmatprep.subr.mxu0 %v721
    %2903 = vmatpush2.msra.mxu0 %v720
    %2904 = vmatprep.subr.mxu0 %v717
    %2905 = vmatpush2.msra.mxu0 %v716
    %2906 = vmatprep.subr.mxu0 %v713
    %2907 = vmatpush2.msra.mxu0 %v712
    %2908 = vmatprep.subr.mxu0 %v709
    %2909 = vmatpush2.msra.mxu0 %v708
    %2910 = vmatprep.subr.mxu0 %v705
    %2911 = vmatpush2.msra.mxu0 %v704
    %2912 = vmatprep.mubr.f32.mxu0 %v2670
    %2913 = vmatmul.mubr.f32.gmra.mxu0 %v2847
    %v2914 = vpop.f32.mrf.mxu0
    %v2915 = vadd.f32 %v773, %v2914
    %v2916 = vpop.f32.mrf.mxu0
    %v2917 = vadd.f32 %v777, %v2916
    %2918 = vdwg.mxu0
    %2919 = vmatprep.subr.mxu0 %v703
    %2920 = vmatpush1.msra.mxu0 %v702
    %2921 = vmatprep.subr.mxu0 %v699
    %2922 = vmatpush1.msra.mxu0 %v698
    %2923 = vmatprep.subr.mxu0 %v695
    %2924 = vmatpush1.msra.mxu0 %v694
    %2925 = vmatprep.subr.mxu0 %v691
    %2926 = vmatpush1.msra.mxu0 %v690
    %2927 = vmatprep.subr.mxu0 %v687
    %2928 = vmatpush1.msra.mxu0 %v686
    %2929 = vmatprep.subr.mxu0 %v683
    %2930 = vmatpush1.msra.mxu0 %v682
    %2931 = vmatprep.subr.mxu0 %v679
    %2932 = vmatpush1.msra.mxu0 %v678
    %2933 = vmatprep.subr.mxu0 %v675
    %2934 = vmatpush1.msra.mxu0 %v674
    %2935 = vmatprep.subr.mxu0 %v671
    %2936 = vmatpush1.msra.mxu0 %v670
    %2937 = vmatprep.subr.mxu0 %v667
    %2938 = vmatpush1.msra.mxu0 %v666
    %2939 = vmatprep.subr.mxu0 %v663
    %2940 = vmatpush1.msra.mxu0 %v662
    %2941 = vmatprep.subr.mxu0 %v659
    %2942 = vmatpush1.msra.mxu0 %v658
    %2943 = vmatprep.subr.mxu0 %v655
    %2944 = vmatpush1.msra.mxu0 %v654
    %2945 = vmatprep.subr.mxu0 %v651
    %2946 = vmatpush1.msra.mxu0 %v650
    %2947 = vmatprep.subr.mxu0 %v647
    %2948 = vmatpush1.msra.mxu0 %v646
    %2949 = vmatprep.subr.mxu0 %v643
    %2950 = vmatpush1.msra.mxu0 %v642
    %2951 = vmatprep.subr.mxu0 %v767
    %2952 = vmatpush2.msra.mxu0 %v766
    %2953 = vmatprep.subr.mxu0 %v763
    %2954 = vmatpush2.msra.mxu0 %v762
    %2955 = vmatprep.subr.mxu0 %v759
    %2956 = vmatpush2.msra.mxu0 %v758
    %2957 = vmatprep.subr.mxu0 %v755
    %2958 = vmatpush2.msra.mxu0 %v754
    %2959 = vmatprep.subr.mxu0 %v751
    %2960 = vmatpush2.msra.mxu0 %v750
    %2961 = vmatprep.subr.mxu0 %v747
    %2962 = vmatpush2.msra.mxu0 %v746
    %2963 = vmatprep.subr.mxu0 %v743
    %2964 = vmatpush2.msra.mxu0 %v742
    %2965 = vmatprep.subr.mxu0 %v739
    %2966 = vmatpush2.msra.mxu0 %v738
    %2967 = vmatprep.subr.mxu0 %v735
    %2968 = vmatpush2.msra.mxu0 %v734
    %2969 = vmatprep.subr.mxu0 %v731
    %2970 = vmatpush2.msra.mxu0 %v730
    %2971 = vmatprep.subr.mxu0 %v727
    %2972 = vmatpush2.msra.mxu0 %v726
    %2973 = vmatprep.subr.mxu0 %v723
    %2974 = vmatpush2.msra.mxu0 %v722
    %2975 = vmatprep.subr.mxu0 %v719
    %2976 = vmatpush2.msra.mxu0 %v718
    %2977 = vmatprep.subr.mxu0 %v715
    %2978 = vmatpush2.msra.mxu0 %v714
    %2979 = vmatprep.subr.mxu0 %v711
    %2980 = vmatpush2.msra.mxu0 %v710
    %2981 = vmatprep.subr.mxu0 %v707
    %2982 = vmatpush2.msra.mxu0 %v706
    %2983 = vmatprep.mubr.f32.mxu0 %v2670
    %2984 = vmatmul.mubr.f32.gmra.mxu0 %v2847
    %v2985 = vpop.f32.mrf.mxu0
    %v2986 = vadd.f32 %v781, %v2985
    %v2987 = vpop.f32.mrf.mxu0
    %v2988 = vadd.f32 %v785, %v2987
    %2989 = vdwg.mxu0
    %v2990 = vxor.u32 %v2915, 2147483648
    %v2991 = vmul.f32 %v2990, 1.442695
    %v2992 = vpow.pop %v2991
    %v2993 = vadd.f32 %v2992, 1.0
    %v2994 = vrcp.pop %v2993
    %v2995 = vmul.f32 1.0, %v2994
    %v2996 = vxor.u32 %v2917, 2147483648
    %v2997 = vmul.f32 %v2996, 1.442695
    %v2998 = vpow.pop %v2997
    %v2999 = vadd.f32 %v2998, 1.0
    %v3000 = vrcp.pop %v2999
    %v3001 = vmul.f32 1.0, %v3000
    %v3002 = vtanh.pop %v2986
    %v3003 = vxor.u32 %v2988, 2147483648
    %v3004 = vmul.f32 %v3003, 1.442695
    %v3005 = vpow.pop %v3004
    %v3006 = vadd.f32 %v3005, 1.0
    %v3007 = vrcp.pop %v3006
    %v3008 = vmul.f32 1.0, %v3007
    %v3009 = vmul.f32 %v3001, %v2668
    %v3010 = vmul.f32 %v2995, %v3002
    %v3011 = vadd.f32 %v3009, %v3010
    %v3012 = vtanh.pop %v3011
    %v3013 = vmul.f32 %v3008, %v3012
    %s3014 = smul.u32 7, 4
    %s3015 = smul.addr %s3014, 8
    %s3016 = scalar_lea.vmem [#allocation2], %s3015
    %v3017 = vld [vmem:[%s3016] sm:$0xff]
    %v3018 = vld [vmem:[%s3016 + $0x8] sm:$0xff]
    %v3019 = vld [vmem:[%s3016 + $0x10] sm:$0xff]
    %v3020 = vld [vmem:[%s3016 + $0x18] sm:$0xff]
    %3021 = vmatprep.subr.mxu0 %v467
    %3022 = vmatpush1.msra.mxu0 %v466
    %3023 = vmatprep.subr.mxu0 %v463
    %3024 = vmatpush1.msra.mxu0 %v462
    %3025 = vmatprep.subr.mxu0 %v459
    %3026 = vmatpush1.msra.mxu0 %v458
    %3027 = vmatprep.subr.mxu0 %v455
    %3028 = vmatpush1.msra.mxu0 %v454
    %3029 = vmatprep.subr.mxu0 %v451
    %3030 = vmatpush1.msra.mxu0 %v450
    %3031 = vmatprep.subr.mxu0 %v447
    %3032 = vmatpush1.msra.mxu0 %v446
    %3033 = vmatprep.subr.mxu0 %v443
    %3034 = vmatpush1.msra.mxu0 %v442
    %3035 = vmatprep.subr.mxu0 %v439
    %3036 = vmatpush1.msra.mxu0 %v438
    %3037 = vmatprep.subr.mxu0 %v435
    %3038 = vmatpush1.msra.mxu0 %v434
    %3039 = vmatprep.subr.mxu0 %v431
    %3040 = vmatpush1.msra.mxu0 %v430
    %3041 = vmatprep.subr.mxu0 %v427
    %3042 = vmatpush1.msra.mxu0 %v426
    %3043 = vmatprep.subr.mxu0 %v423
    %3044 = vmatpush1.msra.mxu0 %v422
    %3045 = vmatprep.subr.mxu0 %v419
    %3046 = vmatpush1.msra.mxu0 %v418
    %3047 = vmatprep.subr.mxu0 %v415
    %3048 = vmatpush1.msra.mxu0 %v414
    %3049 = vmatprep.subr.mxu0 %v411
    %3050 = vmatpush1.msra.mxu0 %v410
    %3051 = vmatprep.subr.mxu0 %v407
    %3052 = vmatpush1.msra.mxu0 %v406
    %3053 = vmatprep.subr.mxu0 0.0
    %3054 = vmatpush2.msra.mxu0 0.0
    %3055 = vmatprep.subr.mxu0 0.0
    %3056 = vmatpush2.msra.mxu0 0.0
    %3057 = vmatprep.subr.mxu0 0.0
    %3058 = vmatpush2.msra.mxu0 0.0
    %3059 = vmatprep.subr.mxu0 0.0
    %3060 = vmatpush2.msra.mxu0 0.0
    %3061 = vmatprep.subr.mxu0 0.0
    %3062 = vmatpush2.msra.mxu0 0.0
    %3063 = vmatprep.subr.mxu0 0.0
    %3064 = vmatpush2.msra.mxu0 0.0
    %3065 = vmatprep.subr.mxu0 0.0
    %3066 = vmatpush2.msra.mxu0 0.0
    %3067 = vmatprep.subr.mxu0 0.0
    %3068 = vmatpush2.msra.mxu0 0.0
    %3069 = vmatprep.subr.mxu0 0.0
    %3070 = vmatpush2.msra.mxu0 0.0
    %3071 = vmatprep.subr.mxu0 0.0
    %3072 = vmatpush2.msra.mxu0 0.0
    %3073 = vmatprep.subr.mxu0 0.0
    %3074 = vmatpush2.msra.mxu0 0.0
    %3075 = vmatprep.subr.mxu0 0.0
    %3076 = vmatpush2.msra.mxu0 0.0
    %3077 = vmatprep.subr.mxu0 0.0
    %3078 = vmatpush2.msra.mxu0 0.0
    %3079 = vmatprep.subr.mxu0 0.0
    %3080 = vmatpush2.msra.mxu0 0.0
    %3081 = vmatprep.subr.mxu0 0.0
    %3082 = vmatpush2.msra.mxu0 0.0
    %3083 = vmatprep.subr.mxu0 0.0
    %3084 = vmatpush2.msra.mxu0 0.0
    %3085 = vmatprep.mubr.f32.mxu0 0.0
    %3086 = vmatmul.mubr.f32.gmra.mxu0 %v2847
    %v3087 = vpop.f32.mrf.mxu0
    %v3088 = vadd.f32 0.0, %v3087
    %v3089 = vpop.f32.mrf.mxu0
    %v3090 = vadd.f32 0.0, %v3089
    %3091 = vdwg.mxu0
    %3092 = vmatprep.subr.mxu0 %v469
    %3093 = vmatpush1.msra.mxu0 %v468
    %3094 = vmatprep.subr.mxu0 %v465
    %3095 = vmatpush1.msra.mxu0 %v464
    %3096 = vmatprep.subr.mxu0 %v461
    %3097 = vmatpush1.msra.mxu0 %v460
    %3098 = vmatprep.subr.mxu0 %v457
    %3099 = vmatpush1.msra.mxu0 %v456
    %3100 = vmatprep.subr.mxu0 %v453
    %3101 = vmatpush1.msra.mxu0 %v452
    %3102 = vmatprep.subr.mxu0 %v449
    %3103 = vmatpush1.msra.mxu0 %v448
    %3104 = vmatprep.subr.mxu0 %v445
    %3105 = vmatpush1.msra.mxu0 %v444
    %3106 = vmatprep.subr.mxu0 %v441
    %3107 = vmatpush1.msra.mxu0 %v440
    %3108 = vmatprep.subr.mxu0 %v437
    %3109 = vmatpush1.msra.mxu0 %v436
    %3110 = vmatprep.subr.mxu0 %v433
    %3111 = vmatpush1.msra.mxu0 %v432
    %3112 = vmatprep.subr.mxu0 %v429
    %3113 = vmatpush1.msra.mxu0 %v428
    %3114 = vmatprep.subr.mxu0 %v425
    %3115 = vmatpush1.msra.mxu0 %v424
    %3116 = vmatprep.subr.mxu0 %v421
    %3117 = vmatpush1.msra.mxu0 %v420
    %3118 = vmatprep.subr.mxu0 %v417
    %3119 = vmatpush1.msra.mxu0 %v416
    %3120 = vmatprep.subr.mxu0 %v413
    %3121 = vmatpush1.msra.mxu0 %v412
    %3122 = vmatprep.subr.mxu0 %v409
    %3123 = vmatpush1.msra.mxu0 %v408
    %3124 = vmatprep.subr.mxu0 0.0
    %3125 = vmatpush2.msra.mxu0 0.0
    %3126 = vmatprep.subr.mxu0 0.0
    %3127 = vmatpush2.msra.mxu0 0.0
    %3128 = vmatprep.subr.mxu0 0.0
    %3129 = vmatpush2.msra.mxu0 0.0
    %3130 = vmatprep.subr.mxu0 0.0
    %3131 = vmatpush2.msra.mxu0 0.0
    %3132 = vmatprep.subr.mxu0 0.0
    %3133 = vmatpush2.msra.mxu0 0.0
    %3134 = vmatprep.subr.mxu0 0.0
    %3135 = vmatpush2.msra.mxu0 0.0
    %3136 = vmatprep.subr.mxu0 0.0
    %3137 = vmatpush2.msra.mxu0 0.0
    %3138 = vmatprep.subr.mxu0 0.0
    %3139 = vmatpush2.msra.mxu0 0.0
    %3140 = vmatprep.subr.mxu0 0.0
    %3141 = vmatpush2.msra.mxu0 0.0
    %3142 = vmatprep.subr.mxu0 0.0
    %3143 = vmatpush2.msra.mxu0 0.0
    %3144 = vmatprep.subr.mxu0 0.0
    %3145 = vmatpush2.msra.mxu0 0.0
    %3146 = vmatprep.subr.mxu0 0.0
    %3147 = vmatpush2.msra.mxu0 0.0
    %3148 = vmatprep.subr.mxu0 0.0
    %3149 = vmatpush2.msra.mxu0 0.0
    %3150 = vmatprep.subr.mxu0 0.0
    %3151 = vmatpush2.msra.mxu0 0.0
    %3152 = vmatprep.subr.mxu0 0.0
    %3153 = vmatpush2.msra.mxu0 0.0
    %3154 = vmatprep.subr.mxu0 0.0
    %3155 = vmatpush2.msra.mxu0 0.0
    %3156 = vmatprep.mubr.f32.mxu0 0.0
    %3157 = vmatmul.mubr.f32.gmra.mxu0 %v2847
    %v3158 = vpop.f32.mrf.mxu0
    %v3159 = vadd.f32 0.0, %v3158
    %v3160 = vpop.f32.mrf.mxu0
    %v3161 = vadd.f32 0.0, %v3160
    %3162 = vdwg.mxu0
    %v3163 = vadd.f32 %v3017, %v3088
    %v3164 = vadd.f32 %v3018, %v3090
    %v3165 = vadd.f32 %v3019, %v3159
    %v3166 = vadd.f32 %v3020, %v3161
    %v3167 = vxor.u32 %v3163, 2147483648
    %v3168 = vmul.f32 %v3167, 1.442695
    %v3169 = vpow.pop %v3168
    %v3170 = vadd.f32 %v3169, 1.0
    %v3171 = vrcp.pop %v3170
    %v3172 = vmul.f32 1.0, %v3171
    %v3173 = vxor.u32 %v3164, 2147483648
    %v3174 = vmul.f32 %v3173, 1.442695
    %v3175 = vpow.pop %v3174
    %v3176 = vadd.f32 %v3175, 1.0
    %v3177 = vrcp.pop %v3176
    %v3178 = vmul.f32 1.0, %v3177
    %v3179 = vtanh.pop %v3165
    %v3180 = vxor.u32 %v3166, 2147483648
    %v3181 = vmul.f32 %v3180, 1.442695
    %v3182 = vpow.pop %v3181
    %v3183 = vadd.f32 %v3182, 1.0
    %v3184 = vrcp.pop %v3183
    %v3185 = vmul.f32 1.0, %v3184
    %v3186 = vmul.f32 %v3178, %v2845
    %v3187 = vmul.f32 %v3172, %v3179
    %v3188 = vadd.f32 %v3186, %v3187
    %v3189 = vtanh.pop %v3188
    %v3190 = vmul.f32 %v3185, %v3189
    %3191 = vmatprep.subr.mxu0 %v701
    %3192 = vmatpush1.msra.mxu0 %v700
    %3193 = vmatprep.subr.mxu0 %v697
    %3194 = vmatpush1.msra.mxu0 %v696
    %3195 = vmatprep.subr.mxu0 %v693
    %3196 = vmatpush1.msra.mxu0 %v692
    %3197 = vmatprep.subr.mxu0 %v689
    %3198 = vmatpush1.msra.mxu0 %v688
    %3199 = vmatprep.subr.mxu0 %v685
    %3200 = vmatpush1.msra.mxu0 %v684
    %3201 = vmatprep.subr.mxu0 %v681
    %3202 = vmatpush1.msra.mxu0 %v680
    %3203 = vmatprep.subr.mxu0 %v677
    %3204 = vmatpush1.msra.mxu0 %v676
    %3205 = vmatprep.subr.mxu0 %v673
    %3206 = vmatpush1.msra.mxu0 %v672
    %3207 = vmatprep.subr.mxu0 %v669
    %3208 = vmatpush1.msra.mxu0 %v668
    %3209 = vmatprep.subr.mxu0 %v665
    %3210 = vmatpush1.msra.mxu0 %v664
    %3211 = vmatprep.subr.mxu0 %v661
    %3212 = vmatpush1.msra.mxu0 %v660
    %3213 = vmatprep.subr.mxu0 %v657
    %3214 = vmatpush1.msra.mxu0 %v656
    %3215 = vmatprep.subr.mxu0 %v653
    %3216 = vmatpush1.msra.mxu0 %v652
    %3217 = vmatprep.subr.mxu0 %v649
    %3218 = vmatpush1.msra.mxu0 %v648
    %3219 = vmatprep.subr.mxu0 %v645
    %3220 = vmatpush1.msra.mxu0 %v644
    %3221 = vmatprep.subr.mxu0 %v641
    %3222 = vmatpush1.msra.mxu0 %v640
    %3223 = vmatprep.subr.mxu0 %v765
    %3224 = vmatpush2.msra.mxu0 %v764
    %3225 = vmatprep.subr.mxu0 %v761
    %3226 = vmatpush2.msra.mxu0 %v760
    %3227 = vmatprep.subr.mxu0 %v757
    %3228 = vmatpush2.msra.mxu0 %v756
    %3229 = vmatprep.subr.mxu0 %v753
    %3230 = vmatpush2.msra.mxu0 %v752
    %3231 = vmatprep.subr.mxu0 %v749
    %3232 = vmatpush2.msra.mxu0 %v748
    %3233 = vmatprep.subr.mxu0 %v745
    %3234 = vmatpush2.msra.mxu0 %v744
    %3235 = vmatprep.subr.mxu0 %v741
    %3236 = vmatpush2.msra.mxu0 %v740
    %3237 = vmatprep.subr.mxu0 %v737
    %3238 = vmatpush2.msra.mxu0 %v736
    %3239 = vmatprep.subr.mxu0 %v733
    %3240 = vmatpush2.msra.mxu0 %v732
    %3241 = vmatprep.subr.mxu0 %v729
    %3242 = vmatpush2.msra.mxu0 %v728
    %3243 = vmatprep.subr.mxu0 %v725
    %3244 = vmatpush2.msra.mxu0 %v724
    %3245 = vmatprep.subr.mxu0 %v721
    %3246 = vmatpush2.msra.mxu0 %v720
    %3247 = vmatprep.subr.mxu0 %v717
    %3248 = vmatpush2.msra.mxu0 %v716
    %3249 = vmatprep.subr.mxu0 %v713
    %3250 = vmatpush2.msra.mxu0 %v712
    %3251 = vmatprep.subr.mxu0 %v709
    %3252 = vmatpush2.msra.mxu0 %v708
    %3253 = vmatprep.subr.mxu0 %v705
    %3254 = vmatpush2.msra.mxu0 %v704
    %3255 = vmatprep.mubr.f32.mxu0 %v3013
    %3256 = vmatmul.mubr.f32.gmra.mxu0 %v3190
    %v3257 = vpop.f32.mrf.mxu0
    %v3258 = vadd.f32 %v773, %v3257
    %v3259 = vpop.f32.mrf.mxu0
    %v3260 = vadd.f32 %v777, %v3259
    %3261 = vdwg.mxu0
    %3262 = vmatprep.subr.mxu0 %v703
    %3263 = vmatpush1.msra.mxu0 %v702
    %3264 = vmatprep.subr.mxu0 %v699
    %3265 = vmatpush1.msra.mxu0 %v698
    %3266 = vmatprep.subr.mxu0 %v695
    %3267 = vmatpush1.msra.mxu0 %v694
    %3268 = vmatprep.subr.mxu0 %v691
    %3269 = vmatpush1.msra.mxu0 %v690
    %3270 = vmatprep.subr.mxu0 %v687
    %3271 = vmatpush1.msra.mxu0 %v686
    %3272 = vmatprep.subr.mxu0 %v683
    %3273 = vmatpush1.msra.mxu0 %v682
    %3274 = vmatprep.subr.mxu0 %v679
    %3275 = vmatpush1.msra.mxu0 %v678
    %3276 = vmatprep.subr.mxu0 %v675
    %3277 = vmatpush1.msra.mxu0 %v674
    %3278 = vmatprep.subr.mxu0 %v671
    %3279 = vmatpush1.msra.mxu0 %v670
    %3280 = vmatprep.subr.mxu0 %v667
    %3281 = vmatpush1.msra.mxu0 %v666
    %3282 = vmatprep.subr.mxu0 %v663
    %3283 = vmatpush1.msra.mxu0 %v662
    %3284 = vmatprep.subr.mxu0 %v659
    %3285 = vmatpush1.msra.mxu0 %v658
    %3286 = vmatprep.subr.mxu0 %v655
    %3287 = vmatpush1.msra.mxu0 %v654
    %3288 = vmatprep.subr.mxu0 %v651
    %3289 = vmatpush1.msra.mxu0 %v650
    %3290 = vmatprep.subr.mxu0 %v647
    %3291 = vmatpush1.msra.mxu0 %v646
    %3292 = vmatprep.subr.mxu0 %v643
    %3293 = vmatpush1.msra.mxu0 %v642
    %3294 = vmatprep.subr.mxu0 %v767
    %3295 = vmatpush2.msra.mxu0 %v766
    %3296 = vmatprep.subr.mxu0 %v763
    %3297 = vmatpush2.msra.mxu0 %v762
    %3298 = vmatprep.subr.mxu0 %v759
    %3299 = vmatpush2.msra.mxu0 %v758
    %3300 = vmatprep.subr.mxu0 %v755
    %3301 = vmatpush2.msra.mxu0 %v754
    %3302 = vmatprep.subr.mxu0 %v751
    %3303 = vmatpush2.msra.mxu0 %v750
    %3304 = vmatprep.subr.mxu0 %v747
    %3305 = vmatpush2.msra.mxu0 %v746
    %3306 = vmatprep.subr.mxu0 %v743
    %3307 = vmatpush2.msra.mxu0 %v742
    %3308 = vmatprep.subr.mxu0 %v739
    %3309 = vmatpush2.msra.mxu0 %v738
    %3310 = vmatprep.subr.mxu0 %v735
    %3311 = vmatpush2.msra.mxu0 %v734
    %3312 = vmatprep.subr.mxu0 %v731
    %3313 = vmatpush2.msra.mxu0 %v730
    %3314 = vmatprep.subr.mxu0 %v727
    %3315 = vmatpush2.msra.mxu0 %v726
    %3316 = vmatprep.subr.mxu0 %v723
    %3317 = vmatpush2.msra.mxu0 %v722
    %3318 = vmatprep.subr.mxu0 %v719
    %3319 = vmatpush2.msra.mxu0 %v718
    %3320 = vmatprep.subr.mxu0 %v715
    %3321 = vmatpush2.msra.mxu0 %v714
    %3322 = vmatprep.subr.mxu0 %v711
    %3323 = vmatpush2.msra.mxu0 %v710
    %3324 = vmatprep.subr.mxu0 %v707
    %3325 = vmatpush2.msra.mxu0 %v706
    %3326 = vmatprep.mubr.f32.mxu0 %v3013
    %3327 = vmatmul.mubr.f32.gmra.mxu0 %v3190
    %v3328 = vpop.f32.mrf.mxu0
    %v3329 = vadd.f32 %v781, %v3328
    %v3330 = vpop.f32.mrf.mxu0
    %v3331 = vadd.f32 %v785, %v3330
    %3332 = vdwg.mxu0
    %v3333 = vxor.u32 %v3258, 2147483648
    %v3334 = vmul.f32 %v3333, 1.442695
    %v3335 = vpow.pop %v3334
    %v3336 = vadd.f32 %v3335, 1.0
    %v3337 = vrcp.pop %v3336
    %v3338 = vmul.f32 1.0, %v3337
    %v3339 = vxor.u32 %v3260, 2147483648
    %v3340 = vmul.f32 %v3339, 1.442695
    %v3341 = vpow.pop %v3340
    %v3342 = vadd.f32 %v3341, 1.0
    %v3343 = vrcp.pop %v3342
    %v3344 = vmul.f32 1.0, %v3343
    %v3345 = vtanh.pop %v3329
    %v3346 = vxor.u32 %v3331, 2147483648
    %v3347 = vmul.f32 %v3346, 1.442695
    %v3348 = vpow.pop %v3347
    %v3349 = vadd.f32 %v3348, 1.0
    %v3350 = vrcp.pop %v3349
    %v3351 = vmul.f32 1.0, %v3350
    %v3352 = vmul.f32 %v3344, %v3011
    %v3353 = vmul.f32 %v3338, %v3345
    %v3354 = vadd.f32 %v3352, %v3353
    %v3355 = vtanh.pop %v3354
    %v3356 = vmul.f32 %v3351, %v3355
    %v3357 = vld [vmem:[%s6] sm:$0xff]
    %v3358 = vld [vmem:[%s6 + $0x8] sm:$0xff]
    %v3359 = vld [vmem:[%s6 + $0x10] sm:$0xff]
    %v3360 = vld [vmem:[%s6 + $0x18] sm:$0xff]
    %v3361 = vld [vmem:[%s6 + $0x20] sm:$0xff]
    %v3362 = vld [vmem:[%s6 + $0x28] sm:$0xff]
    %v3363 = vld [vmem:[%s6 + $0x30] sm:$0xff]
    %v3364 = vld [vmem:[%s6 + $0x38] sm:$0xff]
    %v3365 = vld [vmem:[%s6 + $0x40] sm:$0xff]
    %v3366 = vld [vmem:[%s6 + $0x48] sm:$0xff]
    %v3367 = vld [vmem:[%s6 + $0x50] sm:$0xff]
    %v3368 = vld [vmem:[%s6 + $0x58] sm:$0xff]
    %v3369 = vld [vmem:[%s6 + $0x60] sm:$0xff]
    %v3370 = vld [vmem:[%s6 + $0x68] sm:$0xff]
    %v3371 = vld [vmem:[%s6 + $0x70] sm:$0xff]
    %v3372 = vld [vmem:[%s6 + $0x78] sm:$0xff]
    %v3373 = vld [vmem:[%s7] sm:$0x1]
    %v3375 = vlaneseq
    %v3376 = vshrl.u32 %v3375, 7
    %v3377 = vsub.s32 0, %v3376
    %v3378 = vrot.slane %v3373, %v3377
    %3380 = vmatprep.subr.mxu0 0.0
    %3381 = vmatpush1.msra.mxu0 %v3372
    %3382 = vmatprep.subr.mxu0 0.0
    %3383 = vmatpush1.msra.mxu0 %v3371
    %3384 = vmatprep.subr.mxu0 0.0
    %3385 = vmatpush1.msra.mxu0 %v3370
    %3386 = vmatprep.subr.mxu0 0.0
    %3387 = vmatpush1.msra.mxu0 %v3369
    %3388 = vmatprep.subr.mxu0 0.0
    %3389 = vmatpush1.msra.mxu0 %v3368
    %3390 = vmatprep.subr.mxu0 0.0
    %3391 = vmatpush1.msra.mxu0 %v3367
    %3392 = vmatprep.subr.mxu0 0.0
    %3393 = vmatpush1.msra.mxu0 %v3366
    %3394 = vmatprep.subr.mxu0 0.0
    %3395 = vmatpush1.msra.mxu0 %v3365
    %3396 = vmatprep.subr.mxu0 0.0
    %3397 = vmatpush1.msra.mxu0 %v3364
    %3398 = vmatprep.subr.mxu0 0.0
    %3399 = vmatpush1.msra.mxu0 %v3363
    %3400 = vmatprep.subr.mxu0 0.0
    %3401 = vmatpush1.msra.mxu0 %v3362
    %3402 = vmatprep.subr.mxu0 0.0
    %3403 = vmatpush1.msra.mxu0 %v3361
    %3404 = vmatprep.subr.mxu0 0.0
    %3405 = vmatpush1.msra.mxu0 %v3360
    %3406 = vmatprep.subr.mxu0 0.0
    %3407 = vmatpush1.msra.mxu0 %v3359
    %3408 = vmatprep.subr.mxu0 0.0
    %3409 = vmatpush1.msra.mxu0 %v3358
    %3410 = vmatprep.subr.mxu0 0.0
    %3411 = vmatpush1.msra.mxu0 %v3357
    %3412 = vmatprep.subr.mxu0 0.0
    %3413 = vmatpush2.msra.mxu0 0.0
    %3414 = vmatprep.subr.mxu0 0.0
    %3415 = vmatpush2.msra.mxu0 0.0
    %3416 = vmatprep.subr.mxu0 0.0
    %3417 = vmatpush2.msra.mxu0 0.0
    %3418 = vmatprep.subr.mxu0 0.0
    %3419 = vmatpush2.msra.mxu0 0.0
    %3420 = vmatprep.subr.mxu0 0.0
    %3421 = vmatpush2.msra.mxu0 0.0
    %3422 = vmatprep.subr.mxu0 0.0
    %3423 = vmatpush2.msra.mxu0 0.0
    %3424 = vmatprep.subr.mxu0 0.0
    %3425 = vmatpush2.msra.mxu0 0.0
    %3426 = vmatprep.subr.mxu0 0.0
    %3427 = vmatpush2.msra.mxu0 0.0
    %3428 = vmatprep.subr.mxu0 0.0
    %3429 = vmatpush2.msra.mxu0 0.0
    %3430 = vmatprep.subr.mxu0 0.0
    %3431 = vmatpush2.msra.mxu0 0.0
    %3432 = vmatprep.subr.mxu0 0.0
    %3433 = vmatpush2.msra.mxu0 0.0
    %3434 = vmatprep.subr.mxu0 0.0
    %3435 = vmatpush2.msra.mxu0 0.0
    %3436 = vmatprep.subr.mxu0 0.0
    %3437 = vmatpush2.msra.mxu0 0.0
    %3438 = vmatprep.subr.mxu0 0.0
    %3439 = vmatpush2.msra.mxu0 0.0
    %3440 = vmatprep.subr.mxu0 0.0
    %3441 = vmatpush2.msra.mxu0 0.0
    %3442 = vmatprep.subr.mxu0 0.0
    %3443 = vmatpush2.msra.mxu0 0.0
    %3444 = vmatprep.mubr.f32.mxu0 0.0
    %3445 = vmatmul.mubr.f32.gmra.mxu0 %v3356
    %v3446 = vpop.f32.mrf.mxu0
    %v3447 = vadd.f32 %v3378, %v3446
    %v3448 = vpop.f32.mrf.mxu0
    %3449 = vdwg.mxu0
    %vm3450 = vcmask 23552
    %3451 = vst.msk [vmem:[%s8] sm:$0xff] %vm3450, %v3447
    // Predicated region
    $region42: #{tpu_custom_call.1} parent=1 // pred_check
      _
    $region43: #{tpu_custom_call.1} parent=1 // pred_check_branch
      %3453 = sbr.rel (0) target = $region45
    $region44: #{tpu_custom_call.1} parent=1 // pred_region
      _
    $region45: #{tpu_custom_call.1} parent=1 // pred_fallthru
      _
    // Predicated region
    $region46: #{tpu_custom_call.1} parent=1 // pred_check
      _
    $region47: #{tpu_custom_call.1} parent=1 // pred_check_branch
      %3455 = sbr.rel (0) target = $region49
    $region48: #{tpu_custom_call.1} parent=1 // pred_region
      _
    $region49: #{tpu_custom_call.1} parent=1 // pred_fallthru
      _
    %3456 = vsyncpa [#allocation4], 1
    %3457 = vsyncpa [#allocation6], 1

</llo_original>
